<compile_context>
chip_gen: v5e
topology: v5e:2x2
jax: 0.10.0
libtpu: 0.0.40
codegen_flags: <defaults>
</compile_context>

<pallas_src>
import math

import jax
import jax.numpy as jnp
from jax.experimental import pallas as pl
from jax.experimental.pallas import tpu as pltpu

# ---------------- config (small, consistent with the module) ----------------
B = 2            # batch
S = 8            # text sequence length
D = 64           # hidden_size
H = 4            # num_attention_heads
KV = 2           # num_key_value_heads
HD = D // H      # head_dim = 16
INTER = 128      # MLP intermediate size
NIMG = 1         # images per sample
NCHUNK = 2       # max_num_tiles (vision chunks)
NTOK = 4         # vision tokens per chunk
SKV = NIMG * NCHUNK * NTOK   # cross-attention kv length
EPS = 1e-5       # rms_norm_eps
THETA = 10000.0  # rope_theta
NEG = float(jnp.finfo(jnp.float32).min)   # matches torch.finfo(dtype).min

_WEIGHT_KEYS = (
    "xa_anorm", "xa_wq", "xa_wkv", "xa_qknorm", "xa_wo",
    "xa_fnorm", "xa_wgu", "xa_wd",
    "in_ln", "wqkv", "wo", "post_ln", "wgu", "wd",
)


# ================================ fused Pallas kernel ================================

def _mllama_layer_kernel(
    # per-batch activation inputs
    x_ref, vt_ref, xmask_ref, ftrm_ref, has_ref, smask_ref, cos_ref, sin_ref,
    # cross-attention block weights
    xa_anorm_ref, xa_wq_ref, xa_wkv_ref, xa_qknorm_ref, xa_wo_ref,
    xa_fnorm_ref, xa_wgu_ref, xa_wd_ref,
    # self-attention block weights
    in_ln_ref, wqkv_ref, wo_ref, post_ln_ref, wgu_ref, wd_ref,
    # outputs
    h_out_ref, k_out_ref, v_out_ref, vk_out_ref, vv_out_ref,
    # scratch
    attn_buf,
):
    f32 = jnp.float32
    scale = 1.0 / math.sqrt(HD)
    n_rep = H // KV
    half = HD // 2

    def rms(t, w):
        var = jnp.mean(t * t, axis=-1, keepdims=True)
        return t * jax.lax.rsqrt(var + EPS) * w

    def mlp(t, norm_w, wgu, wd):
        tn = rms(t, norm_w)
        gu = jnp.dot(tn, wgu, preferred_element_type=f32)      # (S, 2*INTER)
        g = gu[:, :INTER]
        u = gu[:, INTER:]
        return jnp.dot(g * jax.nn.sigmoid(g) * u, wd, preferred_element_type=f32)

    def softmax_rows(s):
        s = s - jnp.max(s, axis=-1, keepdims=True)
        p = jnp.exp(s)
        return p * pl.reciprocal(jnp.sum(p, axis=-1, keepdims=True), approx=True)

    x = x_ref[0]            # (S, D)
    vt = vt_ref[0]          # (SKV, D)
    xmask = xmask_ref[0]    # (S, SKV) additive, already * ftrm
    ftrm = ftrm_ref[0]      # (S, 1)   already * has_image
    has_img = has_ref[0]    # (1, 1)
    smask = smask_ref[0]    # (S, S) additive causal mask
    cos = cos_ref[0]        # (S, HD)
    sin = sin_ref[0]        # (S, HD)

    # ---------------- cross-attention block ----------------
    xn = rms(x, xa_anorm_ref[...])
    xq = jnp.dot(xn, xa_wq_ref[...], preferred_element_type=f32)    # (S, H*HD)
    kvp = jnp.dot(vt, xa_wkv_ref[...], preferred_element_type=f32)  # (SKV, 2*KV*HD)
    qn_w = xa_qknorm_ref[0:1, :]
    kn_w = xa_qknorm_ref[1:2, :]

    xk_heads, xv_heads = [], []
    for j in range(KV):
        kh = rms(kvp[:, j * HD:(j + 1) * HD], kn_w)                  # (SKV, HD)
        vh = kvp[:, KV * HD + j * HD: KV * HD + (j + 1) * HD]        # (SKV, HD)
        xk_heads.append(kh)
        xv_heads.append(vh)
        vk_out_ref[0, j] = kh
        vv_out_ref[0, j] = vh

    for j in range(H):
        qh = rms(xq[:, j * HD:(j + 1) * HD], qn_w)                   # (S, HD)
        kh = xk_heads[j // n_rep]
        vh = xv_heads[j // n_rep]
        s = jax.lax.dot_general(qh, kh, (((1,), (1,)), ((), ())),
                                preferred_element_type=f32) * scale + xmask
        p = softmax_rows(s)
        attn_buf[:, j * HD:(j + 1) * HD] = jnp.dot(p, vh, preferred_element_type=f32)

    attn = attn_buf[...] * ftrm                                      # (S, H*HD)
    # xa_wo is pre-scaled by tanh(gate_attn)
    attn = jnp.dot(attn, xa_wo_ref[...], preferred_element_type=f32)
    h1 = x + has_img * attn

    # xa_wd is pre-scaled by tanh(gate_ffwd)
    ffn = mlp(h1, xa_fnorm_ref[...], xa_wgu_ref[...], xa_wd_ref[...])
    h1 = h1 + has_img * (ftrm * ffn)

    # ---------------- self-attention block ----------------
    hn = rms(h1, in_ln_ref[...])
    qkv = jnp.dot(hn, wqkv_ref[...], preferred_element_type=f32)     # (S, (H+2KV)*HD)

    c1 = cos[:, :half]
    c2 = cos[:, half:]
    s1 = sin[:, :half]
    s2 = sin[:, half:]

    def rope_halves(t):
        # rotate_half([t1,t2]) = [-t2, t1]; out = t*cos + rotate_half(t)*sin
        t1 = t[:, :half]
        t2 = t[:, half:]
        return t1 * c1 - t2 * s1, t2 * c2 + t1 * s2

    k_off = H * HD
    v_off = (H + KV) * HD
    k_halves, v_heads = [], []
    for j in range(KV):
        k1, k2 = rope_halves(qkv[:, k_off + j * HD: k_off + (j + 1) * HD])
        vh = qkv[:, v_off + j * HD: v_off + (j + 1) * HD]
        k_halves.append((k1, k2))
        v_heads.append(vh)
        k_out_ref[0, j, :, :half] = k1
        k_out_ref[0, j, :, half:] = k2
        v_out_ref[0, j] = vh

    for j in range(H):
        q1, q2 = rope_halves(qkv[:, j * HD:(j + 1) * HD])
        k1, k2 = k_halves[j // n_rep]
        vh = v_heads[j // n_rep]
        s = (jax.lax.dot_general(q1, k1, (((1,), (1,)), ((), ())),
                                 preferred_element_type=f32)
             + jax.lax.dot_general(q2, k2, (((1,), (1,)), ((), ())),
                                   preferred_element_type=f32))
        s = s * scale + smask
        p = softmax_rows(s)
        attn_buf[:, j * HD:(j + 1) * HD] = jnp.dot(p, vh, preferred_element_type=f32)

    attn = jnp.dot(attn_buf[...], wo_ref[...], preferred_element_type=f32)
    h2 = h1 + attn

    ffn = mlp(h2, post_ln_ref[...], wgu_ref[...], wd_ref[...])
    h_out_ref[0] = h2 + ffn


# ================================ wrapper / model glue ================================

def rope_cos_sin(position_ids, head_dim, theta):
    inv_freq = 1.0 / (theta ** (jnp.arange(0, head_dim, 2, dtype=jnp.float32) / head_dim))
    freqs = position_ids[..., None].astype(jnp.float32) * inv_freq[None, None, :]  # (B,S,hd/2)
    emb = jnp.concatenate([freqs, freqs], axis=-1)                                  # (B,S,hd)
    return jnp.cos(emb), jnp.sin(emb)


def build_xattn_mask(vision_mask, num_chunks, has_image, total_len, nchunk, ntok):
    """Vectorized equivalent of _pad_masks + _get_xattn_mask (additive finite-min mask).
    Returns a (B, S, Skv) additive mask (already * ftrm) and the (B, S, 1) row mask."""
    b, nimg, _ = vision_mask.shape
    ax = jnp.arange(total_len)
    ax2 = jnp.arange(nchunk)
    start = vision_mask[:, :, 0]                       # end index is unused, as in the source
    blocked = (ax[None, :, None, None] < start[:, None, :, None]) | \
              (ax2[None, None, None, :] >= num_chunks[:, None, :, None])
    masks = jnp.where(blocked, NEG, 0.0).astype(jnp.float32)          # (B, S, nimg, nchunk)
    masks = jnp.repeat(masks, ntok, axis=3).reshape(b, total_len, nimg * nchunk * ntok)
    ftrm = (masks != NEG).any(axis=-1).astype(jnp.float32)[..., None]  # (B, S, 1)
    ftrm = ftrm * has_image.reshape(-1, 1, 1)
    masks = masks * ftrm
    return masks, ftrm


def mllama_decoder_layer(fused, hidden_states, attention_mask, position_ids,
                         vision_tokens, vision_mask, num_chunks, has_image):
    """NeuronMllamaDecoderLayer.forward (is_xatten_layer=True) as one fused kernel."""
    b, s, d = hidden_states.shape
    _, nimg, nchunk, ntok, _ = vision_tokens.shape
    skv = nimg * nchunk * ntok

    # cos/sin are layer outputs (cos_cache / sin_cache) and RoPE inputs.
    cos, sin = rope_cos_sin(position_ids, HD, THETA)                              # (B,S,HD)
    # additive masks without any head duplication (tiny; built once in XLA).
    smask = jnp.where(attention_mask[:, 0], 0.0, NEG).astype(jnp.float32)         # (B,S,S)
    xmask, ftrm = build_xattn_mask(vision_mask, num_chunks, has_image, s, nchunk, ntok)
    vt = vision_tokens.reshape(b, skv, d)
    has_img = has_image.reshape(b, 1, 1).astype(jnp.float32)

    weights = [fused[k] for k in _WEIGHT_KEYS]

    def bmap3(i):
        return (i, 0, 0)

    def bmap4(i):
        return (i, 0, 0, 0)

    def wmap(i):
        return (0, 0)

    in_specs = [
        pl.BlockSpec((1, s, d), bmap3),        # hidden_states
        pl.BlockSpec((1, skv, d), bmap3),      # vision tokens (flattened)
        pl.BlockSpec((1, s, skv), bmap3),      # cross-attn additive mask
        pl.BlockSpec((1, s, 1), bmap3),        # full_text_row_masked_out_mask
        pl.BlockSpec((1, 1, 1), bmap3),        # has_image
        pl.BlockSpec((1, s, s), bmap3),        # self-attn additive mask
        pl.BlockSpec((1, s, HD), bmap3),       # cos
        pl.BlockSpec((1, s, HD), bmap3),       # sin
    ] + [pl.BlockSpec(w.shape, wmap) for w in weights]   # weights: resident, DMA'd once

    out_shape = (
        jax.ShapeDtypeStruct((b, s, d), jnp.float32),          # hidden_states out
        jax.ShapeDtypeStruct((b, KV, s, HD), jnp.float32),     # present K (roped)
        jax.ShapeDtypeStruct((b, KV, s, HD), jnp.float32),     # present V
        jax.ShapeDtypeStruct((b, KV, skv, HD), jnp.float32),   # vision K (k_norm'ed)
        jax.ShapeDtypeStruct((b, KV, skv, HD), jnp.float32),   # vision V
    )
    out_specs = (
        pl.BlockSpec((1, s, d), bmap3),
        pl.BlockSpec((1, KV, s, HD), bmap4),
        pl.BlockSpec((1, KV, s, HD), bmap4),
        pl.BlockSpec((1, KV, skv, HD), bmap4),
        pl.BlockSpec((1, KV, skv, HD), bmap4),
    )

    outs = pl.pallas_call(
        _mllama_layer_kernel,
        out_shape=out_shape,
        grid=(b,),
        in_specs=in_specs,
        out_specs=out_specs,
        scratch_shapes=[pltpu.VMEM((s, H * HD), jnp.float32)],   # lane-dense head assembly
        compiler_params=pltpu.CompilerParams(dimension_semantics=("parallel",)),
    )(hidden_states, vt, xmask, ftrm, has_img, smask, cos, sin, *weights)

    h_out, k_out, v_out, vk_out, vv_out = outs
    return h_out, (k_out, v_out), (vk_out, vv_out), cos, sin


# ================================ params ================================

def init_params(key):
    def w(k, shape, scale=0.02):
        return scale * jax.random.normal(k, shape, dtype=jnp.float32)

    keys = jax.random.split(key, 14)
    p = {}
    # cross-attention block (NeuronLlamaCrossAttentionBlock)
    p["xattn_attention_norm"] = jnp.ones((D,), jnp.float32)
    p["xattn_wq"] = w(keys[0], (D, H * HD))
    p["xattn_wk"] = w(keys[1], (D, KV * HD))
    p["xattn_wv"] = w(keys[2], (D, KV * HD))
    p["xattn_wo"] = w(keys[3], (H * HD, D))
    p["xattn_q_norm"] = jnp.ones((HD,), jnp.float32)
    p["xattn_k_norm"] = jnp.ones((HD,), jnp.float32)
    # torch initializes these gates to zeros; use nonzero deterministic values
    # so the cross-attention path actually contributes to the output.
    p["xattn_gate_attn"] = jnp.array([0.5], jnp.float32)
    p["xattn_gate_ffwd"] = jnp.array([0.25], jnp.float32)
    p["xattn_ffn_norm"] = jnp.ones((D,), jnp.float32)
    p["xattn_mlp_gate"] = w(keys[4], (D, INTER))
    p["xattn_mlp_up"] = w(keys[5], (D, INTER))
    p["xattn_mlp_down"] = w(keys[6], (INTER, D))
    # self-attention block (NeuronLlamaAttentionBlock)
    p["input_ln"] = jnp.ones((D,), jnp.float32)
    p["post_ln"] = jnp.ones((D,), jnp.float32)
    p["q_proj"] = w(keys[7], (D, H * HD))
    p["k_proj"] = w(keys[8], (D, KV * HD))
    p["v_proj"] = w(keys[9], (D, KV * HD))
    p["o_proj"] = w(keys[10], (H * HD, D))
    p["mlp_gate"] = w(keys[11], (D, INTER))
    p["mlp_up"] = w(keys[12], (D, INTER))
    p["mlp_down"] = w(keys[13], (INTER, D))
    return p


def fuse_params(p):
    """Concatenate projections and fold tanh(gate) scalars into wo / mlp_down."""
    f = {}
    f["xa_anorm"] = p["xattn_attention_norm"].reshape(1, D)
    f["xa_wq"] = p["xattn_wq"]
    f["xa_wkv"] = jnp.concatenate([p["xattn_wk"], p["xattn_wv"]], axis=1)        # (D, 2*KV*HD)
    f["xa_qknorm"] = jnp.stack([p["xattn_q_norm"], p["xattn_k_norm"]], axis=0)   # (2, HD)
    f["xa_wo"] = p["xattn_wo"] * jnp.tanh(p["xattn_gate_attn"])                  # gate folded
    f["xa_fnorm"] = p["xattn_ffn_norm"].reshape(1, D)
    f["xa_wgu"] = jnp.concatenate([p["xattn_mlp_gate"], p["xattn_mlp_up"]], axis=1)
    f["xa_wd"] = p["xattn_mlp_down"] * jnp.tanh(p["xattn_gate_ffwd"])            # gate folded
    f["in_ln"] = p["input_ln"].reshape(1, D)
    f["wqkv"] = jnp.concatenate([p["q_proj"], p["k_proj"], p["v_proj"]], axis=1)  # (D,(H+2KV)*HD)
    f["wo"] = p["o_proj"]
    f["post_ln"] = p["post_ln"].reshape(1, D)
    f["wgu"] = jnp.concatenate([p["mlp_gate"], p["mlp_up"]], axis=1)
    f["wd"] = p["mlp_down"]
    return f


# ================================ main ================================

if __name__ == "__main__":
    key = jax.random.PRNGKey(0)
    kp, kx, kv = jax.random.split(key, 3)
    params = init_params(kp)
    fused = fuse_params(params)   # done once, outside jit

    hidden_states = jax.random.normal(kx, (B, S, D), dtype=jnp.float32)
    vision_tokens = jax.random.normal(kv, (B, NIMG, NCHUNK, NTOK, D), dtype=jnp.float32)
    attention_mask = jnp.broadcast_to(
        jnp.tril(jnp.ones((S, S), dtype=bool))[None, None], (B, 1, S, S))  # True = attend
    position_ids = jnp.broadcast_to(jnp.arange(S, dtype=jnp.int32)[None], (B, S))
    vision_mask = jnp.array([[[2, S]], [[0, S]]], dtype=jnp.int32)   # (B, NIMG, 2): [start, end]
    num_chunks = jnp.array([[2], [1]], dtype=jnp.int32)              # (B, NIMG)
    has_image = jnp.array([1.0, 1.0], dtype=jnp.float32)             # (B,)

    fwd = jax.jit(mllama_decoder_layer)
    out, present_kv, vision_kv, cos, sin = fwd(
        fused, hidden_states, attention_mask, position_ids,
        vision_tokens, vision_mask, num_chunks, has_image)

    jax.block_until_ready(out)
    jax.block_until_ready(present_kv)
    jax.block_until_ready(vision_kv)

    assert out.shape == (B, S, D)
    assert present_kv[0].shape == (B, KV, S, HD) and present_kv[1].shape == (B, KV, S, HD)
    assert vision_kv[0].shape == (B, KV, NIMG * NCHUNK * NTOK, HD)
    assert vision_kv[1].shape == (B, KV, NIMG * NCHUNK * NTOK, HD)
    assert cos.shape == (B, S, HD) and sin.shape == (B, S, HD)
    assert bool(jnp.all(jnp.isfinite(out)))
    print("KERNEL_OK")
</pallas_src>

<mosaic_0001>
module attributes {stable_mosaic.version = 11 : i64} {
  func.func @_mllama_layer_kernel(%arg0: i32, %arg1: memref<1x8x64xf32, #tpu.memory_space<vmem>>, %arg2: memref<1x8x64xf32, #tpu.memory_space<vmem>>, %arg3: memref<1x8x8xf32, #tpu.memory_space<vmem>>, %arg4: memref<1x8x1xf32, #tpu.memory_space<vmem>>, %arg5: memref<1x1x1xf32, #tpu.memory_space<vmem>>, %arg6: memref<1x8x8xf32, #tpu.memory_space<vmem>>, %arg7: memref<1x8x16xf32, #tpu.memory_space<vmem>>, %arg8: memref<1x8x16xf32, #tpu.memory_space<vmem>>, %arg9: memref<1x64xf32, #tpu.memory_space<vmem>>, %arg10: memref<64x64xf32, #tpu.memory_space<vmem>>, %arg11: memref<64x64xf32, #tpu.memory_space<vmem>>, %arg12: memref<2x16xf32, #tpu.memory_space<vmem>>, %arg13: memref<64x64xf32, #tpu.memory_space<vmem>>, %arg14: memref<1x64xf32, #tpu.memory_space<vmem>>, %arg15: memref<64x256xf32, #tpu.memory_space<vmem>>, %arg16: memref<128x64xf32, #tpu.memory_space<vmem>>, %arg17: memref<1x64xf32, #tpu.memory_space<vmem>>, %arg18: memref<64x128xf32, #tpu.memory_space<vmem>>, %arg19: memref<64x64xf32, #tpu.memory_space<vmem>>, %arg20: memref<1x64xf32, #tpu.memory_space<vmem>>, %arg21: memref<64x256xf32, #tpu.memory_space<vmem>>, %arg22: memref<128x64xf32, #tpu.memory_space<vmem>>, %arg23: memref<1x8x64xf32, #tpu.memory_space<vmem>>, %arg24: memref<1x2x8x16xf32, #tpu.memory_space<vmem>>, %arg25: memref<1x2x8x16xf32, #tpu.memory_space<vmem>>, %arg26: memref<1x2x8x16xf32, #tpu.memory_space<vmem>>, %arg27: memref<1x2x8x16xf32, #tpu.memory_space<vmem>>, %arg28: memref<8x64xf32, #tpu.memory_space<vmem>>) attributes {dimension_semantics = [#tpu.dimension_semantics<parallel>], iteration_bounds = array<i64: 2>, scalar_prefetch = 0 : i64, scratch_operands = 1 : i64, tpu.core_type = #tpu.core_type<tc>, window_params = [{transform_indices = @transform_0, window_bounds = array<i64: 1, 8, 64>}, {transform_indices = @transform_1, window_bounds = array<i64: 1, 8, 64>}, {transform_indices = @transform_2, window_bounds = array<i64: 1, 8, 8>}, {transform_indices = @transform_3, window_bounds = array<i64: 1, 8, 1>}, {transform_indices = @transform_4, window_bounds = array<i64: 1, 1, 1>}, {transform_indices = @transform_5, window_bounds = array<i64: 1, 8, 8>}, {transform_indices = @transform_6, window_bounds = array<i64: 1, 8, 16>}, {transform_indices = @transform_7, window_bounds = array<i64: 1, 8, 16>}, {pipeline_mode = #tpu.pipeline_mode<synchronous>, transform_indices = @transform_8, window_bounds = array<i64: 1, 64>}, {pipeline_mode = #tpu.pipeline_mode<synchronous>, transform_indices = @transform_9, window_bounds = array<i64: 64, 64>}, {pipeline_mode = #tpu.pipeline_mode<synchronous>, transform_indices = @transform_10, window_bounds = array<i64: 64, 64>}, {pipeline_mode = #tpu.pipeline_mode<synchronous>, transform_indices = @transform_11, window_bounds = array<i64: 2, 16>}, {pipeline_mode = #tpu.pipeline_mode<synchronous>, transform_indices = @transform_12, window_bounds = array<i64: 64, 64>}, {pipeline_mode = #tpu.pipeline_mode<synchronous>, transform_indices = @transform_13, window_bounds = array<i64: 1, 64>}, {pipeline_mode = #tpu.pipeline_mode<synchronous>, transform_indices = @transform_14, window_bounds = array<i64: 64, 256>}, {pipeline_mode = #tpu.pipeline_mode<synchronous>, transform_indices = @transform_15, window_bounds = array<i64: 128, 64>}, {pipeline_mode = #tpu.pipeline_mode<synchronous>, transform_indices = @transform_16, window_bounds = array<i64: 1, 64>}, {pipeline_mode = #tpu.pipeline_mode<synchronous>, transform_indices = @transform_17, window_bounds = array<i64: 64, 128>}, {pipeline_mode = #tpu.pipeline_mode<synchronous>, transform_indices = @transform_18, window_bounds = array<i64: 64, 64>}, {pipeline_mode = #tpu.pipeline_mode<synchronous>, transform_indices = @transform_19, window_bounds = array<i64: 1, 64>}, {pipeline_mode = #tpu.pipeline_mode<synchronous>, transform_indices = @transform_20, window_bounds = array<i64: 64, 256>}, {pipeline_mode = #tpu.pipeline_mode<synchronous>, transform_indices = @transform_21, window_bounds = array<i64: 128, 64>}, {transform_indices = @transform_22, window_bounds = array<i64: 1, 8, 64>}, {transform_indices = @transform_23, window_bounds = array<i64: 1, 2, 8, 16>}, {transform_indices = @transform_24, window_bounds = array<i64: 1, 2, 8, 16>}, {transform_indices = @transform_25, window_bounds = array<i64: 1, 2, 8, 16>}, {transform_indices = @transform_26, window_bounds = array<i64: 1, 2, 8, 16>}]} {
    %c0 = arith.constant 0 : index
    %c0_0 = arith.constant 0 : index
    %c0_1 = arith.constant 0 : index
    %0 = vector.load %arg1[%c0, %c0_0, %c0_1] : memref<1x8x64xf32, #tpu.memory_space<vmem>>, vector<1x8x64xf32>
    %1 = vector.shape_cast %0 : vector<1x8x64xf32> to vector<8x64xf32>
    %c0_2 = arith.constant 0 : index
    %c0_3 = arith.constant 0 : index
    %c0_4 = arith.constant 0 : index
    %2 = vector.load %arg2[%c0_2, %c0_3, %c0_4] : memref<1x8x64xf32, #tpu.memory_space<vmem>>, vector<1x8x64xf32>
    %3 = vector.shape_cast %2 : vector<1x8x64xf32> to vector<8x64xf32>
    %c0_5 = arith.constant 0 : index
    %c0_6 = arith.constant 0 : index
    %c0_7 = arith.constant 0 : index
    %4 = vector.load %arg3[%c0_5, %c0_6, %c0_7] : memref<1x8x8xf32, #tpu.memory_space<vmem>>, vector<1x8x8xf32>
    %5 = vector.shape_cast %4 : vector<1x8x8xf32> to vector<8x8xf32>
    %c0_8 = arith.constant 0 : index
    %c0_9 = arith.constant 0 : index
    %c0_10 = arith.constant 0 : index
    %6 = vector.load %arg4[%c0_8, %c0_9, %c0_10] : memref<1x8x1xf32, #tpu.memory_space<vmem>>, vector<1x8x1xf32>
    %7 = vector.shape_cast %6 : vector<1x8x1xf32> to vector<8x1xf32>
    %c0_11 = arith.constant 0 : index
    %c0_12 = arith.constant 0 : index
    %c0_13 = arith.constant 0 : index
    %8 = vector.load %arg5[%c0_11, %c0_12, %c0_13] : memref<1x1x1xf32, #tpu.memory_space<vmem>>, vector<1x1x1xf32>
    %9 = vector.shape_cast %8 : vector<1x1x1xf32> to vector<1x1xf32>
    %c0_14 = arith.constant 0 : index
    %c0_15 = arith.constant 0 : index
    %c0_16 = arith.constant 0 : index
    %10 = vector.load %arg6[%c0_14, %c0_15, %c0_16] : memref<1x8x8xf32, #tpu.memory_space<vmem>>, vector<1x8x8xf32>
    %11 = vector.shape_cast %10 : vector<1x8x8xf32> to vector<8x8xf32>
    %c0_17 = arith.constant 0 : index
    %c0_18 = arith.constant 0 : index
    %c0_19 = arith.constant 0 : index
    %12 = vector.load %arg7[%c0_17, %c0_18, %c0_19] : memref<1x8x16xf32, #tpu.memory_space<vmem>>, vector<1x8x16xf32>
    %13 = vector.shape_cast %12 : vector<1x8x16xf32> to vector<8x16xf32>
    %c0_20 = arith.constant 0 : index
    %c0_21 = arith.constant 0 : index
    %c0_22 = arith.constant 0 : index
    %14 = vector.load %arg8[%c0_20, %c0_21, %c0_22] : memref<1x8x16xf32, #tpu.memory_space<vmem>>, vector<1x8x16xf32>
    %15 = vector.shape_cast %14 : vector<1x8x16xf32> to vector<8x16xf32>
    %c0_23 = arith.constant 0 : index
    %c0_24 = arith.constant 0 : index
    %16 = vector.load %arg9[%c0_23, %c0_24] : memref<1x64xf32, #tpu.memory_space<vmem>>, vector<1x64xf32>
    %17 = arith.mulf %1, %1 : vector<8x64xf32>
    %cst = arith.constant dense<0.000000e+00> : vector<8xf32>
    %18 = vector.multi_reduction <add>, %17, %cst [1] : vector<8x64xf32> to vector<8xf32>
    %19 = vector.shape_cast %18 : vector<8xf32> to vector<8x1xf32>
    %cst_25 = arith.constant 6.400000e+01 : f32
    %20 = vector.broadcast %cst_25 : f32 to vector<8x1xf32>
    %21 = arith.divf %19, %20 : vector<8x1xf32>
    %cst_26 = arith.constant 9.99999974E-6 : f32
    %22 = vector.broadcast %cst_26 : f32 to vector<8x1xf32>
    %23 = arith.addf %21, %22 : vector<8x1xf32>
    %24 = math.rsqrt %23 : vector<8x1xf32>
    %25 = vector.broadcast %24 : vector<8x1xf32> to vector<8x64xf32>
    %26 = arith.mulf %1, %25 : vector<8x64xf32>
    %27 = vector.broadcast %16 : vector<1x64xf32> to vector<8x64xf32>
    %28 = arith.mulf %26, %27 : vector<8x64xf32>
    %c0_27 = arith.constant 0 : index
    %c0_28 = arith.constant 0 : index
    %29 = vector.load %arg10[%c0_27, %c0_28] : memref<64x64xf32, #tpu.memory_space<vmem>>, vector<64x64xf32>
    %cst_29 = arith.constant dense<0.000000e+00> : vector<8x64xf32>
    %30 = tpu.matmul %28, %29, %cst_29 {dimension_numbers = #tpu.dot_dimension_numbers<[1], [0], [0], [1], [0, 0, 1, 1], [], []>} : vector<8x64xf32>, vector<64x64xf32>, vector<8x64xf32> -> vector<8x64xf32>
    %c0_30 = arith.constant 0 : index
    %c0_31 = arith.constant 0 : index
    %31 = vector.load %arg11[%c0_30, %c0_31] : memref<64x64xf32, #tpu.memory_space<vmem>>, vector<64x64xf32>
    %cst_32 = arith.constant dense<0.000000e+00> : vector<8x64xf32>
    %32 = tpu.matmul %3, %31, %cst_32 {dimension_numbers = #tpu.dot_dimension_numbers<[1], [0], [0], [1], [0, 0, 1, 1], [], []>} : vector<8x64xf32>, vector<64x64xf32>, vector<8x64xf32> -> vector<8x64xf32>
    %c0_33 = arith.constant 0 : index
    %c0_34 = arith.constant 0 : index
    %33 = vector.load %arg12[%c0_33, %c0_34] : memref<2x16xf32, #tpu.memory_space<vmem>>, vector<1x16xf32>
    %c1 = arith.constant 1 : index
    %c0_35 = arith.constant 0 : index
    %34 = vector.load %arg12[%c1, %c0_35] : memref<2x16xf32, #tpu.memory_space<vmem>>, vector<1x16xf32>
    %35 = vector.extract_strided_slice %32 {offsets = [0, 0], sizes = [8, 16], strides = [1, 1]} : vector<8x64xf32> to vector<8x16xf32>
    %36 = arith.mulf %35, %35 : vector<8x16xf32>
    %cst_36 = arith.constant dense<0.000000e+00> : vector<8xf32>
    %37 = vector.multi_reduction <add>, %36, %cst_36 [1] : vector<8x16xf32> to vector<8xf32>
    %38 = vector.shape_cast %37 : vector<8xf32> to vector<8x1xf32>
    %cst_37 = arith.constant 1.600000e+01 : f32
    %39 = vector.broadcast %cst_37 : f32 to vector<8x1xf32>
    %40 = arith.divf %38, %39 : vector<8x1xf32>
    %cst_38 = arith.constant 9.99999974E-6 : f32
    %41 = vector.broadcast %cst_38 : f32 to vector<8x1xf32>
    %42 = arith.addf %40, %41 : vector<8x1xf32>
    %43 = math.rsqrt %42 : vector<8x1xf32>
    %44 = vector.broadcast %43 : vector<8x1xf32> to vector<8x16xf32>
    %45 = arith.mulf %35, %44 : vector<8x16xf32>
    %46 = vector.broadcast %34 : vector<1x16xf32> to vector<8x16xf32>
    %47 = arith.mulf %45, %46 : vector<8x16xf32>
    %48 = vector.extract_strided_slice %32 {offsets = [0, 32], sizes = [8, 16], strides = [1, 1]} : vector<8x64xf32> to vector<8x16xf32>
    %c0_39 = arith.constant 0 : index
    %c0_40 = arith.constant 0 : index
    %c0_41 = arith.constant 0 : index
    %c0_42 = arith.constant 0 : index
    %49 = vector.load %arg26[%c0_39, %c0_40, %c0_41, %c0_42] : memref<1x2x8x16xf32, #tpu.memory_space<vmem>>, vector<1x1x8x16xf32>
    %50 = vector.shape_cast %49 : vector<1x1x8x16xf32> to vector<8x16xf32>
    %51 = vector.shape_cast %47 : vector<8x16xf32> to vector<1x1x8x16xf32>
    tpu.vector_store %arg26[%c0_39, %c0_40, %c0_41, %c0_42], %51 {strides = array<i32>} : memref<1x2x8x16xf32, #tpu.memory_space<vmem>>, vector<1x1x8x16xf32>,
    %c0_43 = arith.constant 0 : index
    %c0_44 = arith.constant 0 : index
    %c0_45 = arith.constant 0 : index
    %c0_46 = arith.constant 0 : index
    %52 = vector.load %arg27[%c0_43, %c0_44, %c0_45, %c0_46] : memref<1x2x8x16xf32, #tpu.memory_space<vmem>>, vector<1x1x8x16xf32>
    %53 = vector.shape_cast %52 : vector<1x1x8x16xf32> to vector<8x16xf32>
    %54 = vector.shape_cast %48 : vector<8x16xf32> to vector<1x1x8x16xf32>
    tpu.vector_store %arg27[%c0_43, %c0_44, %c0_45, %c0_46], %54 {strides = array<i32>} : memref<1x2x8x16xf32, #tpu.memory_space<vmem>>, vector<1x1x8x16xf32>,
    %55 = vector.extract_strided_slice %32 {offsets = [0, 16], sizes = [8, 16], strides = [1, 1]} : vector<8x64xf32> to vector<8x16xf32>
    %56 = arith.mulf %55, %55 : vector<8x16xf32>
    %cst_47 = arith.constant dense<0.000000e+00> : vector<8xf32>
    %57 = vector.multi_reduction <add>, %56, %cst_47 [1] : vector<8x16xf32> to vector<8xf32>
    %58 = vector.shape_cast %57 : vector<8xf32> to vector<8x1xf32>
    %cst_48 = arith.constant 1.600000e+01 : f32
    %59 = vector.broadcast %cst_48 : f32 to vector<8x1xf32>
    %60 = arith.divf %58, %59 : vector<8x1xf32>
    %cst_49 = arith.constant 9.99999974E-6 : f32
    %61 = vector.broadcast %cst_49 : f32 to vector<8x1xf32>
    %62 = arith.addf %60, %61 : vector<8x1xf32>
    %63 = math.rsqrt %62 : vector<8x1xf32>
    %64 = vector.broadcast %63 : vector<8x1xf32> to vector<8x16xf32>
    %65 = arith.mulf %55, %64 : vector<8x16xf32>
    %66 = vector.broadcast %34 : vector<1x16xf32> to vector<8x16xf32>
    %67 = arith.mulf %65, %66 : vector<8x16xf32>
    %68 = vector.extract_strided_slice %32 {offsets = [0, 48], sizes = [8, 16], strides = [1, 1]} : vector<8x64xf32> to vector<8x16xf32>
    %c0_50 = arith.constant 0 : index
    %c1_51 = arith.constant 1 : index
    %c0_52 = arith.constant 0 : index
    %c0_53 = arith.constant 0 : index
    %69 = vector.load %arg26[%c0_50, %c1_51, %c0_52, %c0_53] : memref<1x2x8x16xf32, #tpu.memory_space<vmem>>, vector<1x1x8x16xf32>
    %70 = vector.shape_cast %69 : vector<1x1x8x16xf32> to vector<8x16xf32>
    %71 = vector.shape_cast %67 : vector<8x16xf32> to vector<1x1x8x16xf32>
    tpu.vector_store %arg26[%c0_50, %c1_51, %c0_52, %c0_53], %71 {strides = array<i32>} : memref<1x2x8x16xf32, #tpu.memory_space<vmem>>, vector<1x1x8x16xf32>,
    %c0_54 = arith.constant 0 : index
    %c1_55 = arith.constant 1 : index
    %c0_56 = arith.constant 0 : index
    %c0_57 = arith.constant 0 : index
    %72 = vector.load %arg27[%c0_54, %c1_55, %c0_56, %c0_57] : memref<1x2x8x16xf32, #tpu.memory_space<vmem>>, vector<1x1x8x16xf32>
    %73 = vector.shape_cast %72 : vector<1x1x8x16xf32> to vector<8x16xf32>
    %74 = vector.shape_cast %68 : vector<8x16xf32> to vector<1x1x8x16xf32>
    tpu.vector_store %arg27[%c0_54, %c1_55, %c0_56, %c0_57], %74 {strides = array<i32>} : memref<1x2x8x16xf32, #tpu.memory_space<vmem>>, vector<1x1x8x16xf32>,
    %75 = vector.extract_strided_slice %30 {offsets = [0, 0], sizes = [8, 16], strides = [1, 1]} : vector<8x64xf32> to vector<8x16xf32>
    %76 = arith.mulf %75, %75 : vector<8x16xf32>
    %cst_58 = arith.constant dense<0.000000e+00> : vector<8xf32>
    %77 = vector.multi_reduction <add>, %76, %cst_58 [1] : vector<8x16xf32> to vector<8xf32>
    %78 = vector.shape_cast %77 : vector<8xf32> to vector<8x1xf32>
    %cst_59 = arith.constant 1.600000e+01 : f32
    %79 = vector.broadcast %cst_59 : f32 to vector<8x1xf32>
    %80 = arith.divf %78, %79 : vector<8x1xf32>
    %cst_60 = arith.constant 9.99999974E-6 : f32
    %81 = vector.broadcast %cst_60 : f32 to vector<8x1xf32>
    %82 = arith.addf %80, %81 : vector<8x1xf32>
    %83 = math.rsqrt %82 : vector<8x1xf32>
    %84 = vector.broadcast %83 : vector<8x1xf32> to vector<8x16xf32>
    %85 = arith.mulf %75, %84 : vector<8x16xf32>
    %86 = vector.broadcast %33 : vector<1x16xf32> to vector<8x16xf32>
    %87 = arith.mulf %85, %86 : vector<8x16xf32>
    %cst_61 = arith.constant dense<0.000000e+00> : vector<8x8xf32>
    %88 = tpu.matmul %87, %47, %cst_61 {dimension_numbers = #tpu.dot_dimension_numbers<[1], [1], [0], [0], [0, 0, 1, 0], [], []>} : vector<8x16xf32>, vector<8x16xf32>, vector<8x8xf32> -> vector<8x8xf32>
    %cst_62 = arith.constant 2.500000e-01 : f32
    %89 = vector.broadcast %cst_62 : f32 to vector<8x8xf32>
    %90 = arith.mulf %88, %89 : vector<8x8xf32>
    %91 = arith.addf %90, %5 : vector<8x8xf32>
    %cst_63 = arith.constant dense<0xFF800000> : vector<8xf32>
    %92 = vector.multi_reduction <maximumf>, %91, %cst_63 [1] : vector<8x8xf32> to vector<8xf32>
    %93 = vector.shape_cast %92 : vector<8xf32> to vector<8x1xf32>
    %94 = vector.broadcast %93 : vector<8x1xf32> to vector<8x8xf32>
    %95 = arith.subf %91, %94 : vector<8x8xf32>
    %96 = math.exp %95 : vector<8x8xf32>
    %cst_64 = arith.constant dense<0.000000e+00> : vector<8xf32>
    %97 = vector.multi_reduction <add>, %96, %cst_64 [1] : vector<8x8xf32> to vector<8xf32>
    %98 = vector.shape_cast %97 : vector<8xf32> to vector<8x1xf32>
    %99 = tpu.reciprocal %98 {approx = true} : vector<8x1xf32> -> vector<8x1xf32>
    %100 = vector.broadcast %99 : vector<8x1xf32> to vector<8x8xf32>
    %101 = arith.mulf %96, %100 : vector<8x8xf32>
    %cst_65 = arith.constant dense<0.000000e+00> : vector<8x16xf32>
    %102 = tpu.matmul %101, %48, %cst_65 {dimension_numbers = #tpu.dot_dimension_numbers<[1], [0], [0], [1], [0, 0, 1, 1], [], []>} : vector<8x8xf32>, vector<8x16xf32>, vector<8x16xf32> -> vector<8x16xf32>
    %c0_66 = arith.constant 0 : index
    %c0_67 = arith.constant 0 : index
    %103 = vector.load %arg28[%c0_66, %c0_67] : memref<8x64xf32, #tpu.memory_space<vmem>>, vector<8x16xf32>
    tpu.vector_store %arg28[%c0_66, %c0_67], %102 {strides = array<i32>} : memref<8x64xf32, #tpu.memory_space<vmem>>, vector<8x16xf32>,
    %104 = vector.extract_strided_slice %30 {offsets = [0, 16], sizes = [8, 16], strides = [1, 1]} : vector<8x64xf32> to vector<8x16xf32>
    %105 = arith.mulf %104, %104 : vector<8x16xf32>
    %cst_68 = arith.constant dense<0.000000e+00> : vector<8xf32>
    %106 = vector.multi_reduction <add>, %105, %cst_68 [1] : vector<8x16xf32> to vector<8xf32>
    %107 = vector.shape_cast %106 : vector<8xf32> to vector<8x1xf32>
    %cst_69 = arith.constant 1.600000e+01 : f32
    %108 = vector.broadcast %cst_69 : f32 to vector<8x1xf32>
    %109 = arith.divf %107, %108 : vector<8x1xf32>
    %cst_70 = arith.constant 9.99999974E-6 : f32
    %110 = vector.broadcast %cst_70 : f32 to vector<8x1xf32>
    %111 = arith.addf %109, %110 : vector<8x1xf32>
    %112 = math.rsqrt %111 : vector<8x1xf32>
    %113 = vector.broadcast %112 : vector<8x1xf32> to vector<8x16xf32>
    %114 = arith.mulf %104, %113 : vector<8x16xf32>
    %115 = vector.broadcast %33 : vector<1x16xf32> to vector<8x16xf32>
    %116 = arith.mulf %114, %115 : vector<8x16xf32>
    %cst_71 = arith.constant dense<0.000000e+00> : vector<8x8xf32>
    %117 = tpu.matmul %116, %47, %cst_71 {dimension_numbers = #tpu.dot_dimension_numbers<[1], [1], [0], [0], [0, 0, 1, 0], [], []>} : vector<8x16xf32>, vector<8x16xf32>, vector<8x8xf32> -> vector<8x8xf32>
    %cst_72 = arith.constant 2.500000e-01 : f32
    %118 = vector.broadcast %cst_72 : f32 to vector<8x8xf32>
    %119 = arith.mulf %117, %118 : vector<8x8xf32>
    %120 = arith.addf %119, %5 : vector<8x8xf32>
    %cst_73 = arith.constant dense<0xFF800000> : vector<8xf32>
    %121 = vector.multi_reduction <maximumf>, %120, %cst_73 [1] : vector<8x8xf32> to vector<8xf32>
    %122 = vector.shape_cast %121 : vector<8xf32> to vector<8x1xf32>
    %123 = vector.broadcast %122 : vector<8x1xf32> to vector<8x8xf32>
    %124 = arith.subf %120, %123 : vector<8x8xf32>
    %125 = math.exp %124 : vector<8x8xf32>
    %cst_74 = arith.constant dense<0.000000e+00> : vector<8xf32>
    %126 = vector.multi_reduction <add>, %125, %cst_74 [1] : vector<8x8xf32> to vector<8xf32>
    %127 = vector.shape_cast %126 : vector<8xf32> to vector<8x1xf32>
    %128 = tpu.reciprocal %127 {approx = true} : vector<8x1xf32> -> vector<8x1xf32>
    %129 = vector.broadcast %128 : vector<8x1xf32> to vector<8x8xf32>
    %130 = arith.mulf %125, %129 : vector<8x8xf32>
    %cst_75 = arith.constant dense<0.000000e+00> : vector<8x16xf32>
    %131 = tpu.matmul %130, %48, %cst_75 {dimension_numbers = #tpu.dot_dimension_numbers<[1], [0], [0], [1], [0, 0, 1, 1], [], []>} : vector<8x8xf32>, vector<8x16xf32>, vector<8x16xf32> -> vector<8x16xf32>
    %c0_76 = arith.constant 0 : index
    %c16 = arith.constant 16 : index
    %132 = vector.load %arg28[%c0_76, %c16] : memref<8x64xf32, #tpu.memory_space<vmem>>, vector<8x16xf32>
    tpu.vector_store %arg28[%c0_76, %c16], %131 {strides = array<i32>} : memref<8x64xf32, #tpu.memory_space<vmem>>, vector<8x16xf32>,
    %133 = vector.extract_strided_slice %30 {offsets = [0, 32], sizes = [8, 16], strides = [1, 1]} : vector<8x64xf32> to vector<8x16xf32>
    %134 = arith.mulf %133, %133 : vector<8x16xf32>
    %cst_77 = arith.constant dense<0.000000e+00> : vector<8xf32>
    %135 = vector.multi_reduction <add>, %134, %cst_77 [1] : vector<8x16xf32> to vector<8xf32>
    %136 = vector.shape_cast %135 : vector<8xf32> to vector<8x1xf32>
    %cst_78 = arith.constant 1.600000e+01 : f32
    %137 = vector.broadcast %cst_78 : f32 to vector<8x1xf32>
    %138 = arith.divf %136, %137 : vector<8x1xf32>
    %cst_79 = arith.constant 9.99999974E-6 : f32
    %139 = vector.broadcast %cst_79 : f32 to vector<8x1xf32>
    %140 = arith.addf %138, %139 : vector<8x1xf32>
    %141 = math.rsqrt %140 : vector<8x1xf32>
    %142 = vector.broadcast %141 : vector<8x1xf32> to vector<8x16xf32>
    %143 = arith.mulf %133, %142 : vector<8x16xf32>
    %144 = vector.broadcast %33 : vector<1x16xf32> to vector<8x16xf32>
    %145 = arith.mulf %143, %144 : vector<8x16xf32>
    %cst_80 = arith.constant dense<0.000000e+00> : vector<8x8xf32>
    %146 = tpu.matmul %145, %67, %cst_80 {dimension_numbers = #tpu.dot_dimension_numbers<[1], [1], [0], [0], [0, 0, 1, 0], [], []>} : vector<8x16xf32>, vector<8x16xf32>, vector<8x8xf32> -> vector<8x8xf32>
    %cst_81 = arith.constant 2.500000e-01 : f32
    %147 = vector.broadcast %cst_81 : f32 to vector<8x8xf32>
    %148 = arith.mulf %146, %147 : vector<8x8xf32>
    %149 = arith.addf %148, %5 : vector<8x8xf32>
    %cst_82 = arith.constant dense<0xFF800000> : vector<8xf32>
    %150 = vector.multi_reduction <maximumf>, %149, %cst_82 [1] : vector<8x8xf32> to vector<8xf32>
    %151 = vector.shape_cast %150 : vector<8xf32> to vector<8x1xf32>
    %152 = vector.broadcast %151 : vector<8x1xf32> to vector<8x8xf32>
    %153 = arith.subf %149, %152 : vector<8x8xf32>
    %154 = math.exp %153 : vector<8x8xf32>
    %cst_83 = arith.constant dense<0.000000e+00> : vector<8xf32>
    %155 = vector.multi_reduction <add>, %154, %cst_83 [1] : vector<8x8xf32> to vector<8xf32>
    %156 = vector.shape_cast %155 : vector<8xf32> to vector<8x1xf32>
    %157 = tpu.reciprocal %156 {approx = true} : vector<8x1xf32> -> vector<8x1xf32>
    %158 = vector.broadcast %157 : vector<8x1xf32> to vector<8x8xf32>
    %159 = arith.mulf %154, %158 : vector<8x8xf32>
    %cst_84 = arith.constant dense<0.000000e+00> : vector<8x16xf32>
    %160 = tpu.matmul %159, %68, %cst_84 {dimension_numbers = #tpu.dot_dimension_numbers<[1], [0], [0], [1], [0, 0, 1, 1], [], []>} : vector<8x8xf32>, vector<8x16xf32>, vector<8x16xf32> -> vector<8x16xf32>
    %c0_85 = arith.constant 0 : index
    %c32 = arith.constant 32 : index
    %161 = vector.load %arg28[%c0_85, %c32] : memref<8x64xf32, #tpu.memory_space<vmem>>, vector<8x16xf32>
    tpu.vector_store %arg28[%c0_85, %c32], %160 {strides = array<i32>} : memref<8x64xf32, #tpu.memory_space<vmem>>, vector<8x16xf32>,
    %162 = vector.extract_strided_slice %30 {offsets = [0, 48], sizes = [8, 16], strides = [1, 1]} : vector<8x64xf32> to vector<8x16xf32>
    %163 = arith.mulf %162, %162 : vector<8x16xf32>
    %cst_86 = arith.constant dense<0.000000e+00> : vector<8xf32>
    %164 = vector.multi_reduction <add>, %163, %cst_86 [1] : vector<8x16xf32> to vector<8xf32>
    %165 = vector.shape_cast %164 : vector<8xf32> to vector<8x1xf32>
    %cst_87 = arith.constant 1.600000e+01 : f32
    %166 = vector.broadcast %cst_87 : f32 to vector<8x1xf32>
    %167 = arith.divf %165, %166 : vector<8x1xf32>
    %cst_88 = arith.constant 9.99999974E-6 : f32
    %168 = vector.broadcast %cst_88 : f32 to vector<8x1xf32>
    %169 = arith.addf %167, %168 : vector<8x1xf32>
    %170 = math.rsqrt %169 : vector<8x1xf32>
    %171 = vector.broadcast %170 : vector<8x1xf32> to vector<8x16xf32>
    %172 = arith.mulf %162, %171 : vector<8x16xf32>
    %173 = vector.broadcast %33 : vector<1x16xf32> to vector<8x16xf32>
    %174 = arith.mulf %172, %173 : vector<8x16xf32>
    %cst_89 = arith.constant dense<0.000000e+00> : vector<8x8xf32>
    %175 = tpu.matmul %174, %67, %cst_89 {dimension_numbers = #tpu.dot_dimension_numbers<[1], [1], [0], [0], [0, 0, 1, 0], [], []>} : vector<8x16xf32>, vector<8x16xf32>, vector<8x8xf32> -> vector<8x8xf32>
    %cst_90 = arith.constant 2.500000e-01 : f32
    %176 = vector.broadcast %cst_90 : f32 to vector<8x8xf32>
    %177 = arith.mulf %175, %176 : vector<8x8xf32>
    %178 = arith.addf %177, %5 : vector<8x8xf32>
    %cst_91 = arith.constant dense<0xFF800000> : vector<8xf32>
    %179 = vector.multi_reduction <maximumf>, %178, %cst_91 [1] : vector<8x8xf32> to vector<8xf32>
    %180 = vector.shape_cast %179 : vector<8xf32> to vector<8x1xf32>
    %181 = vector.broadcast %180 : vector<8x1xf32> to vector<8x8xf32>
    %182 = arith.subf %178, %181 : vector<8x8xf32>
    %183 = math.exp %182 : vector<8x8xf32>
    %cst_92 = arith.constant dense<0.000000e+00> : vector<8xf32>
    %184 = vector.multi_reduction <add>, %183, %cst_92 [1] : vector<8x8xf32> to vector<8xf32>
    %185 = vector.shape_cast %184 : vector<8xf32> to vector<8x1xf32>
    %186 = tpu.reciprocal %185 {approx = true} : vector<8x1xf32> -> vector<8x1xf32>
    %187 = vector.broadcast %186 : vector<8x1xf32> to vector<8x8xf32>
    %188 = arith.mulf %183, %187 : vector<8x8xf32>
    %cst_93 = arith.constant dense<0.000000e+00> : vector<8x16xf32>
    %189 = tpu.matmul %188, %68, %cst_93 {dimension_numbers = #tpu.dot_dimension_numbers<[1], [0], [0], [1], [0, 0, 1, 1], [], []>} : vector<8x8xf32>, vector<8x16xf32>, vector<8x16xf32> -> vector<8x16xf32>
    %c0_94 = arith.constant 0 : index
    %c48 = arith.constant 48 : index
    %190 = vector.load %arg28[%c0_94, %c48] : memref<8x64xf32, #tpu.memory_space<vmem>>, vector<8x16xf32>
    tpu.vector_store %arg28[%c0_94, %c48], %189 {strides = array<i32>} : memref<8x64xf32, #tpu.memory_space<vmem>>, vector<8x16xf32>,
    %c0_95 = arith.constant 0 : index
    %c0_96 = arith.constant 0 : index
    %191 = vector.load %arg28[%c0_95, %c0_96] : memref<8x64xf32, #tpu.memory_space<vmem>>, vector<8x64xf32>
    %192 = vector.broadcast %7 : vector<8x1xf32> to vector<8x64xf32>
    %193 = arith.mulf %191, %192 : vector<8x64xf32>
    %c0_97 = arith.constant 0 : index
    %c0_98 = arith.constant 0 : index
    %194 = vector.load %arg13[%c0_97, %c0_98] : memref<64x64xf32, #tpu.memory_space<vmem>>, vector<64x64xf32>
    %cst_99 = arith.constant dense<0.000000e+00> : vector<8x64xf32>
    %195 = tpu.matmul %193, %194, %cst_99 {dimension_numbers = #tpu.dot_dimension_numbers<[1], [0], [0], [1], [0, 0, 1, 1], [], []>} : vector<8x64xf32>, vector<64x64xf32>, vector<8x64xf32> -> vector<8x64xf32>
    %196 = vector.broadcast %9 : vector<1x1xf32> to vector<8x64xf32>
    %197 = arith.mulf %196, %195 : vector<8x64xf32>
    %198 = arith.addf %1, %197 : vector<8x64xf32>
    %c0_100 = arith.constant 0 : index
    %c0_101 = arith.constant 0 : index
    %199 = vector.load %arg14[%c0_100, %c0_101] : memref<1x64xf32, #tpu.memory_space<vmem>>, vector<1x64xf32>
    %c0_102 = arith.constant 0 : index
    %c0_103 = arith.constant 0 : index
    %200 = vector.load %arg15[%c0_102, %c0_103] : memref<64x256xf32, #tpu.memory_space<vmem>>, vector<64x256xf32>
    %c0_104 = arith.constant 0 : index
    %c0_105 = arith.constant 0 : index
    %201 = vector.load %arg16[%c0_104, %c0_105] : memref<128x64xf32, #tpu.memory_space<vmem>>, vector<128x64xf32>
    %202 = arith.mulf %198, %198 : vector<8x64xf32>
    %cst_106 = arith.constant dense<0.000000e+00> : vector<8xf32>
    %203 = vector.multi_reduction <add>, %202, %cst_106 [1] : vector<8x64xf32> to vector<8xf32>
    %204 = vector.shape_cast %203 : vector<8xf32> to vector<8x1xf32>
    %cst_107 = arith.constant 6.400000e+01 : f32
    %205 = vector.broadcast %cst_107 : f32 to vector<8x1xf32>
    %206 = arith.divf %204, %205 : vector<8x1xf32>
    %cst_108 = arith.constant 9.99999974E-6 : f32
    %207 = vector.broadcast %cst_108 : f32 to vector<8x1xf32>
    %208 = arith.addf %206, %207 : vector<8x1xf32>
    %209 = math.rsqrt %208 : vector<8x1xf32>
    %210 = vector.broadcast %209 : vector<8x1xf32> to vector<8x64xf32>
    %211 = arith.mulf %198, %210 : vector<8x64xf32>
    %212 = vector.broadcast %199 : vector<1x64xf32> to vector<8x64xf32>
    %213 = arith.mulf %211, %212 : vector<8x64xf32>
    %cst_109 = arith.constant dense<0.000000e+00> : vector<8x256xf32>
    %214 = tpu.matmul %213, %200, %cst_109 {dimension_numbers = #tpu.dot_dimension_numbers<[1], [0], [0], [1], [0, 0, 1, 1], [], []>} : vector<8x64xf32>, vector<64x256xf32>, vector<8x256xf32> -> vector<8x256xf32>
    %215 = vector.extract_strided_slice %214 {offsets = [0, 0], sizes = [8, 128], strides = [1, 1]} : vector<8x256xf32> to vector<8x128xf32>
    %216 = vector.extract_strided_slice %214 {offsets = [0, 128], sizes = [8, 128], strides = [1, 1]} : vector<8x256xf32> to vector<8x128xf32>
    %217 = arith.negf %215 : vector<8x128xf32>
    %218 = math.exp %217 : vector<8x128xf32>
    %cst_110 = arith.constant 1.000000e+00 : f32
    %219 = vector.broadcast %cst_110 : f32 to vector<8x128xf32>
    %220 = arith.addf %219, %218 : vector<8x128xf32>
    %221 = arith.divf %219, %220 : vector<8x128xf32>
    %222 = arith.mulf %215, %221 : vector<8x128xf32>
    %223 = arith.mulf %222, %216 : vector<8x128xf32>
    %cst_111 = arith.constant dense<0.000000e+00> : vector<8x64xf32>
    %224 = tpu.matmul %223, %201, %cst_111 {dimension_numbers = #tpu.dot_dimension_numbers<[1], [0], [0], [1], [0, 0, 1, 1], [], []>} : vector<8x128xf32>, vector<128x64xf32>, vector<8x64xf32> -> vector<8x64xf32>
    %225 = vector.broadcast %7 : vector<8x1xf32> to vector<8x64xf32>
    %226 = arith.mulf %225, %224 : vector<8x64xf32>
    %227 = vector.broadcast %9 : vector<1x1xf32> to vector<8x64xf32>
    %228 = arith.mulf %227, %226 : vector<8x64xf32>
    %229 = arith.addf %198, %228 : vector<8x64xf32>
    %c0_112 = arith.constant 0 : index
    %c0_113 = arith.constant 0 : index
    %230 = vector.load %arg17[%c0_112, %c0_113] : memref<1x64xf32, #tpu.memory_space<vmem>>, vector<1x64xf32>
    %231 = arith.mulf %229, %229 : vector<8x64xf32>
    %cst_114 = arith.constant dense<0.000000e+00> : vector<8xf32>
    %232 = vector.multi_reduction <add>, %231, %cst_114 [1] : vector<8x64xf32> to vector<8xf32>
    %233 = vector.shape_cast %232 : vector<8xf32> to vector<8x1xf32>
    %cst_115 = arith.constant 6.400000e+01 : f32
    %234 = vector.broadcast %cst_115 : f32 to vector<8x1xf32>
    %235 = arith.divf %233, %234 : vector<8x1xf32>
    %cst_116 = arith.constant 9.99999974E-6 : f32
    %236 = vector.broadcast %cst_116 : f32 to vector<8x1xf32>
    %237 = arith.addf %235, %236 : vector<8x1xf32>
    %238 = math.rsqrt %237 : vector<8x1xf32>
    %239 = vector.broadcast %238 : vector<8x1xf32> to vector<8x64xf32>
    %240 = arith.mulf %229, %239 : vector<8x64xf32>
    %241 = vector.broadcast %230 : vector<1x64xf32> to vector<8x64xf32>
    %242 = arith.mulf %240, %241 : vector<8x64xf32>
    %c0_117 = arith.constant 0 : index
    %c0_118 = arith.constant 0 : index
    %243 = vector.load %arg18[%c0_117, %c0_118] : memref<64x128xf32, #tpu.memory_space<vmem>>, vector<64x128xf32>
    %cst_119 = arith.constant dense<0.000000e+00> : vector<8x128xf32>
    %244 = tpu.matmul %242, %243, %cst_119 {dimension_numbers = #tpu.dot_dimension_numbers<[1], [0], [0], [1], [0, 0, 1, 1], [], []>} : vector<8x64xf32>, vector<64x128xf32>, vector<8x128xf32> -> vector<8x128xf32>
    %245 = vector.extract_strided_slice %13 {offsets = [0, 0], sizes = [8, 8], strides = [1, 1]} : vector<8x16xf32> to vector<8x8xf32>
    %246 = vector.extract_strided_slice %13 {offsets = [0, 8], sizes = [8, 8], strides = [1, 1]} : vector<8x16xf32> to vector<8x8xf32>
    %247 = vector.extract_strided_slice %15 {offsets = [0, 0], sizes = [8, 8], strides = [1, 1]} : vector<8x16xf32> to vector<8x8xf32>
    %248 = vector.extract_strided_slice %15 {offsets = [0, 8], sizes = [8, 8], strides = [1, 1]} : vector<8x16xf32> to vector<8x8xf32>
    %249 = vector.extract_strided_slice %244 {offsets = [0, 64], sizes = [8, 16], strides = [1, 1]} : vector<8x128xf32> to vector<8x16xf32>
    %250 = vector.extract_strided_slice %249 {offsets = [0, 0], sizes = [8, 8], strides = [1, 1]} : vector<8x16xf32> to vector<8x8xf32>
    %251 = vector.extract_strided_slice %249 {offsets = [0, 8], sizes = [8, 8], strides = [1, 1]} : vector<8x16xf32> to vector<8x8xf32>
    %252 = arith.mulf %250, %245 : vector<8x8xf32>
    %253 = arith.mulf %251, %247 : vector<8x8xf32>
    %254 = arith.subf %252, %253 : vector<8x8xf32>
    %255 = arith.mulf %251, %246 : vector<8x8xf32>
    %256 = arith.mulf %250, %248 : vector<8x8xf32>
    %257 = arith.addf %255, %256 : vector<8x8xf32>
    %258 = vector.extract_strided_slice %244 {offsets = [0, 96], sizes = [8, 16], strides = [1, 1]} : vector<8x128xf32> to vector<8x16xf32>
    %c0_120 = arith.constant 0 : index
    %c0_121 = arith.constant 0 : index
    %c0_122 = arith.constant 0 : index
    %c0_123 = arith.constant 0 : index
    %259 = vector.load %arg24[%c0_120, %c0_121, %c0_122, %c0_123] : memref<1x2x8x16xf32, #tpu.memory_space<vmem>>, vector<1x1x8x8xf32>
    %260 = vector.shape_cast %259 : vector<1x1x8x8xf32> to vector<8x8xf32>
    %261 = vector.shape_cast %254 : vector<8x8xf32> to vector<1x1x8x8xf32>
    tpu.vector_store %arg24[%c0_120, %c0_121, %c0_122, %c0_123], %261 {strides = array<i32>} : memref<1x2x8x16xf32, #tpu.memory_space<vmem>>, vector<1x1x8x8xf32>,
    %c0_124 = arith.constant 0 : index
    %c0_125 = arith.constant 0 : index
    %c0_126 = arith.constant 0 : index
    %c8 = arith.constant 8 : index
    %262 = vector.load %arg24[%c0_124, %c0_125, %c0_126, %c8] : memref<1x2x8x16xf32, #tpu.memory_space<vmem>>, vector<1x1x8x8xf32>
    %263 = vector.shape_cast %262 : vector<1x1x8x8xf32> to vector<8x8xf32>
    %264 = vector.shape_cast %257 : vector<8x8xf32> to vector<1x1x8x8xf32>
    tpu.vector_store %arg24[%c0_124, %c0_125, %c0_126, %c8], %264 {strides = array<i32>} : memref<1x2x8x16xf32, #tpu.memory_space<vmem>>, vector<1x1x8x8xf32>,
    %c0_127 = arith.constant 0 : index
    %c0_128 = arith.constant 0 : index
    %c0_129 = arith.constant 0 : index
    %c0_130 = arith.constant 0 : index
    %265 = vector.load %arg25[%c0_127, %c0_128, %c0_129, %c0_130] : memref<1x2x8x16xf32, #tpu.memory_space<vmem>>, vector<1x1x8x16xf32>
    %266 = vector.shape_cast %265 : vector<1x1x8x16xf32> to vector<8x16xf32>
    %267 = vector.shape_cast %258 : vector<8x16xf32> to vector<1x1x8x16xf32>
    tpu.vector_store %arg25[%c0_127, %c0_128, %c0_129, %c0_130], %267 {strides = array<i32>} : memref<1x2x8x16xf32, #tpu.memory_space<vmem>>, vector<1x1x8x16xf32>,
    %268 = vector.extract_strided_slice %244 {offsets = [0, 80], sizes = [8, 16], strides = [1, 1]} : vector<8x128xf32> to vector<8x16xf32>
    %269 = vector.extract_strided_slice %268 {offsets = [0, 0], sizes = [8, 8], strides = [1, 1]} : vector<8x16xf32> to vector<8x8xf32>
    %270 = vector.extract_strided_slice %268 {offsets = [0, 8], sizes = [8, 8], strides = [1, 1]} : vector<8x16xf32> to vector<8x8xf32>
    %271 = arith.mulf %269, %245 : vector<8x8xf32>
    %272 = arith.mulf %270, %247 : vector<8x8xf32>
    %273 = arith.subf %271, %272 : vector<8x8xf32>
    %274 = arith.mulf %270, %246 : vector<8x8xf32>
    %275 = arith.mulf %269, %248 : vector<8x8xf32>
    %276 = arith.addf %274, %275 : vector<8x8xf32>
    %277 = vector.extract_strided_slice %244 {offsets = [0, 112], sizes = [8, 16], strides = [1, 1]} : vector<8x128xf32> to vector<8x16xf32>
    %c0_131 = arith.constant 0 : index
    %c1_132 = arith.constant 1 : index
    %c0_133 = arith.constant 0 : index
    %c0_134 = arith.constant 0 : index
    %278 = vector.load %arg24[%c0_131, %c1_132, %c0_133, %c0_134] : memref<1x2x8x16xf32, #tpu.memory_space<vmem>>, vector<1x1x8x8xf32>
    %279 = vector.shape_cast %278 : vector<1x1x8x8xf32> to vector<8x8xf32>
    %280 = vector.shape_cast %273 : vector<8x8xf32> to vector<1x1x8x8xf32>
    tpu.vector_store %arg24[%c0_131, %c1_132, %c0_133, %c0_134], %280 {strides = array<i32>} : memref<1x2x8x16xf32, #tpu.memory_space<vmem>>, vector<1x1x8x8xf32>,
    %c0_135 = arith.constant 0 : index
    %c1_136 = arith.constant 1 : index
    %c0_137 = arith.constant 0 : index
    %c8_138 = arith.constant 8 : index
    %281 = vector.load %arg24[%c0_135, %c1_136, %c0_137, %c8_138] : memref<1x2x8x16xf32, #tpu.memory_space<vmem>>, vector<1x1x8x8xf32>
    %282 = vector.shape_cast %281 : vector<1x1x8x8xf32> to vector<8x8xf32>
    %283 = vector.shape_cast %276 : vector<8x8xf32> to vector<1x1x8x8xf32>
    tpu.vector_store %arg24[%c0_135, %c1_136, %c0_137, %c8_138], %283 {strides = array<i32>} : memref<1x2x8x16xf32, #tpu.memory_space<vmem>>, vector<1x1x8x8xf32>,
    %c0_139 = arith.constant 0 : index
    %c1_140 = arith.constant 1 : index
    %c0_141 = arith.constant 0 : index
    %c0_142 = arith.constant 0 : index
    %284 = vector.load %arg25[%c0_139, %c1_140, %c0_141, %c0_142] : memref<1x2x8x16xf32, #tpu.memory_space<vmem>>, vector<1x1x8x16xf32>
    %285 = vector.shape_cast %284 : vector<1x1x8x16xf32> to vector<8x16xf32>
    %286 = vector.shape_cast %277 : vector<8x16xf32> to vector<1x1x8x16xf32>
    tpu.vector_store %arg25[%c0_139, %c1_140, %c0_141, %c0_142], %286 {strides = array<i32>} : memref<1x2x8x16xf32, #tpu.memory_space<vmem>>, vector<1x1x8x16xf32>,
    %287 = vector.extract_strided_slice %244 {offsets = [0, 0], sizes = [8, 16], strides = [1, 1]} : vector<8x128xf32> to vector<8x16xf32>
    %288 = vector.extract_strided_slice %287 {offsets = [0, 0], sizes = [8, 8], strides = [1, 1]} : vector<8x16xf32> to vector<8x8xf32>
    %289 = vector.extract_strided_slice %287 {offsets = [0, 8], sizes = [8, 8], strides = [1, 1]} : vector<8x16xf32> to vector<8x8xf32>
    %290 = arith.mulf %288, %245 : vector<8x8xf32>
    %291 = arith.mulf %289, %247 : vector<8x8xf32>
    %292 = arith.subf %290, %291 : vector<8x8xf32>
    %293 = arith.mulf %289, %246 : vector<8x8xf32>
    %294 = arith.mulf %288, %248 : vector<8x8xf32>
    %295 = arith.addf %293, %294 : vector<8x8xf32>
    %cst_143 = arith.constant dense<0.000000e+00> : vector<8x8xf32>
    %296 = tpu.matmul %292, %254, %cst_143 {dimension_numbers = #tpu.dot_dimension_numbers<[1], [1], [0], [0], [0, 0, 1, 0], [], []>} : vector<8x8xf32>, vector<8x8xf32>, vector<8x8xf32> -> vector<8x8xf32>
    %cst_144 = arith.constant dense<0.000000e+00> : vector<8x8xf32>
    %297 = tpu.matmul %295, %257, %cst_144 {dimension_numbers = #tpu.dot_dimension_numbers<[1], [1], [0], [0], [0, 0, 1, 0], [], []>} : vector<8x8xf32>, vector<8x8xf32>, vector<8x8xf32> -> vector<8x8xf32>
    %298 = arith.addf %296, %297 : vector<8x8xf32>
    %cst_145 = arith.constant 2.500000e-01 : f32
    %299 = vector.broadcast %cst_145 : f32 to vector<8x8xf32>
    %300 = arith.mulf %298, %299 : vector<8x8xf32>
    %301 = arith.addf %300, %11 : vector<8x8xf32>
    %cst_146 = arith.constant dense<0xFF800000> : vector<8xf32>
    %302 = vector.multi_reduction <maximumf>, %301, %cst_146 [1] : vector<8x8xf32> to vector<8xf32>
    %303 = vector.shape_cast %302 : vector<8xf32> to vector<8x1xf32>
    %304 = vector.broadcast %303 : vector<8x1xf32> to vector<8x8xf32>
    %305 = arith.subf %301, %304 : vector<8x8xf32>
    %306 = math.exp %305 : vector<8x8xf32>
    %cst_147 = arith.constant dense<0.000000e+00> : vector<8xf32>
    %307 = vector.multi_reduction <add>, %306, %cst_147 [1] : vector<8x8xf32> to vector<8xf32>
    %308 = vector.shape_cast %307 : vector<8xf32> to vector<8x1xf32>
    %309 = tpu.reciprocal %308 {approx = true} : vector<8x1xf32> -> vector<8x1xf32>
    %310 = vector.broadcast %309 : vector<8x1xf32> to vector<8x8xf32>
    %311 = arith.mulf %306, %310 : vector<8x8xf32>
    %cst_148 = arith.constant dense<0.000000e+00> : vector<8x16xf32>
    %312 = tpu.matmul %311, %258, %cst_148 {dimension_numbers = #tpu.dot_dimension_numbers<[1], [0], [0], [1], [0, 0, 1, 1], [], []>} : vector<8x8xf32>, vector<8x16xf32>, vector<8x16xf32> -> vector<8x16xf32>
    %c0_149 = arith.constant 0 : index
    %c0_150 = arith.constant 0 : index
    %313 = vector.load %arg28[%c0_149, %c0_150] : memref<8x64xf32, #tpu.memory_space<vmem>>, vector<8x16xf32>
    tpu.vector_store %arg28[%c0_149, %c0_150], %312 {strides = array<i32>} : memref<8x64xf32, #tpu.memory_space<vmem>>, vector<8x16xf32>,
    %314 = vector.extract_strided_slice %244 {offsets = [0, 16], sizes = [8, 16], strides = [1, 1]} : vector<8x128xf32> to vector<8x16xf32>
    %315 = vector.extract_strided_slice %314 {offsets = [0, 0], sizes = [8, 8], strides = [1, 1]} : vector<8x16xf32> to vector<8x8xf32>
    %316 = vector.extract_strided_slice %314 {offsets = [0, 8], sizes = [8, 8], strides = [1, 1]} : vector<8x16xf32> to vector<8x8xf32>
    %317 = arith.mulf %315, %245 : vector<8x8xf32>
    %318 = arith.mulf %316, %247 : vector<8x8xf32>
    %319 = arith.subf %317, %318 : vector<8x8xf32>
    %320 = arith.mulf %316, %246 : vector<8x8xf32>
    %321 = arith.mulf %315, %248 : vector<8x8xf32>
    %322 = arith.addf %320, %321 : vector<8x8xf32>
    %cst_151 = arith.constant dense<0.000000e+00> : vector<8x8xf32>
    %323 = tpu.matmul %319, %254, %cst_151 {dimension_numbers = #tpu.dot_dimension_numbers<[1], [1], [0], [0], [0, 0, 1, 0], [], []>} : vector<8x8xf32>, vector<8x8xf32>, vector<8x8xf32> -> vector<8x8xf32>
    %cst_152 = arith.constant dense<0.000000e+00> : vector<8x8xf32>
    %324 = tpu.matmul %322, %257, %cst_152 {dimension_numbers = #tpu.dot_dimension_numbers<[1], [1], [0], [0], [0, 0, 1, 0], [], []>} : vector<8x8xf32>, vector<8x8xf32>, vector<8x8xf32> -> vector<8x8xf32>
    %325 = arith.addf %323, %324 : vector<8x8xf32>
    %cst_153 = arith.constant 2.500000e-01 : f32
    %326 = vector.broadcast %cst_153 : f32 to vector<8x8xf32>
    %327 = arith.mulf %325, %326 : vector<8x8xf32>
    %328 = arith.addf %327, %11 : vector<8x8xf32>
    %cst_154 = arith.constant dense<0xFF800000> : vector<8xf32>
    %329 = vector.multi_reduction <maximumf>, %328, %cst_154 [1] : vector<8x8xf32> to vector<8xf32>
    %330 = vector.shape_cast %329 : vector<8xf32> to vector<8x1xf32>
    %331 = vector.broadcast %330 : vector<8x1xf32> to vector<8x8xf32>
    %332 = arith.subf %328, %331 : vector<8x8xf32>
    %333 = math.exp %332 : vector<8x8xf32>
    %cst_155 = arith.constant dense<0.000000e+00> : vector<8xf32>
    %334 = vector.multi_reduction <add>, %333, %cst_155 [1] : vector<8x8xf32> to vector<8xf32>
    %335 = vector.shape_cast %334 : vector<8xf32> to vector<8x1xf32>
    %336 = tpu.reciprocal %335 {approx = true} : vector<8x1xf32> -> vector<8x1xf32>
    %337 = vector.broadcast %336 : vector<8x1xf32> to vector<8x8xf32>
    %338 = arith.mulf %333, %337 : vector<8x8xf32>
    %cst_156 = arith.constant dense<0.000000e+00> : vector<8x16xf32>
    %339 = tpu.matmul %338, %258, %cst_156 {dimension_numbers = #tpu.dot_dimension_numbers<[1], [0], [0], [1], [0, 0, 1, 1], [], []>} : vector<8x8xf32>, vector<8x16xf32>, vector<8x16xf32> -> vector<8x16xf32>
    %c0_157 = arith.constant 0 : index
    %c16_158 = arith.constant 16 : index
    %340 = vector.load %arg28[%c0_157, %c16_158] : memref<8x64xf32, #tpu.memory_space<vmem>>, vector<8x16xf32>
    tpu.vector_store %arg28[%c0_157, %c16_158], %339 {strides = array<i32>} : memref<8x64xf32, #tpu.memory_space<vmem>>, vector<8x16xf32>,
    %341 = vector.extract_strided_slice %244 {offsets = [0, 32], sizes = [8, 16], strides = [1, 1]} : vector<8x128xf32> to vector<8x16xf32>
    %342 = vector.extract_strided_slice %341 {offsets = [0, 0], sizes = [8, 8], strides = [1, 1]} : vector<8x16xf32> to vector<8x8xf32>
    %343 = vector.extract_strided_slice %341 {offsets = [0, 8], sizes = [8, 8], strides = [1, 1]} : vector<8x16xf32> to vector<8x8xf32>
    %344 = arith.mulf %342, %245 : vector<8x8xf32>
    %345 = arith.mulf %343, %247 : vector<8x8xf32>
    %346 = arith.subf %344, %345 : vector<8x8xf32>
    %347 = arith.mulf %343, %246 : vector<8x8xf32>
    %348 = arith.mulf %342, %248 : vector<8x8xf32>
    %349 = arith.addf %347, %348 : vector<8x8xf32>
    %cst_159 = arith.constant dense<0.000000e+00> : vector<8x8xf32>
    %350 = tpu.matmul %346, %273, %cst_159 {dimension_numbers = #tpu.dot_dimension_numbers<[1], [1], [0], [0], [0, 0, 1, 0], [], []>} : vector<8x8xf32>, vector<8x8xf32>, vector<8x8xf32> -> vector<8x8xf32>
    %cst_160 = arith.constant dense<0.000000e+00> : vector<8x8xf32>
    %351 = tpu.matmul %349, %276, %cst_160 {dimension_numbers = #tpu.dot_dimension_numbers<[1], [1], [0], [0], [0, 0, 1, 0], [], []>} : vector<8x8xf32>, vector<8x8xf32>, vector<8x8xf32> -> vector<8x8xf32>
    %352 = arith.addf %350, %351 : vector<8x8xf32>
    %cst_161 = arith.constant 2.500000e-01 : f32
    %353 = vector.broadcast %cst_161 : f32 to vector<8x8xf32>
    %354 = arith.mulf %352, %353 : vector<8x8xf32>
    %355 = arith.addf %354, %11 : vector<8x8xf32>
    %cst_162 = arith.constant dense<0xFF800000> : vector<8xf32>
    %356 = vector.multi_reduction <maximumf>, %355, %cst_162 [1] : vector<8x8xf32> to vector<8xf32>
    %357 = vector.shape_cast %356 : vector<8xf32> to vector<8x1xf32>
    %358 = vector.broadcast %357 : vector<8x1xf32> to vector<8x8xf32>
    %359 = arith.subf %355, %358 : vector<8x8xf32>
    %360 = math.exp %359 : vector<8x8xf32>
    %cst_163 = arith.constant dense<0.000000e+00> : vector<8xf32>
    %361 = vector.multi_reduction <add>, %360, %cst_163 [1] : vector<8x8xf32> to vector<8xf32>
    %362 = vector.shape_cast %361 : vector<8xf32> to vector<8x1xf32>
    %363 = tpu.reciprocal %362 {approx = true} : vector<8x1xf32> -> vector<8x1xf32>
    %364 = vector.broadcast %363 : vector<8x1xf32> to vector<8x8xf32>
    %365 = arith.mulf %360, %364 : vector<8x8xf32>
    %cst_164 = arith.constant dense<0.000000e+00> : vector<8x16xf32>
    %366 = tpu.matmul %365, %277, %cst_164 {dimension_numbers = #tpu.dot_dimension_numbers<[1], [0], [0], [1], [0, 0, 1, 1], [], []>} : vector<8x8xf32>, vector<8x16xf32>, vector<8x16xf32> -> vector<8x16xf32>
    %c0_165 = arith.constant 0 : index
    %c32_166 = arith.constant 32 : index
    %367 = vector.load %arg28[%c0_165, %c32_166] : memref<8x64xf32, #tpu.memory_space<vmem>>, vector<8x16xf32>
    tpu.vector_store %arg28[%c0_165, %c32_166], %366 {strides = array<i32>} : memref<8x64xf32, #tpu.memory_space<vmem>>, vector<8x16xf32>,
    %368 = vector.extract_strided_slice %244 {offsets = [0, 48], sizes = [8, 16], strides = [1, 1]} : vector<8x128xf32> to vector<8x16xf32>
    %369 = vector.extract_strided_slice %368 {offsets = [0, 0], sizes = [8, 8], strides = [1, 1]} : vector<8x16xf32> to vector<8x8xf32>
    %370 = vector.extract_strided_slice %368 {offsets = [0, 8], sizes = [8, 8], strides = [1, 1]} : vector<8x16xf32> to vector<8x8xf32>
    %371 = arith.mulf %369, %245 : vector<8x8xf32>
    %372 = arith.mulf %370, %247 : vector<8x8xf32>
    %373 = arith.subf %371, %372 : vector<8x8xf32>
    %374 = arith.mulf %370, %246 : vector<8x8xf32>
    %375 = arith.mulf %369, %248 : vector<8x8xf32>
    %376 = arith.addf %374, %375 : vector<8x8xf32>
    %cst_167 = arith.constant dense<0.000000e+00> : vector<8x8xf32>
    %377 = tpu.matmul %373, %273, %cst_167 {dimension_numbers = #tpu.dot_dimension_numbers<[1], [1], [0], [0], [0, 0, 1, 0], [], []>} : vector<8x8xf32>, vector<8x8xf32>, vector<8x8xf32> -> vector<8x8xf32>
    %cst_168 = arith.constant dense<0.000000e+00> : vector<8x8xf32>
    %378 = tpu.matmul %376, %276, %cst_168 {dimension_numbers = #tpu.dot_dimension_numbers<[1], [1], [0], [0], [0, 0, 1, 0], [], []>} : vector<8x8xf32>, vector<8x8xf32>, vector<8x8xf32> -> vector<8x8xf32>
    %379 = arith.addf %377, %378 : vector<8x8xf32>
    %cst_169 = arith.constant 2.500000e-01 : f32
    %380 = vector.broadcast %cst_169 : f32 to vector<8x8xf32>
    %381 = arith.mulf %379, %380 : vector<8x8xf32>
    %382 = arith.addf %381, %11 : vector<8x8xf32>
    %cst_170 = arith.constant dense<0xFF800000> : vector<8xf32>
    %383 = vector.multi_reduction <maximumf>, %382, %cst_170 [1] : vector<8x8xf32> to vector<8xf32>
    %384 = vector.shape_cast %383 : vector<8xf32> to vector<8x1xf32>
    %385 = vector.broadcast %384 : vector<8x1xf32> to vector<8x8xf32>
    %386 = arith.subf %382, %385 : vector<8x8xf32>
    %387 = math.exp %386 : vector<8x8xf32>
    %cst_171 = arith.constant dense<0.000000e+00> : vector<8xf32>
    %388 = vector.multi_reduction <add>, %387, %cst_171 [1] : vector<8x8xf32> to vector<8xf32>
    %389 = vector.shape_cast %388 : vector<8xf32> to vector<8x1xf32>
    %390 = tpu.reciprocal %389 {approx = true} : vector<8x1xf32> -> vector<8x1xf32>
    %391 = vector.broadcast %390 : vector<8x1xf32> to vector<8x8xf32>
    %392 = arith.mulf %387, %391 : vector<8x8xf32>
    %cst_172 = arith.constant dense<0.000000e+00> : vector<8x16xf32>
    %393 = tpu.matmul %392, %277, %cst_172 {dimension_numbers = #tpu.dot_dimension_numbers<[1], [0], [0], [1], [0, 0, 1, 1], [], []>} : vector<8x8xf32>, vector<8x16xf32>, vector<8x16xf32> -> vector<8x16xf32>
    %c0_173 = arith.constant 0 : index
    %c48_174 = arith.constant 48 : index
    %394 = vector.load %arg28[%c0_173, %c48_174] : memref<8x64xf32, #tpu.memory_space<vmem>>, vector<8x16xf32>
    tpu.vector_store %arg28[%c0_173, %c48_174], %393 {strides = array<i32>} : memref<8x64xf32, #tpu.memory_space<vmem>>, vector<8x16xf32>,
    %c0_175 = arith.constant 0 : index
    %c0_176 = arith.constant 0 : index
    %395 = vector.load %arg28[%c0_175, %c0_176] : memref<8x64xf32, #tpu.memory_space<vmem>>, vector<8x64xf32>
    %c0_177 = arith.constant 0 : index
    %c0_178 = arith.constant 0 : index
    %396 = vector.load %arg19[%c0_177, %c0_178] : memref<64x64xf32, #tpu.memory_space<vmem>>, vector<64x64xf32>
    %cst_179 = arith.constant dense<0.000000e+00> : vector<8x64xf32>
    %397 = tpu.matmul %395, %396, %cst_179 {dimension_numbers = #tpu.dot_dimension_numbers<[1], [0], [0], [1], [0, 0, 1, 1], [], []>} : vector<8x64xf32>, vector<64x64xf32>, vector<8x64xf32> -> vector<8x64xf32>
    %398 = arith.addf %229, %397 : vector<8x64xf32>
    %c0_180 = arith.constant 0 : index
    %c0_181 = arith.constant 0 : index
    %399 = vector.load %arg20[%c0_180, %c0_181] : memref<1x64xf32, #tpu.memory_space<vmem>>, vector<1x64xf32>
    %c0_182 = arith.constant 0 : index
    %c0_183 = arith.constant 0 : index
    %400 = vector.load %arg21[%c0_182, %c0_183] : memref<64x256xf32, #tpu.memory_space<vmem>>, vector<64x256xf32>
    %c0_184 = arith.constant 0 : index
    %c0_185 = arith.constant 0 : index
    %401 = vector.load %arg22[%c0_184, %c0_185] : memref<128x64xf32, #tpu.memory_space<vmem>>, vector<128x64xf32>
    %402 = arith.mulf %398, %398 : vector<8x64xf32>
    %cst_186 = arith.constant dense<0.000000e+00> : vector<8xf32>
    %403 = vector.multi_reduction <add>, %402, %cst_186 [1] : vector<8x64xf32> to vector<8xf32>
    %404 = vector.shape_cast %403 : vector<8xf32> to vector<8x1xf32>
    %cst_187 = arith.constant 6.400000e+01 : f32
    %405 = vector.broadcast %cst_187 : f32 to vector<8x1xf32>
    %406 = arith.divf %404, %405 : vector<8x1xf32>
    %cst_188 = arith.constant 9.99999974E-6 : f32
    %407 = vector.broadcast %cst_188 : f32 to vector<8x1xf32>
    %408 = arith.addf %406, %407 : vector<8x1xf32>
    %409 = math.rsqrt %408 : vector<8x1xf32>
    %410 = vector.broadcast %409 : vector<8x1xf32> to vector<8x64xf32>
    %411 = arith.mulf %398, %410 : vector<8x64xf32>
    %412 = vector.broadcast %399 : vector<1x64xf32> to vector<8x64xf32>
    %413 = arith.mulf %411, %412 : vector<8x64xf32>
    %cst_189 = arith.constant dense<0.000000e+00> : vector<8x256xf32>
    %414 = tpu.matmul %413, %400, %cst_189 {dimension_numbers = #tpu.dot_dimension_numbers<[1], [0], [0], [1], [0, 0, 1, 1], [], []>} : vector<8x64xf32>, vector<64x256xf32>, vector<8x256xf32> -> vector<8x256xf32>
    %415 = vector.extract_strided_slice %414 {offsets = [0, 0], sizes = [8, 128], strides = [1, 1]} : vector<8x256xf32> to vector<8x128xf32>
    %416 = vector.extract_strided_slice %414 {offsets = [0, 128], sizes = [8, 128], strides = [1, 1]} : vector<8x256xf32> to vector<8x128xf32>
    %417 = arith.negf %415 : vector<8x128xf32>
    %418 = math.exp %417 : vector<8x128xf32>
    %cst_190 = arith.constant 1.000000e+00 : f32
    %419 = vector.broadcast %cst_190 : f32 to vector<8x128xf32>
    %420 = arith.addf %419, %418 : vector<8x128xf32>
    %421 = arith.divf %419, %420 : vector<8x128xf32>
    %422 = arith.mulf %415, %421 : vector<8x128xf32>
    %423 = arith.mulf %422, %416 : vector<8x128xf32>
    %cst_191 = arith.constant dense<0.000000e+00> : vector<8x64xf32>
    %424 = tpu.matmul %423, %401, %cst_191 {dimension_numbers = #tpu.dot_dimension_numbers<[1], [0], [0], [1], [0, 0, 1, 1], [], []>} : vector<8x128xf32>, vector<128x64xf32>, vector<8x64xf32> -> vector<8x64xf32>
    %425 = arith.addf %398, %424 : vector<8x64xf32>
    %c0_192 = arith.constant 0 : index
    %c0_193 = arith.constant 0 : index
    %c0_194 = arith.constant 0 : index
    %426 = vector.load %arg23[%c0_192, %c0_193, %c0_194] : memref<1x8x64xf32, #tpu.memory_space<vmem>>, vector<1x8x64xf32>
    %427 = vector.shape_cast %426 : vector<1x8x64xf32> to vector<8x64xf32>
    %428 = vector.shape_cast %425 : vector<8x64xf32> to vector<1x8x64xf32>
    tpu.vector_store %arg23[%c0_192, %c0_193, %c0_194], %428 {strides = array<i32>} : memref<1x8x64xf32, #tpu.memory_space<vmem>>, vector<1x8x64xf32>,
    return
  }
  func.func @transform_0(%arg0: i32) -> (i32, i32, i32) {
    %c0_i32 = arith.constant 0 : i32
    %c0_i32_0 = arith.constant 0 : i32
    %c0_i32_1 = arith.constant 0 : i32
    return %arg0, %c0_i32, %c0_i32_0 : i32, i32, i32
  }
  func.func @transform_1(%arg0: i32) -> (i32, i32, i32) {
    %c0_i32 = arith.constant 0 : i32
    %c0_i32_0 = arith.constant 0 : i32
    %c0_i32_1 = arith.constant 0 : i32
    return %arg0, %c0_i32, %c0_i32_0 : i32, i32, i32
  }
  func.func @transform_2(%arg0: i32) -> (i32, i32, i32) {
    %c0_i32 = arith.constant 0 : i32
    %c0_i32_0 = arith.constant 0 : i32
    %c0_i32_1 = arith.constant 0 : i32
    return %arg0, %c0_i32, %c0_i32_0 : i32, i32, i32
  }
  func.func @transform_3(%arg0: i32) -> (i32, i32, i32) {
    %c0_i32 = arith.constant 0 : i32
    %c0_i32_0 = arith.constant 0 : i32
    %c0_i32_1 = arith.constant 0 : i32
    return %arg0, %c0_i32, %c0_i32_0 : i32, i32, i32
  }
  func.func @transform_4(%arg0: i32) -> (i32, i32, i32) {
    %c0_i32 = arith.constant 0 : i32
    %c0_i32_0 = arith.constant 0 : i32
    %c0_i32_1 = arith.constant 0 : i32
    return %arg0, %c0_i32, %c0_i32_0 : i32, i32, i32
  }
  func.func @transform_5(%arg0: i32) -> (i32, i32, i32) {
    %c0_i32 = arith.constant 0 : i32
    %c0_i32_0 = arith.constant 0 : i32
    %c0_i32_1 = arith.constant 0 : i32
    return %arg0, %c0_i32, %c0_i32_0 : i32, i32, i32
  }
  func.func @transform_6(%arg0: i32) -> (i32, i32, i32) {
    %c0_i32 = arith.constant 0 : i32
    %c0_i32_0 = arith.constant 0 : i32
    %c0_i32_1 = arith.constant 0 : i32
    return %arg0, %c0_i32, %c0_i32_0 : i32, i32, i32
  }
  func.func @transform_7(%arg0: i32) -> (i32, i32, i32) {
    %c0_i32 = arith.constant 0 : i32
    %c0_i32_0 = arith.constant 0 : i32
    %c0_i32_1 = arith.constant 0 : i32
    return %arg0, %c0_i32, %c0_i32_0 : i32, i32, i32
  }
  func.func @transform_8(%arg0: i32) -> (i32, i32) {
    %c0_i32 = arith.constant 0 : i32
    %c0_i32_0 = arith.constant 0 : i32
    %c0_i32_1 = arith.constant 0 : i32
    return %c0_i32, %c0_i32_0 : i32, i32
  }
  func.func @transform_9(%arg0: i32) -> (i32, i32) {
    %c0_i32 = arith.constant 0 : i32
    %c0_i32_0 = arith.constant 0 : i32
    %c0_i32_1 = arith.constant 0 : i32
    return %c0_i32, %c0_i32_0 : i32, i32
  }
  func.func @transform_10(%arg0: i32) -> (i32, i32) {
    %c0_i32 = arith.constant 0 : i32
    %c0_i32_0 = arith.constant 0 : i32
    %c0_i32_1 = arith.constant 0 : i32
    return %c0_i32, %c0_i32_0 : i32, i32
  }
  func.func @transform_11(%arg0: i32) -> (i32, i32) {
    %c0_i32 = arith.constant 0 : i32
    %c0_i32_0 = arith.constant 0 : i32
    %c0_i32_1 = arith.constant 0 : i32
    return %c0_i32, %c0_i32_0 : i32, i32
  }
  func.func @transform_12(%arg0: i32) -> (i32, i32) {
    %c0_i32 = arith.constant 0 : i32
    %c0_i32_0 = arith.constant 0 : i32
    %c0_i32_1 = arith.constant 0 : i32
    return %c0_i32, %c0_i32_0 : i32, i32
  }
  func.func @transform_13(%arg0: i32) -> (i32, i32) {
    %c0_i32 = arith.constant 0 : i32
    %c0_i32_0 = arith.constant 0 : i32
    %c0_i32_1 = arith.constant 0 : i32
    return %c0_i32, %c0_i32_0 : i32, i32
  }
  func.func @transform_14(%arg0: i32) -> (i32, i32) {
    %c0_i32 = arith.constant 0 : i32
    %c0_i32_0 = arith.constant 0 : i32
    %c0_i32_1 = arith.constant 0 : i32
    return %c0_i32, %c0_i32_0 : i32, i32
  }
  func.func @transform_15(%arg0: i32) -> (i32, i32) {
    %c0_i32 = arith.constant 0 : i32
    %c0_i32_0 = arith.constant 0 : i32
    %c0_i32_1 = arith.constant 0 : i32
    return %c0_i32, %c0_i32_0 : i32, i32
  }
  func.func @transform_16(%arg0: i32) -> (i32, i32) {
    %c0_i32 = arith.constant 0 : i32
    %c0_i32_0 = arith.constant 0 : i32
    %c0_i32_1 = arith.constant 0 : i32
    return %c0_i32, %c0_i32_0 : i32, i32
  }
  func.func @transform_17(%arg0: i32) -> (i32, i32) {
    %c0_i32 = arith.constant 0 : i32
    %c0_i32_0 = arith.constant 0 : i32
    %c0_i32_1 = arith.constant 0 : i32
    return %c0_i32, %c0_i32_0 : i32, i32
  }
  func.func @transform_18(%arg0: i32) -> (i32, i32) {
    %c0_i32 = arith.constant 0 : i32
    %c0_i32_0 = arith.constant 0 : i32
    %c0_i32_1 = arith.constant 0 : i32
    return %c0_i32, %c0_i32_0 : i32, i32
  }
  func.func @transform_19(%arg0: i32) -> (i32, i32) {
    %c0_i32 = arith.constant 0 : i32
    %c0_i32_0 = arith.constant 0 : i32
    %c0_i32_1 = arith.constant 0 : i32
    return %c0_i32, %c0_i32_0 : i32, i32
  }
  func.func @transform_20(%arg0: i32) -> (i32, i32) {
    %c0_i32 = arith.constant 0 : i32
    %c0_i32_0 = arith.constant 0 : i32
    %c0_i32_1 = arith.constant 0 : i32
    return %c0_i32, %c0_i32_0 : i32, i32
  }
  func.func @transform_21(%arg0: i32) -> (i32, i32) {
    %c0_i32 = arith.constant 0 : i32
    %c0_i32_0 = arith.constant 0 : i32
    %c0_i32_1 = arith.constant 0 : i32
    return %c0_i32, %c0_i32_0 : i32, i32
  }
  func.func @transform_22(%arg0: i32) -> (i32, i32, i32) {
    %c0_i32 = arith.constant 0 : i32
    %c0_i32_0 = arith.constant 0 : i32
    %c0_i32_1 = arith.constant 0 : i32
    return %arg0, %c0_i32, %c0_i32_0 : i32, i32, i32
  }
  func.func @transform_23(%arg0: i32) -> (i32, i32, i32, i32) {
    %c0_i32 = arith.constant 0 : i32
    %c0_i32_0 = arith.constant 0 : i32
    %c0_i32_1 = arith.constant 0 : i32
    %c0_i32_2 = arith.constant 0 : i32
    return %arg0, %c0_i32, %c0_i32_0, %c0_i32_1 : i32, i32, i32, i32
  }
  func.func @transform_24(%arg0: i32) -> (i32, i32, i32, i32) {
    %c0_i32 = arith.constant 0 : i32
    %c0_i32_0 = arith.constant 0 : i32
    %c0_i32_1 = arith.constant 0 : i32
    %c0_i32_2 = arith.constant 0 : i32
    return %arg0, %c0_i32, %c0_i32_0, %c0_i32_1 : i32, i32, i32, i32
  }
  func.func @transform_25(%arg0: i32) -> (i32, i32, i32, i32) {
    %c0_i32 = arith.constant 0 : i32
    %c0_i32_0 = arith.constant 0 : i32
    %c0_i32_1 = arith.constant 0 : i32
    %c0_i32_2 = arith.constant 0 : i32
    return %arg0, %c0_i32, %c0_i32_0, %c0_i32_1 : i32, i32, i32, i32
  }
  func.func @transform_26(%arg0: i32) -> (i32, i32, i32, i32) {
    %c0_i32 = arith.constant 0 : i32
    %c0_i32_0 = arith.constant 0 : i32
    %c0_i32_1 = arith.constant 0 : i32
    %c0_i32_2 = arith.constant 0 : i32
    return %arg0, %c0_i32, %c0_i32_0, %c0_i32_1 : i32, i32, i32, i32
  }
}

</mosaic_0001>

<llo_original>
// kernel: mllama_decoder_layer.1
$region0: #{mllama_decoder_layer.1}
  #allocation0 [shape = 'u32[]', space=smem, size = 0x4, offset = 0x4, fixed_abs, tag = 'smem constant byte address 0x4 - core index']
  #allocation1 [shape = 'u32[72,128]{1,0:T(1,128)}', space=vmem, size = 0x9000, scoped, tag = 'internal scratch']
  #allocation2 [shape = 'f32[8,64]{1,0:T(8,128)}', space=vmem, size = 0x1000, scoped, tag = 'scratch operand']
  %s0 = inlined_call_operand.vmem [shape: f32[2,8,64], index: 0, kind: input, shape index: {}]
  %s1 = inlined_call_operand.hbm [shape: f32[2,8,64], index: 1, kind: input, shape index: {}]
  %s2 = inlined_call_operand.vmem [shape: f32[2,8,8], index: 2, kind: input, shape index: {}]
  %s3 = inlined_call_operand.vmem [shape: f32[2,8,1], index: 3, kind: input, shape index: {}]
  %s4 = inlined_call_operand.vmem [shape: f32[2,1,1], index: 4, kind: input, shape index: {}]
  %s5 = inlined_call_operand.vmem [shape: f32[2,8,8], index: 5, kind: input, shape index: {}]
  %s6 = inlined_call_operand.vmem [shape: f32[2,8,16], index: 6, kind: input, shape index: {}]
  %s7 = inlined_call_operand.vmem [shape: f32[2,8,16], index: 7, kind: input, shape index: {}]
  %s8 = inlined_call_operand.vmem [shape: f32[1,64], index: 8, kind: input, shape index: {}]
  %s9 = inlined_call_operand.vmem [shape: f32[64,64], index: 9, kind: input, shape index: {}]
  %s10 = inlined_call_operand.vmem [shape: f32[64,64], index: 10, kind: input, shape index: {}]
  %s11 = inlined_call_operand.vmem [shape: f32[2,16], index: 11, kind: input, shape index: {}]
  %s12 = inlined_call_operand.vmem [shape: f32[64,64], index: 12, kind: input, shape index: {}]
  %s13 = inlined_call_operand.vmem [shape: f32[1,64], index: 13, kind: input, shape index: {}]
  %s14 = inlined_call_operand.vmem [shape: f32[64,256], index: 14, kind: input, shape index: {}]
  %s15 = inlined_call_operand.vmem [shape: f32[128,64], index: 15, kind: input, shape index: {}]
  %s16 = inlined_call_operand.vmem [shape: f32[1,64], index: 16, kind: input, shape index: {}]
  %s17 = inlined_call_operand.hbm [shape: f32[64,128], index: 17, kind: input, shape index: {}]
  %s18 = inlined_call_operand.hbm [shape: f32[64,64], index: 18, kind: input, shape index: {}]
  %s19 = inlined_call_operand.vmem [shape: f32[1,64], index: 19, kind: input, shape index: {}]
  %s20 = inlined_call_operand.vmem [shape: f32[64,256], index: 20, kind: input, shape index: {}]
  %s21 = inlined_call_operand.vmem [shape: f32[128,64], index: 21, kind: input, shape index: {}]
  %s22 = inlined_call_operand.hbm [shape: f32[2,8,64], index: 22, kind: output, shape index: {0}]
  %s23 = inlined_call_operand.hbm [shape: f32[2,2,8,16], index: 23, kind: output, shape index: {1}]
  %s24 = inlined_call_operand.hbm [shape: f32[2,2,8,16], index: 24, kind: output, shape index: {2}]
  %s25 = inlined_call_operand.hbm [shape: f32[2,2,8,16], index: 25, kind: output, shape index: {3}]
  %s26 = inlined_call_operand.hbm [shape: f32[2,2,8,16], index: 26, kind: output, shape index: {4}]
  %27 = xla_tuple %s22, %s23, %s24, %s25, %s26
  %s28 = sld [smem:[#allocation0]]
  $region165: #{mllama_decoder_layer.1} parent=0
    _
  %s30 = ssub.s32 1, %s28
  %s31 = scalar_select 0, %s30, %s28
  $region1: #{mllama_decoder_layer.1} parent=0
    #allocation3 [shape = 'u8[8192]{0}', space=vmem, size = 0x2000, scoped, tag = 'input window, operand 1']
    #allocation4 [shape = 's32[2]{0}', space=sflag, size = 0x8, scoped, tag = 'scoped memory for mllama_decoder_layer.1']
    #allocation5 [shape = 's32[2]{0}', space=sflag, size = 0x8, scoped, tag = 'scoped memory for mllama_decoder_layer.1']
    #allocation6 [shape = 'u8[32768]{0}', space=vmem, size = 0x8000, scoped, tag = 'input window, operand 17, single buffered']
    #allocation7 [shape = 's32[1]{0}', space=sflag, size = 0x4, scoped, tag = 'scoped memory for mllama_decoder_layer.1']
    #allocation8 [shape = 'u8[32768]{0}', space=vmem, size = 0x8000, scoped, tag = 'input window, operand 18, single buffered']
    #allocation9 [shape = 'u8[8192]{0}', space=vmem, size = 0x2000, scoped, tag = 'output window, operand 0']
    #allocation10 [shape = 'u8[16384]{0}', space=vmem, size = 0x4000, scoped, tag = 'output window, operand 1']
    #allocation11 [shape = 's32[2]{0}', space=sflag, size = 0x8, scoped, tag = 'scoped memory for mllama_decoder_layer.1']
    #allocation12 [shape = 'u8[16384]{0}', space=vmem, size = 0x4000, scoped, tag = 'output window, operand 2']
    #allocation13 [shape = 'u8[16384]{0}', space=vmem, size = 0x4000, scoped, tag = 'output window, operand 3']
    #allocation14 [shape = 's32[2]{0}', space=sflag, size = 0x8, scoped, tag = 'scoped memory for mllama_decoder_layer.1']
    #allocation15 [shape = 'u8[16384]{0}', space=vmem, size = 0x4000, scoped, tag = 'output window, operand 4']
    %32 = vsyncpa [#allocation4], 0
    %s33 = scalar_lea.sflag [#allocation4], 1
    %34 = vsyncpa %s33, 0
    %35 = vsyncpa [#allocation7], 0
    %36 = vsyncpa [#allocation5], 0
    %s37 = scalar_lea.sflag [#allocation5], 1
    %38 = vsyncpa %s37, 0
    %39 = vsyncpa [#allocation11], 0
    %s40 = scalar_lea.sflag [#allocation11], 1
    %41 = vsyncpa %s40, 0
    %42 = vsyncpa [#allocation14], 0
    %s43 = scalar_lea.sflag [#allocation14], 1
    %44 = vsyncpa %s43, 0
    loop: start=0, step=1, limit=4
    $region2: #{mllama_decoder_layer.1} parent=1 // loop_pre_header
      _
    $region3: #{mllama_decoder_layer.1} parent=1 // loop_header
      %s46 = sphi 0, %s50
      %p47 = scmp.ge.s32.totalorder %s46, 4
      %s56 = sphi 0, %s58
      %s59 = sphi 0, %s56
      %s60 = sphi 0, %s59
      %s76 = sphi 0, %s60
      %s82 = sphi 0, %s84
      %s85 = sphi 0, %s82
      %s86 = sphi 0, %s85
      %s102 = sphi 0, %s86
      %s108 = sphi 0, %s110
      %s111 = sphi 0, %s108
      %s112 = sphi 0, %s111
      %s128 = sphi 0, %s112
      %s134 = sphi 0, %s136
      %s137 = sphi 0, %s134
      %s138 = sphi 0, %s137
      %s154 = sphi 0, %s138
      %s160 = sphi 0, %s162
      %s163 = sphi 0, %s160
      %s164 = sphi 0, %s163
      %s180 = sphi 0, %s164
      %s186 = sphi 0, %s188
      %s189 = sphi 0, %s186
      %s190 = sphi 0, %s189
      %s206 = sphi 0, %s190
      %s212 = sphi 0, %s214
      %s215 = sphi 0, %s212
      %s216 = sphi 0, %s215
      %s232 = sphi 0, %s216
      %s238 = sphi 0, %s240
      %s241 = sphi 0, %s238
      %s242 = sphi 0, %s241
      %s258 = sphi 0, %s242
      %s262 = sphi 0, %s262
      %s264 = sphi 0, %s262
      %s265 = sphi 0, %s264
      %s279 = sphi 0, %s265
      %s283 = sphi 0, %s283
      %s285 = sphi 0, %s283
      %s286 = sphi 0, %s285
      %s300 = sphi 0, %s286
      %s304 = sphi 0, %s304
      %s306 = sphi 0, %s304
      %s307 = sphi 0, %s306
      %s321 = sphi 0, %s307
      %s325 = sphi 0, %s325
      %s327 = sphi 0, %s325
      %s328 = sphi 0, %s327
      %s342 = sphi 0, %s328
      %s346 = sphi 0, %s346
      %s348 = sphi 0, %s346
      %s349 = sphi 0, %s348
      %s363 = sphi 0, %s349
      %s367 = sphi 0, %s367
      %s369 = sphi 0, %s367
      %s370 = sphi 0, %s369
      %s384 = sphi 0, %s370
      %s388 = sphi 0, %s388
      %s390 = sphi 0, %s388
      %s391 = sphi 0, %s390
      %s405 = sphi 0, %s391
      %s409 = sphi 0, %s409
      %s411 = sphi 0, %s409
      %s412 = sphi 0, %s411
      %s426 = sphi 0, %s412
      %s430 = sphi 0, %s430
      %s432 = sphi 0, %s430
      %s433 = sphi 0, %s432
      %s447 = sphi 0, %s433
      %s451 = sphi 0, %s451
      %s453 = sphi 0, %s451
      %s454 = sphi 0, %s453
      %s468 = sphi 0, %s454
      %s472 = sphi 0, %s472
      %s474 = sphi 0, %s472
      %s475 = sphi 0, %s474
      %s489 = sphi 0, %s475
      %s493 = sphi 0, %s493
      %s495 = sphi 0, %s493
      %s496 = sphi 0, %s495
      %s510 = sphi 0, %s496
      %s514 = sphi 0, %s514
      %s516 = sphi 0, %s514
      %s517 = sphi 0, %s516
      %s531 = sphi 0, %s517
      %s535 = sphi 0, %s535
      %s537 = sphi 0, %s535
      %s538 = sphi 0, %s537
      %s552 = sphi 0, %s538
      %s558 = sphi 0, %s560
      %s561 = sphi 0, %s558
      %s562 = sphi 0, %s561
      %s578 = sphi 0, %s562
      %s584 = sphi 0, %s586
      %s587 = sphi 0, %s584
      %s588 = sphi 0, %s587
      %s604 = sphi 0, %s588
      %s610 = sphi 0, %s612
      %s613 = sphi 0, %s610
      %s614 = sphi 0, %s613
      %s630 = sphi 0, %s614
      %s636 = sphi 0, %s638
      %s639 = sphi 0, %s636
      %s640 = sphi 0, %s639
      %s656 = sphi 0, %s640
      %s662 = sphi 0, %s664
      %s665 = sphi 0, %s662
      %s666 = sphi 0, %s665
      %s682 = sphi 0, %s666
    $region4: #{mllama_decoder_layer.1} parent=1 // loop_header_branch
      %49 = sbr.rel (%p47) target = $region8
    $region5: #{mllama_decoder_layer.1} parent=1 // loop_body
      %s51 = ssub.s32 %s46, 1
      %s52 = ssub.s32 %s46, 2
      %s53 = sadd.s32 %s46, 1
      %s54 = ssub.s32 %s46, %s53
      %p55 = scmp.eq.s32.totalorder %s54, 0
      %s57 = sadd.s32 %s56, 1
      %s58 = scalar_select %p55, %s56, %s57
      %p61 = pneg %p55
      %p62 = scmp.eq.s32.totalorder %s46, 1
      %p63 = por %p61, %p62
      %p64 = scmp.ne.s32.totalorder %s56, %s59
      %p65 = scmp.eq.s32.totalorder %s46, 0
      %p66 = por %p64, %p65
      %p67 = scmp.ne.s32.totalorder %s56, %s59
      %p68 = scmp.eq.s32.totalorder %s51, 1
      %p69 = por %p67, %p68
      %p70 = scmp.ne.s32.totalorder %s59, %s60
      %p71 = scmp.eq.s32.totalorder %s51, 0
      %p72 = por %p70, %p71
      %p73 = scmp.ne.s32.totalorder %s59, %s60
      %p74 = scmp.eq.s32.totalorder %s52, 1
      %p75 = por %p73, %p74
      %p77 = scmp.ne.s32.totalorder %s60, %s76
      %p78 = scmp.eq.s32.totalorder %s52, 0
      %p79 = por %p77, %p78
      %s80 = ssub.s32 %s46, %s53
      %p81 = scmp.eq.s32.totalorder %s80, 0
      %s83 = sadd.s32 %s82, 1
      %s84 = scalar_select %p81, %s82, %s83
      %p87 = pneg %p81
      %p88 = scmp.eq.s32.totalorder %s46, 1
      %p89 = por %p87, %p88
      %p90 = scmp.ne.s32.totalorder %s82, %s85
      %p91 = scmp.eq.s32.totalorder %s46, 0
      %p92 = por %p90, %p91
      %p93 = scmp.ne.s32.totalorder %s82, %s85
      %p94 = scmp.eq.s32.totalorder %s51, 1
      %p95 = por %p93, %p94
      %p96 = scmp.ne.s32.totalorder %s85, %s86
      %p97 = scmp.eq.s32.totalorder %s51, 0
      %p98 = por %p96, %p97
      %p99 = scmp.ne.s32.totalorder %s85, %s86
      %p100 = scmp.eq.s32.totalorder %s52, 1
      %p101 = por %p99, %p100
      %p103 = scmp.ne.s32.totalorder %s86, %s102
      %p104 = scmp.eq.s32.totalorder %s52, 0
      %p105 = por %p103, %p104
      %s106 = ssub.s32 %s46, %s53
      %p107 = scmp.eq.s32.totalorder %s106, 0
      %s109 = sadd.s32 %s108, 1
      %s110 = scalar_select %p107, %s108, %s109
      %p113 = pneg %p107
      %p114 = scmp.eq.s32.totalorder %s46, 1
      %p115 = por %p113, %p114
      %p116 = scmp.ne.s32.totalorder %s108, %s111
      %p117 = scmp.eq.s32.totalorder %s46, 0
      %p118 = por %p116, %p117
      %p119 = scmp.ne.s32.totalorder %s108, %s111
      %p120 = scmp.eq.s32.totalorder %s51, 1
      %p121 = por %p119, %p120
      %p122 = scmp.ne.s32.totalorder %s111, %s112
      %p123 = scmp.eq.s32.totalorder %s51, 0
      %p124 = por %p122, %p123
      %p125 = scmp.ne.s32.totalorder %s111, %s112
      %p126 = scmp.eq.s32.totalorder %s52, 1
      %p127 = por %p125, %p126
      %p129 = scmp.ne.s32.totalorder %s112, %s128
      %p130 = scmp.eq.s32.totalorder %s52, 0
      %p131 = por %p129, %p130
      %s132 = ssub.s32 %s46, %s53
      %p133 = scmp.eq.s32.totalorder %s132, 0
      %s135 = sadd.s32 %s134, 1
      %s136 = scalar_select %p133, %s134, %s135
      %p139 = pneg %p133
      %p140 = scmp.eq.s32.totalorder %s46, 1
      %p141 = por %p139, %p140
      %p142 = scmp.ne.s32.totalorder %s134, %s137
      %p143 = scmp.eq.s32.totalorder %s46, 0
      %p144 = por %p142, %p143
      %p145 = scmp.ne.s32.totalorder %s134, %s137
      %p146 = scmp.eq.s32.totalorder %s51, 1
      %p147 = por %p145, %p146
      %p148 = scmp.ne.s32.totalorder %s137, %s138
      %p149 = scmp.eq.s32.totalorder %s51, 0
      %p150 = por %p148, %p149
      %p151 = scmp.ne.s32.totalorder %s137, %s138
      %p152 = scmp.eq.s32.totalorder %s52, 1
      %p153 = por %p151, %p152
      %p155 = scmp.ne.s32.totalorder %s138, %s154
      %p156 = scmp.eq.s32.totalorder %s52, 0
      %p157 = por %p155, %p156
      %s158 = ssub.s32 %s46, %s53
      %p159 = scmp.eq.s32.totalorder %s158, 0
      %s161 = sadd.s32 %s160, 1
      %s162 = scalar_select %p159, %s160, %s161
      %p165 = pneg %p159
      %p166 = scmp.eq.s32.totalorder %s46, 1
      %p167 = por %p165, %p166
      %p168 = scmp.ne.s32.totalorder %s160, %s163
      %p169 = scmp.eq.s32.totalorder %s46, 0
      %p170 = por %p168, %p169
      %p171 = scmp.ne.s32.totalorder %s160, %s163
      %p172 = scmp.eq.s32.totalorder %s51, 1
      %p173 = por %p171, %p172
      %p174 = scmp.ne.s32.totalorder %s163, %s164
      %p175 = scmp.eq.s32.totalorder %s51, 0
      %p176 = por %p174, %p175
      %p177 = scmp.ne.s32.totalorder %s163, %s164
      %p178 = scmp.eq.s32.totalorder %s52, 1
      %p179 = por %p177, %p178
      %p181 = scmp.ne.s32.totalorder %s164, %s180
      %p182 = scmp.eq.s32.totalorder %s52, 0
      %p183 = por %p181, %p182
      %s184 = ssub.s32 %s46, %s53
      %p185 = scmp.eq.s32.totalorder %s184, 0
      %s187 = sadd.s32 %s186, 1
      %s188 = scalar_select %p185, %s186, %s187
      %p191 = pneg %p185
      %p192 = scmp.eq.s32.totalorder %s46, 1
      %p193 = por %p191, %p192
      %p194 = scmp.ne.s32.totalorder %s186, %s189
      %p195 = scmp.eq.s32.totalorder %s46, 0
      %p196 = por %p194, %p195
      %p197 = scmp.ne.s32.totalorder %s186, %s189
      %p198 = scmp.eq.s32.totalorder %s51, 1
      %p199 = por %p197, %p198
      %p200 = scmp.ne.s32.totalorder %s189, %s190
      %p201 = scmp.eq.s32.totalorder %s51, 0
      %p202 = por %p200, %p201
      %p203 = scmp.ne.s32.totalorder %s189, %s190
      %p204 = scmp.eq.s32.totalorder %s52, 1
      %p205 = por %p203, %p204
      %p207 = scmp.ne.s32.totalorder %s190, %s206
      %p208 = scmp.eq.s32.totalorder %s52, 0
      %p209 = por %p207, %p208
      %s210 = ssub.s32 %s46, %s53
      %p211 = scmp.eq.s32.totalorder %s210, 0
      %s213 = sadd.s32 %s212, 1
      %s214 = scalar_select %p211, %s212, %s213
      %p217 = pneg %p211
      %p218 = scmp.eq.s32.totalorder %s46, 1
      %p219 = por %p217, %p218
      %p220 = scmp.ne.s32.totalorder %s212, %s215
      %p221 = scmp.eq.s32.totalorder %s46, 0
      %p222 = por %p220, %p221
      %p223 = scmp.ne.s32.totalorder %s212, %s215
      %p224 = scmp.eq.s32.totalorder %s51, 1
      %p225 = por %p223, %p224
      %p226 = scmp.ne.s32.totalorder %s215, %s216
      %p227 = scmp.eq.s32.totalorder %s51, 0
      %p228 = por %p226, %p227
      %p229 = scmp.ne.s32.totalorder %s215, %s216
      %p230 = scmp.eq.s32.totalorder %s52, 1
      %p231 = por %p229, %p230
      %p233 = scmp.ne.s32.totalorder %s216, %s232
      %p234 = scmp.eq.s32.totalorder %s52, 0
      %p235 = por %p233, %p234
      %s236 = ssub.s32 %s46, %s53
      %p237 = scmp.eq.s32.totalorder %s236, 0
      %s239 = sadd.s32 %s238, 1
      %s240 = scalar_select %p237, %s238, %s239
      %p243 = pneg %p237
      %p244 = scmp.eq.s32.totalorder %s46, 1
      %p245 = por %p243, %p244
      %p246 = scmp.ne.s32.totalorder %s238, %s241
      %p247 = scmp.eq.s32.totalorder %s46, 0
      %p248 = por %p246, %p247
      %p249 = scmp.ne.s32.totalorder %s238, %s241
      %p250 = scmp.eq.s32.totalorder %s51, 1
      %p251 = por %p249, %p250
      %p252 = scmp.ne.s32.totalorder %s241, %s242
      %p253 = scmp.eq.s32.totalorder %s51, 0
      %p254 = por %p252, %p253
      %p255 = scmp.ne.s32.totalorder %s241, %s242
      %p256 = scmp.eq.s32.totalorder %s52, 1
      %p257 = por %p255, %p256
      %p259 = scmp.ne.s32.totalorder %s242, %s258
      %p260 = scmp.eq.s32.totalorder %s52, 0
      %p261 = por %p259, %p260
      %s263 = sadd.s32 %s262, 1
      %p266 = scmp.eq.s32.totalorder %s46, 1
      %p267 = scmp.ne.s32.totalorder %s262, %s264
      %p268 = scmp.eq.s32.totalorder %s46, 0
      %p269 = por %p267, %p268
      %p270 = scmp.ne.s32.totalorder %s262, %s264
      %p271 = scmp.eq.s32.totalorder %s51, 1
      %p272 = por %p270, %p271
      %p273 = scmp.ne.s32.totalorder %s264, %s265
      %p274 = scmp.eq.s32.totalorder %s51, 0
      %p275 = por %p273, %p274
      %p276 = scmp.ne.s32.totalorder %s264, %s265
      %p277 = scmp.eq.s32.totalorder %s52, 1
      %p278 = por %p276, %p277
      %p280 = scmp.ne.s32.totalorder %s265, %s279
      %p281 = scmp.eq.s32.totalorder %s52, 0
      %p282 = por %p280, %p281
      %s284 = sadd.s32 %s283, 1
      %p287 = scmp.eq.s32.totalorder %s46, 1
      %p288 = scmp.ne.s32.totalorder %s283, %s285
      %p289 = scmp.eq.s32.totalorder %s46, 0
      %p290 = por %p288, %p289
      %p291 = scmp.ne.s32.totalorder %s283, %s285
      %p292 = scmp.eq.s32.totalorder %s51, 1
      %p293 = por %p291, %p292
      %p294 = scmp.ne.s32.totalorder %s285, %s286
      %p295 = scmp.eq.s32.totalorder %s51, 0
      %p296 = por %p294, %p295
      %p297 = scmp.ne.s32.totalorder %s285, %s286
      %p298 = scmp.eq.s32.totalorder %s52, 1
      %p299 = por %p297, %p298
      %p301 = scmp.ne.s32.totalorder %s286, %s300
      %p302 = scmp.eq.s32.totalorder %s52, 0
      %p303 = por %p301, %p302
      %s305 = sadd.s32 %s304, 1
      %p308 = scmp.eq.s32.totalorder %s46, 1
      %p309 = scmp.ne.s32.totalorder %s304, %s306
      %p310 = scmp.eq.s32.totalorder %s46, 0
      %p311 = por %p309, %p310
      %p312 = scmp.ne.s32.totalorder %s304, %s306
      %p313 = scmp.eq.s32.totalorder %s51, 1
      %p314 = por %p312, %p313
      %p315 = scmp.ne.s32.totalorder %s306, %s307
      %p316 = scmp.eq.s32.totalorder %s51, 0
      %p317 = por %p315, %p316
      %p318 = scmp.ne.s32.totalorder %s306, %s307
      %p319 = scmp.eq.s32.totalorder %s52, 1
      %p320 = por %p318, %p319
      %p322 = scmp.ne.s32.totalorder %s307, %s321
      %p323 = scmp.eq.s32.totalorder %s52, 0
      %p324 = por %p322, %p323
      %s326 = sadd.s32 %s325, 1
      %p329 = scmp.eq.s32.totalorder %s46, 1
      %p330 = scmp.ne.s32.totalorder %s325, %s327
      %p331 = scmp.eq.s32.totalorder %s46, 0
      %p332 = por %p330, %p331
      %p333 = scmp.ne.s32.totalorder %s325, %s327
      %p334 = scmp.eq.s32.totalorder %s51, 1
      %p335 = por %p333, %p334
      %p336 = scmp.ne.s32.totalorder %s327, %s328
      %p337 = scmp.eq.s32.totalorder %s51, 0
      %p338 = por %p336, %p337
      %p339 = scmp.ne.s32.totalorder %s327, %s328
      %p340 = scmp.eq.s32.totalorder %s52, 1
      %p341 = por %p339, %p340
      %p343 = scmp.ne.s32.totalorder %s328, %s342
      %p344 = scmp.eq.s32.totalorder %s52, 0
      %p345 = por %p343, %p344
      %s347 = sadd.s32 %s346, 1
      %p350 = scmp.eq.s32.totalorder %s46, 1
      %p351 = scmp.ne.s32.totalorder %s346, %s348
      %p352 = scmp.eq.s32.totalorder %s46, 0
      %p353 = por %p351, %p352
      %p354 = scmp.ne.s32.totalorder %s346, %s348
      %p355 = scmp.eq.s32.totalorder %s51, 1
      %p356 = por %p354, %p355
      %p357 = scmp.ne.s32.totalorder %s348, %s349
      %p358 = scmp.eq.s32.totalorder %s51, 0
      %p359 = por %p357, %p358
      %p360 = scmp.ne.s32.totalorder %s348, %s349
      %p361 = scmp.eq.s32.totalorder %s52, 1
      %p362 = por %p360, %p361
      %p364 = scmp.ne.s32.totalorder %s349, %s363
      %p365 = scmp.eq.s32.totalorder %s52, 0
      %p366 = por %p364, %p365
      %s368 = sadd.s32 %s367, 1
      %p371 = scmp.eq.s32.totalorder %s46, 1
      %p372 = scmp.ne.s32.totalorder %s367, %s369
      %p373 = scmp.eq.s32.totalorder %s46, 0
      %p374 = por %p372, %p373
      %p375 = scmp.ne.s32.totalorder %s367, %s369
      %p376 = scmp.eq.s32.totalorder %s51, 1
      %p377 = por %p375, %p376
      %p378 = scmp.ne.s32.totalorder %s369, %s370
      %p379 = scmp.eq.s32.totalorder %s51, 0
      %p380 = por %p378, %p379
      %p381 = scmp.ne.s32.totalorder %s369, %s370
      %p382 = scmp.eq.s32.totalorder %s52, 1
      %p383 = por %p381, %p382
      %p385 = scmp.ne.s32.totalorder %s370, %s384
      %p386 = scmp.eq.s32.totalorder %s52, 0
      %p387 = por %p385, %p386
      %s389 = sadd.s32 %s388, 1
      %p392 = scmp.eq.s32.totalorder %s46, 1
      %p393 = scmp.ne.s32.totalorder %s388, %s390
      %p394 = scmp.eq.s32.totalorder %s46, 0
      %p395 = por %p393, %p394
      %p396 = scmp.ne.s32.totalorder %s388, %s390
      %p397 = scmp.eq.s32.totalorder %s51, 1
      %p398 = por %p396, %p397
      %p399 = scmp.ne.s32.totalorder %s390, %s391
      %p400 = scmp.eq.s32.totalorder %s51, 0
      %p401 = por %p399, %p400
      %p402 = scmp.ne.s32.totalorder %s390, %s391
      %p403 = scmp.eq.s32.totalorder %s52, 1
      %p404 = por %p402, %p403
      %p406 = scmp.ne.s32.totalorder %s391, %s405
      %p407 = scmp.eq.s32.totalorder %s52, 0
      %p408 = por %p406, %p407
      %s410 = sadd.s32 %s409, 1
      %p413 = scmp.eq.s32.totalorder %s46, 1
      %p414 = scmp.ne.s32.totalorder %s409, %s411
      %p415 = scmp.eq.s32.totalorder %s46, 0
      %p416 = por %p414, %p415
      %p417 = scmp.ne.s32.totalorder %s409, %s411
      %p418 = scmp.eq.s32.totalorder %s51, 1
      %p419 = por %p417, %p418
      %p420 = scmp.ne.s32.totalorder %s411, %s412
      %p421 = scmp.eq.s32.totalorder %s51, 0
      %p422 = por %p420, %p421
      %p423 = scmp.ne.s32.totalorder %s411, %s412
      %p424 = scmp.eq.s32.totalorder %s52, 1
      %p425 = por %p423, %p424
      %p427 = scmp.ne.s32.totalorder %s412, %s426
      %p428 = scmp.eq.s32.totalorder %s52, 0
      %p429 = por %p427, %p428
      %s431 = sadd.s32 %s430, 1
      %p434 = scmp.eq.s32.totalorder %s46, 1
      %p435 = scmp.ne.s32.totalorder %s430, %s432
      %p436 = scmp.eq.s32.totalorder %s46, 0
      %p437 = por %p435, %p436
      %p438 = scmp.ne.s32.totalorder %s430, %s432
      %p439 = scmp.eq.s32.totalorder %s51, 1
      %p440 = por %p438, %p439
      %p441 = scmp.ne.s32.totalorder %s432, %s433
      %p442 = scmp.eq.s32.totalorder %s51, 0
      %p443 = por %p441, %p442
      %p444 = scmp.ne.s32.totalorder %s432, %s433
      %p445 = scmp.eq.s32.totalorder %s52, 1
      %p446 = por %p444, %p445
      %p448 = scmp.ne.s32.totalorder %s433, %s447
      %p449 = scmp.eq.s32.totalorder %s52, 0
      %p450 = por %p448, %p449
      %s452 = sadd.s32 %s451, 1
      %p455 = scmp.eq.s32.totalorder %s46, 1
      %p456 = scmp.ne.s32.totalorder %s451, %s453
      %p457 = scmp.eq.s32.totalorder %s46, 0
      %p458 = por %p456, %p457
      %p459 = scmp.ne.s32.totalorder %s451, %s453
      %p460 = scmp.eq.s32.totalorder %s51, 1
      %p461 = por %p459, %p460
      %p462 = scmp.ne.s32.totalorder %s453, %s454
      %p463 = scmp.eq.s32.totalorder %s51, 0
      %p464 = por %p462, %p463
      %p465 = scmp.ne.s32.totalorder %s453, %s454
      %p466 = scmp.eq.s32.totalorder %s52, 1
      %p467 = por %p465, %p466
      %p469 = scmp.ne.s32.totalorder %s454, %s468
      %p470 = scmp.eq.s32.totalorder %s52, 0
      %p471 = por %p469, %p470
      %s473 = sadd.s32 %s472, 1
      %p476 = scmp.eq.s32.totalorder %s46, 1
      %p477 = scmp.ne.s32.totalorder %s472, %s474
      %p478 = scmp.eq.s32.totalorder %s46, 0
      %p479 = por %p477, %p478
      %p480 = scmp.ne.s32.totalorder %s472, %s474
      %p481 = scmp.eq.s32.totalorder %s51, 1
      %p482 = por %p480, %p481
      %p483 = scmp.ne.s32.totalorder %s474, %s475
      %p484 = scmp.eq.s32.totalorder %s51, 0
      %p485 = por %p483, %p484
      %p486 = scmp.ne.s32.totalorder %s474, %s475
      %p487 = scmp.eq.s32.totalorder %s52, 1
      %p488 = por %p486, %p487
      %p490 = scmp.ne.s32.totalorder %s475, %s489
      %p491 = scmp.eq.s32.totalorder %s52, 0
      %p492 = por %p490, %p491
      %s494 = sadd.s32 %s493, 1
      %p497 = scmp.eq.s32.totalorder %s46, 1
      %p498 = scmp.ne.s32.totalorder %s493, %s495
      %p499 = scmp.eq.s32.totalorder %s46, 0
      %p500 = por %p498, %p499
      %p501 = scmp.ne.s32.totalorder %s493, %s495
      %p502 = scmp.eq.s32.totalorder %s51, 1
      %p503 = por %p501, %p502
      %p504 = scmp.ne.s32.totalorder %s495, %s496
      %p505 = scmp.eq.s32.totalorder %s51, 0
      %p506 = por %p504, %p505
      %p507 = scmp.ne.s32.totalorder %s495, %s496
      %p508 = scmp.eq.s32.totalorder %s52, 1
      %p509 = por %p507, %p508
      %p511 = scmp.ne.s32.totalorder %s496, %s510
      %p512 = scmp.eq.s32.totalorder %s52, 0
      %p513 = por %p511, %p512
      %s515 = sadd.s32 %s514, 1
      %p518 = scmp.eq.s32.totalorder %s46, 1
      %p519 = scmp.ne.s32.totalorder %s514, %s516
      %p520 = scmp.eq.s32.totalorder %s46, 0
      %p521 = por %p519, %p520
      %p522 = scmp.ne.s32.totalorder %s514, %s516
      %p523 = scmp.eq.s32.totalorder %s51, 1
      %p524 = por %p522, %p523
      %p525 = scmp.ne.s32.totalorder %s516, %s517
      %p526 = scmp.eq.s32.totalorder %s51, 0
      %p527 = por %p525, %p526
      %p528 = scmp.ne.s32.totalorder %s516, %s517
      %p529 = scmp.eq.s32.totalorder %s52, 1
      %p530 = por %p528, %p529
      %p532 = scmp.ne.s32.totalorder %s517, %s531
      %p533 = scmp.eq.s32.totalorder %s52, 0
      %p534 = por %p532, %p533
      %s536 = sadd.s32 %s535, 1
      %p539 = scmp.eq.s32.totalorder %s46, 1
      %p540 = scmp.ne.s32.totalorder %s535, %s537
      %p541 = scmp.eq.s32.totalorder %s46, 0
      %p542 = por %p540, %p541
      %p543 = scmp.ne.s32.totalorder %s535, %s537
      %p544 = scmp.eq.s32.totalorder %s51, 1
      %p545 = por %p543, %p544
      %p546 = scmp.ne.s32.totalorder %s537, %s538
      %p547 = scmp.eq.s32.totalorder %s51, 0
      %p548 = por %p546, %p547
      %p549 = scmp.ne.s32.totalorder %s537, %s538
      %p550 = scmp.eq.s32.totalorder %s52, 1
      %p551 = por %p549, %p550
      %p553 = scmp.ne.s32.totalorder %s538, %s552
      %p554 = scmp.eq.s32.totalorder %s52, 0
      %p555 = por %p553, %p554
      %s556 = ssub.s32 %s46, %s53
      %p557 = scmp.eq.s32.totalorder %s556, 0
      %s559 = sadd.s32 %s558, 1
      %s560 = scalar_select %p557, %s558, %s559
      %p563 = pneg %p557
      %p564 = scmp.eq.s32.totalorder %s46, 1
      %p565 = por %p563, %p564
      %p566 = scmp.ne.s32.totalorder %s558, %s561
      %p567 = scmp.eq.s32.totalorder %s46, 0
      %p568 = por %p566, %p567
      %p569 = scmp.ne.s32.totalorder %s558, %s561
      %p570 = scmp.eq.s32.totalorder %s51, 1
      %p571 = por %p569, %p570
      %p572 = scmp.ne.s32.totalorder %s561, %s562
      %p573 = scmp.eq.s32.totalorder %s51, 0
      %p574 = por %p572, %p573
      %p575 = scmp.ne.s32.totalorder %s561, %s562
      %p576 = scmp.eq.s32.totalorder %s52, 1
      %p577 = por %p575, %p576
      %p579 = scmp.ne.s32.totalorder %s562, %s578
      %p580 = scmp.eq.s32.totalorder %s52, 0
      %p581 = por %p579, %p580
      %s582 = ssub.s32 %s46, %s53
      %p583 = scmp.eq.s32.totalorder %s582, 0
      %s585 = sadd.s32 %s584, 1
      %s586 = scalar_select %p583, %s584, %s585
      %p589 = pneg %p583
      %p590 = scmp.eq.s32.totalorder %s46, 1
      %p591 = por %p589, %p590
      %p592 = scmp.ne.s32.totalorder %s584, %s587
      %p593 = scmp.eq.s32.totalorder %s46, 0
      %p594 = por %p592, %p593
      %p595 = scmp.ne.s32.totalorder %s584, %s587
      %p596 = scmp.eq.s32.totalorder %s51, 1
      %p597 = por %p595, %p596
      %p598 = scmp.ne.s32.totalorder %s587, %s588
      %p599 = scmp.eq.s32.totalorder %s51, 0
      %p600 = por %p598, %p599
      %p601 = scmp.ne.s32.totalorder %s587, %s588
      %p602 = scmp.eq.s32.totalorder %s52, 1
      %p603 = por %p601, %p602
      %p605 = scmp.ne.s32.totalorder %s588, %s604
      %p606 = scmp.eq.s32.totalorder %s52, 0
      %p607 = por %p605, %p606
      %s608 = ssub.s32 %s46, %s53
      %p609 = scmp.eq.s32.totalorder %s608, 0
      %s611 = sadd.s32 %s610, 1
      %s612 = scalar_select %p609, %s610, %s611
      %p615 = pneg %p609
      %p616 = scmp.eq.s32.totalorder %s46, 1
      %p617 = por %p615, %p616
      %p618 = scmp.ne.s32.totalorder %s610, %s613
      %p619 = scmp.eq.s32.totalorder %s46, 0
      %p620 = por %p618, %p619
      %p621 = scmp.ne.s32.totalorder %s610, %s613
      %p622 = scmp.eq.s32.totalorder %s51, 1
      %p623 = por %p621, %p622
      %p624 = scmp.ne.s32.totalorder %s613, %s614
      %p625 = scmp.eq.s32.totalorder %s51, 0
      %p626 = por %p624, %p625
      %p627 = scmp.ne.s32.totalorder %s613, %s614
      %p628 = scmp.eq.s32.totalorder %s52, 1
      %p629 = por %p627, %p628
      %p631 = scmp.ne.s32.totalorder %s614, %s630
      %p632 = scmp.eq.s32.totalorder %s52, 0
      %p633 = por %p631, %p632
      %s634 = ssub.s32 %s46, %s53
      %p635 = scmp.eq.s32.totalorder %s634, 0
      %s637 = sadd.s32 %s636, 1
      %s638 = scalar_select %p635, %s636, %s637
      %p641 = pneg %p635
      %p642 = scmp.eq.s32.totalorder %s46, 1
      %p643 = por %p641, %p642
      %p644 = scmp.ne.s32.totalorder %s636, %s639
      %p645 = scmp.eq.s32.totalorder %s46, 0
      %p646 = por %p644, %p645
      %p647 = scmp.ne.s32.totalorder %s636, %s639
      %p648 = scmp.eq.s32.totalorder %s51, 1
      %p649 = por %p647, %p648
      %p650 = scmp.ne.s32.totalorder %s639, %s640
      %p651 = scmp.eq.s32.totalorder %s51, 0
      %p652 = por %p650, %p651
      %p653 = scmp.ne.s32.totalorder %s639, %s640
      %p654 = scmp.eq.s32.totalorder %s52, 1
      %p655 = por %p653, %p654
      %p657 = scmp.ne.s32.totalorder %s640, %s656
      %p658 = scmp.eq.s32.totalorder %s52, 0
      %p659 = por %p657, %p658
      %s660 = ssub.s32 %s46, %s53
      %p661 = scmp.eq.s32.totalorder %s660, 0
      %s663 = sadd.s32 %s662, 1
      %s664 = scalar_select %p661, %s662, %s663
      %p667 = pneg %p661
      %p668 = scmp.eq.s32.totalorder %s46, 1
      %p669 = por %p667, %p668
      %p670 = scmp.ne.s32.totalorder %s662, %s665
      %p671 = scmp.eq.s32.totalorder %s46, 0
      %p672 = por %p670, %p671
      %p673 = scmp.ne.s32.totalorder %s662, %s665
      %p674 = scmp.eq.s32.totalorder %s51, 1
      %p675 = por %p673, %p674
      %p676 = scmp.ne.s32.totalorder %s665, %s666
      %p677 = scmp.eq.s32.totalorder %s51, 0
      %p678 = por %p676, %p677
      %p679 = scmp.ne.s32.totalorder %s665, %s666
      %p680 = scmp.eq.s32.totalorder %s52, 1
      %p681 = por %p679, %p680
      %p683 = scmp.ne.s32.totalorder %s666, %s682
      %p684 = scmp.eq.s32.totalorder %s52, 0
      %p685 = por %p683, %p684
      %p686 = scmp.le.s32.totalorder 1, %s46
      %p687 = scmp.lt.s32.totalorder %s46, 3
      %p688 = pnand %p686, %p687
      %p689 = pneg %p688
      // Predicated region
      $region9: #{mllama_decoder_layer.1} parent=5 // pred_check
        _
      $region10: #{mllama_decoder_layer.1} parent=5 // pred_check_branch
        %691 = sbr.rel (%p688) target = $region12
      $region11: #{mllama_decoder_layer.1} parent=5 // pred_region
        %s692 = ssub.s32 %s46, 1
        // Predicated region
        $region13: #{mllama_decoder_layer.1} parent=11 // pred_check
          %p693 = pneg %p275
        $region14: #{mllama_decoder_layer.1} parent=11 // pred_check_branch
          %695 = sbr.rel (%p693) target = $region16
        $region15: #{mllama_decoder_layer.1} parent=11 // pred_region
          _
        $region16: #{mllama_decoder_layer.1} parent=11 // pred_fallthru
          _
        // Predicated region
        $region17: #{mllama_decoder_layer.1} parent=11 // pred_check
          %p696 = pneg %p296
        $region18: #{mllama_decoder_layer.1} parent=11 // pred_check_branch
          %698 = sbr.rel (%p696) target = $region20
        $region19: #{mllama_decoder_layer.1} parent=11 // pred_region
          _
        $region20: #{mllama_decoder_layer.1} parent=11 // pred_fallthru
          _
        // Predicated region
        $region21: #{mllama_decoder_layer.1} parent=11 // pred_check
          %p699 = pneg %p317
        $region22: #{mllama_decoder_layer.1} parent=11 // pred_check_branch
          %701 = sbr.rel (%p699) target = $region24
        $region23: #{mllama_decoder_layer.1} parent=11 // pred_region
          _
        $region24: #{mllama_decoder_layer.1} parent=11 // pred_fallthru
          _
        // Predicated region
        $region25: #{mllama_decoder_layer.1} parent=11 // pred_check
          %p702 = pneg %p338
        $region26: #{mllama_decoder_layer.1} parent=11 // pred_check_branch
          %704 = sbr.rel (%p702) target = $region28
        $region27: #{mllama_decoder_layer.1} parent=11 // pred_region
          _
        $region28: #{mllama_decoder_layer.1} parent=11 // pred_fallthru
          _
        // Predicated region
        $region29: #{mllama_decoder_layer.1} parent=11 // pred_check
          %p705 = pneg %p359
        $region30: #{mllama_decoder_layer.1} parent=11 // pred_check_branch
          %707 = sbr.rel (%p705) target = $region32
        $region31: #{mllama_decoder_layer.1} parent=11 // pred_region
          _
        $region32: #{mllama_decoder_layer.1} parent=11 // pred_fallthru
          _
        // Predicated region
        $region33: #{mllama_decoder_layer.1} parent=11 // pred_check
          %p708 = pneg %p380
        $region34: #{mllama_decoder_layer.1} parent=11 // pred_check_branch
          %710 = sbr.rel (%p708) target = $region36
        $region35: #{mllama_decoder_layer.1} parent=11 // pred_region
          _
        $region36: #{mllama_decoder_layer.1} parent=11 // pred_fallthru
          _
        // Predicated region
        $region37: #{mllama_decoder_layer.1} parent=11 // pred_check
          %p711 = pneg %p401
        $region38: #{mllama_decoder_layer.1} parent=11 // pred_check_branch
          %713 = sbr.rel (%p711) target = $region40
        $region39: #{mllama_decoder_layer.1} parent=11 // pred_region
          _
        $region40: #{mllama_decoder_layer.1} parent=11 // pred_fallthru
          _
        // Predicated region
        $region41: #{mllama_decoder_layer.1} parent=11 // pred_check
          %p714 = pneg %p422
        $region42: #{mllama_decoder_layer.1} parent=11 // pred_check_branch
          %716 = sbr.rel (%p714) target = $region44
        $region43: #{mllama_decoder_layer.1} parent=11 // pred_region
          _
        $region44: #{mllama_decoder_layer.1} parent=11 // pred_fallthru
          _
        // Predicated region
        $region45: #{mllama_decoder_layer.1} parent=11 // pred_check
          %p717 = pneg %p443
        $region46: #{mllama_decoder_layer.1} parent=11 // pred_check_branch
          %719 = sbr.rel (%p717) target = $region48
        $region47: #{mllama_decoder_layer.1} parent=11 // pred_region
          _
        $region48: #{mllama_decoder_layer.1} parent=11 // pred_fallthru
          _
        // Predicated region
        $region49: #{mllama_decoder_layer.1} parent=11 // pred_check
          %p720 = pneg %p464
        $region50: #{mllama_decoder_layer.1} parent=11 // pred_check_branch
          %722 = sbr.rel (%p720) target = $region52
        $region51: #{mllama_decoder_layer.1} parent=11 // pred_region
          %724 = vsyncadd [#allocation7], 0
          %s725 = sshll.u32 %s17, 4
          %s726 = int_to_ptr.hbm [resolvable:$true] %s725
          %s727 = sshll.u32 [#allocation6], 4
          %s728 = int_to_ptr.vmem [resolvable:$true] %s727
          %733 = dma.hbm_to_vmem [thread:$0]  %s726, 1024, %s728, [#allocation7], 128, 128, 8
        $region52: #{mllama_decoder_layer.1} parent=11 // pred_fallthru
          _
        // Predicated region
        $region53: #{mllama_decoder_layer.1} parent=11 // pred_check
          %p734 = pneg %p485
        $region54: #{mllama_decoder_layer.1} parent=11 // pred_check_branch
          %736 = sbr.rel (%p734) target = $region56
        $region55: #{mllama_decoder_layer.1} parent=11 // pred_region
          %738 = vsyncadd [#allocation7], 0
          %s739 = sshll.u32 %s18, 4
          %s740 = int_to_ptr.hbm [resolvable:$true] %s739
          %s741 = sshll.u32 [#allocation8], 4
          %s742 = int_to_ptr.vmem [resolvable:$true] %s741
          %747 = dma.hbm_to_vmem [thread:$0]  %s740, 1024, %s742, [#allocation7], 128, 128, 8
        $region56: #{mllama_decoder_layer.1} parent=11 // pred_fallthru
          _
        // Predicated region
        $region57: #{mllama_decoder_layer.1} parent=11 // pred_check
          %p748 = pneg %p506
        $region58: #{mllama_decoder_layer.1} parent=11 // pred_check_branch
          %750 = sbr.rel (%p748) target = $region60
        $region59: #{mllama_decoder_layer.1} parent=11 // pred_region
          _
        $region60: #{mllama_decoder_layer.1} parent=11 // pred_fallthru
          _
        // Predicated region
        $region61: #{mllama_decoder_layer.1} parent=11 // pred_check
          %p751 = pneg %p527
        $region62: #{mllama_decoder_layer.1} parent=11 // pred_check_branch
          %753 = sbr.rel (%p751) target = $region64
        $region63: #{mllama_decoder_layer.1} parent=11 // pred_region
          _
        $region64: #{mllama_decoder_layer.1} parent=11 // pred_fallthru
          _
        // Predicated region
        $region65: #{mllama_decoder_layer.1} parent=11 // pred_check
          %p754 = pneg %p548
        $region66: #{mllama_decoder_layer.1} parent=11 // pred_check_branch
          %756 = sbr.rel (%p754) target = $region68
        $region67: #{mllama_decoder_layer.1} parent=11 // pred_region
          _
        $region68: #{mllama_decoder_layer.1} parent=11 // pred_fallthru
          _
      $region12: #{mllama_decoder_layer.1} parent=5 // pred_fallthru
        _
      %p757 = scmp.lt.s32.totalorder %s46, 2
      // Predicated region
      $region69: #{mllama_decoder_layer.1} parent=5 // pred_check
        %p758 = pneg %p757
      $region70: #{mllama_decoder_layer.1} parent=5 // pred_check_branch
        %760 = sbr.rel (%p758) target = $region72
      $region71: #{mllama_decoder_layer.1} parent=5 // pred_region
        // Predicated region
        $region73: #{mllama_decoder_layer.1} parent=71 // pred_check
          %p761 = pneg %p66
        $region74: #{mllama_decoder_layer.1} parent=71 // pred_check_branch
          %763 = sbr.rel (%p761) target = $region76
        $region75: #{mllama_decoder_layer.1} parent=71 // pred_region
          %p764 = scmp.lt.s32.totalorder %s46, 1
          %s765 = scalar_select %p764, %s46, 1
          %s766 = smul.addr %s765, 8
          %s767 = scalar_lea.vmem %s0, %s766
        $region76: #{mllama_decoder_layer.1} parent=71 // pred_fallthru
          _
        // Predicated region
        $region77: #{mllama_decoder_layer.1} parent=71 // pred_check
          %p768 = pneg %p92
        $region78: #{mllama_decoder_layer.1} parent=71 // pred_check_branch
          %770 = sbr.rel (%p768) target = $region80
        $region79: #{mllama_decoder_layer.1} parent=71 // pred_region
          %s771 = sand.u32 %s82, 1
          %s772 = scalar_lea.sflag [#allocation4], %s771
          %s773 = sand.u32 %s82, 1
          %s774 = smul.addr %s773, 8
          %s775 = scalar_lea.vmem [#allocation3], %s774
          %777 = vsyncadd %s772, 0
          %s778 = smul.addr %s46, 8
          %s779 = scalar_lea.hbm %s1, %s778
          %s781 = sshll.u32 %s779, 4
          %s782 = int_to_ptr.hbm [resolvable:$true] %s781
          %s783 = sshll.u32 %s775, 4
          %s784 = int_to_ptr.vmem [resolvable:$true] %s783
          %786 = dma.hbm_to_vmem [thread:$0]  %s782, 128, %s784, %s772
        $region80: #{mllama_decoder_layer.1} parent=71 // pred_fallthru
          _
        // Predicated region
        $region81: #{mllama_decoder_layer.1} parent=71 // pred_check
          %p787 = pneg %p118
        $region82: #{mllama_decoder_layer.1} parent=71 // pred_check_branch
          %789 = sbr.rel (%p787) target = $region84
        $region83: #{mllama_decoder_layer.1} parent=71 // pred_region
          %p790 = scmp.lt.s32.totalorder %s46, 1
          %s791 = scalar_select %p790, %s46, 1
          %s792 = smul.addr %s791, 8
          %s793 = scalar_lea.vmem %s2, %s792
        $region84: #{mllama_decoder_layer.1} parent=71 // pred_fallthru
          _
        // Predicated region
        $region85: #{mllama_decoder_layer.1} parent=71 // pred_check
          %p794 = pneg %p144
        $region86: #{mllama_decoder_layer.1} parent=71 // pred_check_branch
          %796 = sbr.rel (%p794) target = $region88
        $region87: #{mllama_decoder_layer.1} parent=71 // pred_region
          %p797 = scmp.lt.s32.totalorder %s46, 1
          %s798 = scalar_select %p797, %s46, 1
          %s799 = smul.addr %s798, 8
          %s800 = scalar_lea.vmem %s3, %s799
        $region88: #{mllama_decoder_layer.1} parent=71 // pred_fallthru
          _
        // Predicated region
        $region89: #{mllama_decoder_layer.1} parent=71 // pred_check
          %p801 = pneg %p170
        $region90: #{mllama_decoder_layer.1} parent=71 // pred_check_branch
          %803 = sbr.rel (%p801) target = $region92
        $region91: #{mllama_decoder_layer.1} parent=71 // pred_region
          %p804 = scmp.lt.s32.totalorder %s46, 1
          %s805 = scalar_select %p804, %s46, 1
          %s806 = scalar_lea.vmem %s4, %s805
        $region92: #{mllama_decoder_layer.1} parent=71 // pred_fallthru
          _
        // Predicated region
        $region93: #{mllama_decoder_layer.1} parent=71 // pred_check
          %p807 = pneg %p196
        $region94: #{mllama_decoder_layer.1} parent=71 // pred_check_branch
          %809 = sbr.rel (%p807) target = $region96
        $region95: #{mllama_decoder_layer.1} parent=71 // pred_region
          %p810 = scmp.lt.s32.totalorder %s46, 1
          %s811 = scalar_select %p810, %s46, 1
          %s812 = smul.addr %s811, 8
          %s813 = scalar_lea.vmem %s5, %s812
        $region96: #{mllama_decoder_layer.1} parent=71 // pred_fallthru
          _
        // Predicated region
        $region97: #{mllama_decoder_layer.1} parent=71 // pred_check
          %p814 = pneg %p222
        $region98: #{mllama_decoder_layer.1} parent=71 // pred_check_branch
          %816 = sbr.rel (%p814) target = $region100
        $region99: #{mllama_decoder_layer.1} parent=71 // pred_region
          %p817 = scmp.lt.s32.totalorder %s46, 1
          %s818 = scalar_select %p817, %s46, 1
          %s819 = smul.addr %s818, 8
          %s820 = scalar_lea.vmem %s6, %s819
        $region100: #{mllama_decoder_layer.1} parent=71 // pred_fallthru
          _
        // Predicated region
        $region101: #{mllama_decoder_layer.1} parent=71 // pred_check
          %p821 = pneg %p248
        $region102: #{mllama_decoder_layer.1} parent=71 // pred_check_branch
          %823 = sbr.rel (%p821) target = $region104
        $region103: #{mllama_decoder_layer.1} parent=71 // pred_region
          %p824 = scmp.lt.s32.totalorder %s46, 1
          %s825 = scalar_select %p824, %s46, 1
          %s826 = smul.addr %s825, 8
          %s827 = scalar_lea.vmem %s7, %s826
        $region104: #{mllama_decoder_layer.1} parent=71 // pred_fallthru
          _
      $region72: #{mllama_decoder_layer.1} parent=5 // pred_fallthru
        _
      %p828 = scmp.le.s32.totalorder 1, %s46
      %p829 = scmp.lt.s32.totalorder %s46, 3
      %p830 = pnand %p828, %p829
      %p831 = pneg %p830
      // Predicated region
      $region105: #{mllama_decoder_layer.1} parent=5 // pred_check
        _
      $region106: #{mllama_decoder_layer.1} parent=5 // pred_check_branch
        %833 = sbr.rel (%p830) target = $region108
      $region107: #{mllama_decoder_layer.1} parent=5 // pred_region
        %s834 = ssub.s32 %s46, 1
        %s835 = sand.u32 %s85, 1
        %s836 = scalar_lea.sflag [#allocation4], %s835
        %s837 = sand.u32 %s85, 1
        %s838 = smul.addr %s837, 8
        %s839 = scalar_lea.vmem [#allocation3], %s838
        // Predicated region
        $region109: #{mllama_decoder_layer.1} parent=107 // pred_check
          %p840 = pneg %p98
        $region110: #{mllama_decoder_layer.1} parent=107 // pred_check_branch
          %842 = sbr.rel (%p840) target = $region112
        $region111: #{mllama_decoder_layer.1} parent=107 // pred_region
          %844 = dma.done %s836, 128
        $region112: #{mllama_decoder_layer.1} parent=107 // pred_fallthru
          _
        // Predicated region
        $region113: #{mllama_decoder_layer.1} parent=107 // pred_check
          %p845 = pneg %p464
        $region114: #{mllama_decoder_layer.1} parent=107 // pred_check_branch
          %847 = sbr.rel (%p845) target = $region116
        $region115: #{mllama_decoder_layer.1} parent=107 // pred_region
          %849 = dma.done [#allocation7], 1024
        $region116: #{mllama_decoder_layer.1} parent=107 // pred_fallthru
          _
        // Predicated region
        $region117: #{mllama_decoder_layer.1} parent=107 // pred_check
          %p850 = pneg %p485
        $region118: #{mllama_decoder_layer.1} parent=107 // pred_check_branch
          %852 = sbr.rel (%p850) target = $region120
        $region119: #{mllama_decoder_layer.1} parent=107 // pred_region
          %854 = dma.done [#allocation7], 1024
        $region120: #{mllama_decoder_layer.1} parent=107 // pred_fallthru
          _
        %p855 = scmp.lt.s32.totalorder %s51, 1
        %s856 = scalar_select %p855, %s51, 1
        %s857 = smul.addr %s856, 8
        %s858 = scalar_lea.vmem %s0, %s857
        %p859 = pneg %p72
        %p860 = pneg %p69
        %s861 = sand.u32 %s85, 1
        %s862 = scalar_lea.sflag [#allocation4], %s861
        %s863 = sand.u32 %s85, 1
        %s864 = smul.addr %s863, 8
        %s865 = scalar_lea.vmem [#allocation3], %s864
        %p866 = pneg %p98
        %p867 = pneg %p95
        %p868 = scmp.lt.s32.totalorder %s51, 1
        %s869 = scalar_select %p868, %s51, 1
        %s870 = smul.addr %s869, 8
        %s871 = scalar_lea.vmem %s2, %s870
        %p872 = pneg %p124
        %p873 = pneg %p121
        %p874 = scmp.lt.s32.totalorder %s51, 1
        %s875 = scalar_select %p874, %s51, 1
        %s876 = smul.addr %s875, 8
        %s877 = scalar_lea.vmem %s3, %s876
        %p878 = pneg %p150
        %p879 = pneg %p147
        %p880 = scmp.lt.s32.totalorder %s51, 1
        %s881 = scalar_select %p880, %s51, 1
        %s882 = scalar_lea.vmem %s4, %s881
        %p883 = pneg %p176
        %p884 = pneg %p173
        %p885 = scmp.lt.s32.totalorder %s51, 1
        %s886 = scalar_select %p885, %s51, 1
        %s887 = smul.addr %s886, 8
        %s888 = scalar_lea.vmem %s5, %s887
        %p889 = pneg %p202
        %p890 = pneg %p199
        %p891 = scmp.lt.s32.totalorder %s51, 1
        %s892 = scalar_select %p891, %s51, 1
        %s893 = smul.addr %s892, 8
        %s894 = scalar_lea.vmem %s6, %s893
        %p895 = pneg %p228
        %p896 = pneg %p225
        %p897 = scmp.lt.s32.totalorder %s51, 1
        %s898 = scalar_select %p897, %s51, 1
        %s899 = smul.addr %s898, 8
        %s900 = scalar_lea.vmem %s7, %s899
        %p901 = pneg %p254
        %p902 = pneg %p251
        %p903 = pneg %p275
        %p904 = pneg %p272
        %p905 = pneg %p296
        %p906 = pneg %p293
        %p907 = pneg %p317
        %p908 = pneg %p314
        %p909 = pneg %p338
        %p910 = pneg %p335
        %p911 = pneg %p359
        %p912 = pneg %p356
        %p913 = pneg %p380
        %p914 = pneg %p377
        %p915 = pneg %p401
        %p916 = pneg %p398
        %p917 = pneg %p422
        %p918 = pneg %p419
        %p919 = pneg %p443
        %p920 = pneg %p440
        %p921 = pneg %p464
        %p922 = pneg %p461
        %p923 = pneg %p485
        %p924 = pneg %p482
        %p925 = pneg %p506
        %p926 = pneg %p503
        %p927 = pneg %p527
        %p928 = pneg %p524
        %p929 = pneg %p548
        %p930 = pneg %p545
        %p931 = pneg %p574
        %p932 = pneg %p571
        %s933 = sand.u32 %s561, 1
        %s934 = scalar_lea.sflag [#allocation5], %s933
        %s935 = sand.u32 %s561, 1
        %s936 = smul.addr %s935, 8
        %s937 = scalar_lea.vmem [#allocation9], %s936
        %p938 = pneg %p600
        %p939 = pneg %p597
        %s940 = sand.u32 %s51, 1
        %s941 = scalar_lea.sflag [#allocation11], %s940
        %s942 = sand.u32 %s587, 1
        %s943 = smul.addr %s942, 16
        %s944 = scalar_lea.vmem [#allocation10], %s943
        %p945 = pneg %p626
        %p946 = pneg %p623
        %s947 = sand.u32 %s51, 1
        %s948 = scalar_lea.sflag [#allocation11], %s947
        %s949 = sand.u32 %s613, 1
        %s950 = smul.addr %s949, 16
        %s951 = scalar_lea.vmem [#allocation12], %s950
        %p952 = pneg %p652
        %p953 = pneg %p649
        %s954 = sand.u32 %s51, 1
        %s955 = scalar_lea.sflag [#allocation14], %s954
        %s956 = sand.u32 %s639, 1
        %s957 = smul.addr %s956, 16
        %s958 = scalar_lea.vmem [#allocation13], %s957
        %p959 = pneg %p678
        %p960 = pneg %p675
        %s961 = sand.u32 %s51, 1
        %s962 = scalar_lea.sflag [#allocation14], %s961
        %s963 = sand.u32 %s665, 1
        %s964 = smul.addr %s963, 16
        %s965 = scalar_lea.vmem [#allocation15], %s964
        %p966 = scmp.lt.s32.totalorder %s51, 1
        %s967 = scalar_select %p966, %s51, 1
        %s968 = smul.addr %s967, 8
        %s969 = scalar_lea.vmem %s0, %s968
        %p970 = scmp.lt.s32.totalorder %s51, 1
        %s971 = scalar_select %p970, %s51, 1
        %s972 = smul.addr %s971, 8
        %s973 = scalar_lea.vmem %s2, %s972
        %p974 = scmp.lt.s32.totalorder %s51, 1
        %s975 = scalar_select %p974, %s51, 1
        %s976 = smul.addr %s975, 8
        %s977 = scalar_lea.vmem %s3, %s976
        %p978 = scmp.lt.s32.totalorder %s51, 1
        %s979 = scalar_select %p978, %s51, 1
        %s980 = scalar_lea.vmem %s4, %s979
        %p981 = scmp.lt.s32.totalorder %s51, 1
        %s982 = scalar_select %p981, %s51, 1
        %s983 = smul.addr %s982, 8
        %s984 = scalar_lea.vmem %s5, %s983
        %p985 = scmp.lt.s32.totalorder %s51, 1
        %s986 = scalar_select %p985, %s51, 1
        %s987 = smul.addr %s986, 8
        %s988 = scalar_lea.vmem %s6, %s987
        %p989 = scmp.lt.s32.totalorder %s51, 1
        %s990 = scalar_select %p989, %s51, 1
        %s991 = smul.addr %s990, 8
        %s992 = scalar_lea.vmem %s7, %s991
        %v993 = vld [vmem:[%s969] sm:$0xff]
        %v994 = vld [vmem:[%s839] sm:$0xff]
        %v995 = vld [vmem:[%s973] sm:$0xff]
        %v996 = vld [vmem:[%s977] sm:$0xff]
        %v997 = vld [vmem:[%s980] sm:$0x1]
        %v998 = vld [vmem:[%s984] sm:$0xff]
        %v999 = vld [vmem:[%s988] sm:$0xff]
        %v1000 = vld [vmem:[%s992] sm:$0xff]
        %v1001 = vld [vmem:[%s8] sm:$0x1]
        %v1002 = vmul.f32 %v993, %v993
        %vm1003 = vcmask 523264
        %v1004 = vsel %vm1003, %v1002, 0.0
        %1005 = vadd.xlane.f32.xlu0 %v1004
        %v1006 = vpop.xlane.xlu0 %1005
        %v1007 = vrcp.pop 64.0
        %v1008 = vmul.f32 64.0, %v1007
        %v1009 = vsub.f32 1.0, %v1008
        %v1010 = vmul.f32 %v1007, %v1009
        %v1011 = vadd.f32 %v1007, %v1010
        %vm1012 = vweird.f32 %v1007
        %v1013 = vsel %vm1012, %v1007, %v1011
        %v1014 = vmul.f32 %v1006, %v1013
        %v1015 = vadd.f32 %v1014, 1e-05
        %v1016 = vrsqrt.pop %v1015
        %v1017 = vmul.f32 %v1016, %v1015
        %v1018 = vmul.f32 %v1017, %v1016
        %v1019 = vmul.f32 0.5, %v1018
        %v1020 = vsub.f32 1.5, %v1019
        %v1021 = vmul.f32 %v1016, %v1020
        %vm1022 = vweird.f32 %v1015
        %vm1023 = vweird.f32 %v1016
        %vm1024 = vmor %vm1022, %vm1023
        %v1025 = vsel %vm1024, %v1016, %v1021
        %v1026 = vmul.f32 %v993, %v1025
        %v1028 = vperm.slane %v1001, 0
        %v1030 = vmul.f32 %v1026, %v1028
        %v1031 = vld [vmem:[%s9] sm:$0xff]
        %v1032 = vld [vmem:[%s9 + $0x8] sm:$0xff]
        %v1033 = vld [vmem:[%s9 + $0x10] sm:$0xff]
        %v1034 = vld [vmem:[%s9 + $0x18] sm:$0xff]
        %v1035 = vld [vmem:[%s9 + $0x20] sm:$0xff]
        %v1036 = vld [vmem:[%s9 + $0x28] sm:$0xff]
        %v1037 = vld [vmem:[%s9 + $0x30] sm:$0xff]
        %v1038 = vld [vmem:[%s9 + $0x38] sm:$0xff]
        %v1040 = vsel %vm1003, %v1030, 0
        %1042 = vmatpush.msra.mxu0 0.0
        %1043 = vmatpush.msra.mxu0 0.0
        %1044 = vmatpush.msra.mxu0 0.0
        %1045 = vmatpush.msra.mxu0 0.0
        %1046 = vmatpush.msra.mxu0 0.0
        %1047 = vmatpush.msra.mxu0 0.0
        %1048 = vmatpush.msra.mxu0 0.0
        %1049 = vmatpush.msra.mxu0 0.0
        %1050 = vmatpush.msra.mxu0 %v1038
        %1051 = vmatpush.msra.mxu0 %v1037
        %1052 = vmatpush.msra.mxu0 %v1036
        %1053 = vmatpush.msra.mxu0 %v1035
        %1054 = vmatpush.msra.mxu0 %v1034
        %1055 = vmatpush.msra.mxu0 %v1033
        %1056 = vmatpush.msra.mxu0 %v1032
        %1057 = vmatpush.msra.mxu0 %v1031
        %1058 = vmatmul.f32.gmra.mxu0 %v1040
        %v1059 = vpop.f32.mrf.mxu0
        %v1060 = vadd.f32 0.0, %v1059
        %1061 = vdwg.mxu0
        %v1062 = vld [vmem:[%s10] sm:$0xff]
        %v1063 = vld [vmem:[%s10 + $0x8] sm:$0xff]
        %v1064 = vld [vmem:[%s10 + $0x10] sm:$0xff]
        %v1065 = vld [vmem:[%s10 + $0x18] sm:$0xff]
        %v1066 = vld [vmem:[%s10 + $0x20] sm:$0xff]
        %v1067 = vld [vmem:[%s10 + $0x28] sm:$0xff]
        %v1068 = vld [vmem:[%s10 + $0x30] sm:$0xff]
        %v1069 = vld [vmem:[%s10 + $0x38] sm:$0xff]
        %v1071 = vsel %vm1003, %v994, 0
        %1073 = vmatpush.msra.mxu0 0.0
        %1074 = vmatpush.msra.mxu0 0.0
        %1075 = vmatpush.msra.mxu0 0.0
        %1076 = vmatpush.msra.mxu0 0.0
        %1077 = vmatpush.msra.mxu0 0.0
        %1078 = vmatpush.msra.mxu0 0.0
        %1079 = vmatpush.msra.mxu0 0.0
        %1080 = vmatpush.msra.mxu0 0.0
        %1081 = vmatpush.msra.mxu0 %v1069
        %1082 = vmatpush.msra.mxu0 %v1068
        %1083 = vmatpush.msra.mxu0 %v1067
        %1084 = vmatpush.msra.mxu0 %v1066
        %1085 = vmatpush.msra.mxu0 %v1065
        %1086 = vmatpush.msra.mxu0 %v1064
        %1087 = vmatpush.msra.mxu0 %v1063
        %1088 = vmatpush.msra.mxu0 %v1062
        %1089 = vmatmul.f32.gmra.mxu0 %v1071
        %v1090 = vpop.f32.mrf.mxu0
        %v1091 = vadd.f32 0.0, %v1090
        %1092 = vdwg.mxu0
        %v1093 = vld [vmem:[%s11] sm:$0x1]
        %v1094 = vld [vmem:[%s11 + $0x1] sm:$0x1]
        %v1095 = vmul.f32 %v1091, %v1091
        %vm1096 = vcmask 130048
        %v1097 = vsel %vm1096, %v1095, 0.0
        %1098 = vadd.xlane.f32.xlu0 %v1097
        %v1099 = vpop.xlane.xlu0 %1098
        %v1100 = vrcp.pop 16.0
        %v1101 = vmul.f32 16.0, %v1100
        %v1102 = vsub.f32 1.0, %v1101
        %v1103 = vmul.f32 %v1100, %v1102
        %v1104 = vadd.f32 %v1100, %v1103
        %vm1105 = vweird.f32 %v1100
        %v1106 = vsel %vm1105, %v1100, %v1104
        %v1107 = vmul.f32 %v1099, %v1106
        %v1108 = vadd.f32 %v1107, 1e-05
        %v1109 = vrsqrt.pop %v1108
        %v1110 = vmul.f32 %v1109, %v1108
        %v1111 = vmul.f32 %v1110, %v1109
        %v1112 = vmul.f32 0.5, %v1111
        %v1113 = vsub.f32 1.5, %v1112
        %v1114 = vmul.f32 %v1109, %v1113
        %vm1115 = vweird.f32 %v1108
        %vm1116 = vweird.f32 %v1109
        %vm1117 = vmor %vm1115, %vm1116
        %v1118 = vsel %vm1117, %v1109, %v1114
        %v1119 = vmul.f32 %v1091, %v1118
        %v1120 = vperm.slane %v1094, 0
        %v1121 = vmul.f32 %v1119, %v1120
        %1122 = vst.msk [vmem:[%s958] sm:$0xff] %vm1096, %v1121
        %1124 = vrot.lane.b32.xlu0 %v1091, 96
        %v1125 = vpop.permute.xlu0 %1124
        %1127 = vst.msk [vmem:[%s965] sm:$0xff] %vm1096, %v1125
        %1129 = vrot.lane.b32.xlu0 %v1095, 112
        %v1130 = vpop.permute.xlu0 %1129
        %v1132 = vsel %vm1096, %v1130, 0.0
        %1133 = vadd.xlane.f32.xlu0 %v1132
        %v1134 = vpop.xlane.xlu0 %1133
        %v1135 = vmul.f32 %v1134, %v1106
        %v1136 = vadd.f32 %v1135, 1e-05
        %v1137 = vrsqrt.pop %v1136
        %v1138 = vmul.f32 %v1137, %v1136
        %v1139 = vmul.f32 %v1138, %v1137
        %v1140 = vmul.f32 0.5, %v1139
        %v1141 = vsub.f32 1.5, %v1140
        %v1142 = vmul.f32 %v1137, %v1141
        %vm1143 = vweird.f32 %v1136
        %vm1144 = vweird.f32 %v1137
        %vm1145 = vmor %vm1143, %vm1144
        %v1146 = vsel %vm1145, %v1137, %v1142
        %v1147 = vmul.f32 %v1091, %v1146
        %1149 = vrot.lane.b32.xlu0 %v1120, 16
        %v1150 = vpop.permute.xlu0 %1149
        %v1152 = vmul.f32 %v1147, %v1150
        %1154 = vrot.lane.b32.xlu0 %v1152, 112
        %v1155 = vpop.permute.xlu0 %1154
        %s1157 = scalar_lea.vmem %s958, 8 [#allocation13]
        %1158 = vst.msk [vmem:[%s1157] sm:$0xff] %vm1096, %v1155
        %1159 = vrot.lane.b32.xlu0 %v1091, 80
        %v1160 = vpop.permute.xlu0 %1159
        %s1162 = scalar_lea.vmem %s965, 8 [#allocation15]
        %1163 = vst.msk [vmem:[%s1162] sm:$0xff] %vm1096, %v1160
        %v1164 = vmul.f32 %v1060, %v1060
        %v1165 = vsel %vm1096, %v1164, 0.0
        %1166 = vadd.xlane.f32.xlu0 %v1165
        %v1167 = vpop.xlane.xlu0 %1166
        %v1168 = vmul.f32 %v1167, %v1106
        %v1169 = vadd.f32 %v1168, 1e-05
        %v1170 = vrsqrt.pop %v1169
        %v1171 = vmul.f32 %v1170, %v1169
        %v1172 = vmul.f32 %v1171, %v1170
        %v1173 = vmul.f32 0.5, %v1172
        %v1174 = vsub.f32 1.5, %v1173
        %v1175 = vmul.f32 %v1170, %v1174
        %vm1176 = vweird.f32 %v1169
        %vm1177 = vweird.f32 %v1170
        %vm1178 = vmor %vm1176, %vm1177
        %v1179 = vsel %vm1178, %v1170, %v1175
        %v1180 = vmul.f32 %v1060, %v1179
        %v1181 = vperm.slane %v1093, 0
        %v1182 = vmul.f32 %v1180, %v1181
        %v1184 = vsel %vm1096, %v1182, 0
        %v1187 = vsel %vm1096, %v1121, 0
        %1189 = vmatpush.xpose.msra.mxu0 0.0
        %1190 = vmatpush.xpose.msra.mxu0 0.0
        %1191 = vmatpush.xpose.msra.mxu0 0.0
        %1192 = vmatpush.xpose.msra.mxu0 0.0
        %1193 = vmatpush.xpose.msra.mxu0 0.0
        %1194 = vmatpush.xpose.msra.mxu0 0.0
        %1195 = vmatpush.xpose.msra.mxu0 0.0
        %1196 = vmatpush.xpose.msra.mxu0 0.0
        %1197 = vmatpush.xpose.msra.mxu0 0.0
        %1198 = vmatpush.xpose.msra.mxu0 0.0
        %1199 = vmatpush.xpose.msra.mxu0 0.0
        %1200 = vmatpush.xpose.msra.mxu0 0.0
        %1201 = vmatpush.xpose.msra.mxu0 0.0
        %1202 = vmatpush.xpose.msra.mxu0 0.0
        %1203 = vmatpush.xpose.msra.mxu0 0.0
        %1204 = vmatpush.xpose.msra.mxu0 %v1187
        %1205 = vmatmul.f32.gmra.mxu0 %v1184
        %v1206 = vpop.f32.mrf.mxu0
        %v1207 = vadd.f32 0.0, %v1206
        %1208 = vdwg.mxu0
        %v1209 = vmul.f32 %v1207, 0.25
        %v1210 = vadd.f32 %v1209, %v995
        %vm1211 = vcmask 64512
        %v1212 = vsel %vm1211, %v1210, -inf
        %1213 = vmax.xlane.f32.xlu0 %v1212
        %v1214 = vpop.xlane.xlu0 %1213
        %v1215 = vsub.f32 %v1210, %v1214
        %v1216 = vmul.f32 %v1215, 1.442695
        %v1217 = vpow.pop %v1216
        %v1218 = vsel %vm1211, %v1217, 0.0
        %1219 = vadd.xlane.f32.xlu0 %v1218
        %v1220 = vpop.xlane.xlu0 %1219
        %v1221 = vrcp.pop %v1220
        %v1222 = vmul.f32 %v1217, %v1221
        %v1224 = vsel %vm1211, %v1222, 0
        %1226 = vmatpush.msra.mxu0 0.0
        %1227 = vmatpush.msra.mxu0 0.0
        %1228 = vmatpush.msra.mxu0 0.0
        %1229 = vmatpush.msra.mxu0 0.0
        %1230 = vmatpush.msra.mxu0 0.0
        %1231 = vmatpush.msra.mxu0 0.0
        %1232 = vmatpush.msra.mxu0 0.0
        %1233 = vmatpush.msra.mxu0 0.0
        %1234 = vmatpush.msra.mxu0 0.0
        %1235 = vmatpush.msra.mxu0 0.0
        %1236 = vmatpush.msra.mxu0 0.0
        %1237 = vmatpush.msra.mxu0 0.0
        %1238 = vmatpush.msra.mxu0 0.0
        %1239 = vmatpush.msra.mxu0 0.0
        %1240 = vmatpush.msra.mxu0 0.0
        %1241 = vmatpush.msra.mxu0 %v1125
        %1242 = vmatmul.f32.gmra.mxu0 %v1224
        %v1243 = vpop.f32.mrf.mxu0
        %v1244 = vadd.f32 0.0, %v1243
        %1245 = vdwg.mxu0
        %1246 = vst.msk [vmem:[#allocation2] sm:$0xff] %vm1096, %v1244
        %1248 = vrot.lane.b32.xlu0 %v1164, 112
        %v1249 = vpop.permute.xlu0 %1248
        %v1251 = vsel %vm1096, %v1249, 0.0
        %1252 = vadd.xlane.f32.xlu0 %v1251
        %v1253 = vpop.xlane.xlu0 %1252
        %v1254 = vmul.f32 %v1253, %v1106
        %v1255 = vadd.f32 %v1254, 1e-05
        %v1256 = vrsqrt.pop %v1255
        %v1257 = vmul.f32 %v1256, %v1255
        %v1258 = vmul.f32 %v1257, %v1256
        %v1259 = vmul.f32 0.5, %v1258
        %v1260 = vsub.f32 1.5, %v1259
        %v1261 = vmul.f32 %v1256, %v1260
        %vm1262 = vweird.f32 %v1255
        %vm1263 = vweird.f32 %v1256
        %vm1264 = vmor %vm1262, %vm1263
        %v1265 = vsel %vm1264, %v1256, %v1261
        %v1266 = vmul.f32 %v1060, %v1265
        %1268 = vrot.lane.b32.xlu0 %v1181, 16
        %v1269 = vpop.permute.xlu0 %1268
        %v1271 = vmul.f32 %v1266, %v1269
        %1273 = vrot.lane.b32.xlu0 %v1271, 112
        %v1274 = vpop.permute.xlu0 %1273
        %v1275 = vsel %vm1096, %v1274, 0
        %1277 = vmatpush.xpose.msra.mxu0 0.0
        %1278 = vmatpush.xpose.msra.mxu0 0.0
        %1279 = vmatpush.xpose.msra.mxu0 0.0
        %1280 = vmatpush.xpose.msra.mxu0 0.0
        %1281 = vmatpush.xpose.msra.mxu0 0.0
        %1282 = vmatpush.xpose.msra.mxu0 0.0
        %1283 = vmatpush.xpose.msra.mxu0 0.0
        %1284 = vmatpush.xpose.msra.mxu0 0.0
        %1285 = vmatpush.xpose.msra.mxu0 0.0
        %1286 = vmatpush.xpose.msra.mxu0 0.0
        %1287 = vmatpush.xpose.msra.mxu0 0.0
        %1288 = vmatpush.xpose.msra.mxu0 0.0
        %1289 = vmatpush.xpose.msra.mxu0 0.0
        %1290 = vmatpush.xpose.msra.mxu0 0.0
        %1291 = vmatpush.xpose.msra.mxu0 0.0
        %1292 = vmatpush.xpose.msra.mxu0 %v1187
        %1293 = vmatmul.f32.gmra.mxu0 %v1275
        %v1294 = vpop.f32.mrf.mxu0
        %v1295 = vadd.f32 0.0, %v1294
        %1296 = vdwg.mxu0
        %v1297 = vmul.f32 %v1295, 0.25
        %v1298 = vadd.f32 %v1297, %v995
        %v1299 = vsel %vm1211, %v1298, -inf
        %1300 = vmax.xlane.f32.xlu0 %v1299
        %v1301 = vpop.xlane.xlu0 %1300
        %v1302 = vsub.f32 %v1298, %v1301
        %v1303 = vmul.f32 %v1302, 1.442695
        %v1304 = vpow.pop %v1303
        %v1305 = vsel %vm1211, %v1304, 0.0
        %1306 = vadd.xlane.f32.xlu0 %v1305
        %v1307 = vpop.xlane.xlu0 %1306
        %v1308 = vrcp.pop %v1307
        %v1309 = vmul.f32 %v1304, %v1308
        %v1311 = vsel %vm1211, %v1309, 0
        %1313 = vmatpush.msra.mxu0 0.0
        %1314 = vmatpush.msra.mxu0 0.0
        %1315 = vmatpush.msra.mxu0 0.0
        %1316 = vmatpush.msra.mxu0 0.0
        %1317 = vmatpush.msra.mxu0 0.0
        %1318 = vmatpush.msra.mxu0 0.0
        %1319 = vmatpush.msra.mxu0 0.0
        %1320 = vmatpush.msra.mxu0 0.0
        %1321 = vmatpush.msra.mxu0 0.0
        %1322 = vmatpush.msra.mxu0 0.0
        %1323 = vmatpush.msra.mxu0 0.0
        %1324 = vmatpush.msra.mxu0 0.0
        %1325 = vmatpush.msra.mxu0 0.0
        %1326 = vmatpush.msra.mxu0 0.0
        %1327 = vmatpush.msra.mxu0 0.0
        %1328 = vmatpush.msra.mxu0 %v1125
        %1329 = vmatmul.f32.gmra.mxu0 %v1311
        %v1330 = vpop.f32.mrf.mxu0
        %v1331 = vadd.f32 0.0, %v1330
        %1332 = vdwg.mxu0
        %1334 = vrot.lane.b32.xlu0 %v1331, 16
        %v1335 = vpop.permute.xlu0 %1334
        %vm1337 = vcmask 261248
        %1338 = vst.msk [vmem:[#allocation2] sm:$0xff] %vm1337, %v1335
        %1339 = vrot.lane.b32.xlu0 %v1164, 96
        %v1340 = vpop.permute.xlu0 %1339
        %v1342 = vsel %vm1096, %v1340, 0.0
        %1343 = vadd.xlane.f32.xlu0 %v1342
        %v1344 = vpop.xlane.xlu0 %1343
        %v1345 = vmul.f32 %v1344, %v1106
        %v1346 = vadd.f32 %v1345, 1e-05
        %v1347 = vrsqrt.pop %v1346
        %v1348 = vmul.f32 %v1347, %v1346
        %v1349 = vmul.f32 %v1348, %v1347
        %v1350 = vmul.f32 0.5, %v1349
        %v1351 = vsub.f32 1.5, %v1350
        %v1352 = vmul.f32 %v1347, %v1351
        %vm1353 = vweird.f32 %v1346
        %vm1354 = vweird.f32 %v1347
        %vm1355 = vmor %vm1353, %vm1354
        %v1356 = vsel %vm1355, %v1347, %v1352
        %v1357 = vmul.f32 %v1060, %v1356
        %1358 = vrot.lane.b32.xlu0 %v1181, 32
        %v1359 = vpop.permute.xlu0 %1358
        %v1361 = vmul.f32 %v1357, %v1359
        %1363 = vrot.lane.b32.xlu0 %v1361, 96
        %v1364 = vpop.permute.xlu0 %1363
        %v1365 = vsel %vm1096, %v1364, 0
        %v1367 = vsel %vm1096, %v1155, 0
        %1369 = vmatpush.xpose.msra.mxu0 0.0
        %1370 = vmatpush.xpose.msra.mxu0 0.0
        %1371 = vmatpush.xpose.msra.mxu0 0.0
        %1372 = vmatpush.xpose.msra.mxu0 0.0
        %1373 = vmatpush.xpose.msra.mxu0 0.0
        %1374 = vmatpush.xpose.msra.mxu0 0.0
        %1375 = vmatpush.xpose.msra.mxu0 0.0
        %1376 = vmatpush.xpose.msra.mxu0 0.0
        %1377 = vmatpush.xpose.msra.mxu0 0.0
        %1378 = vmatpush.xpose.msra.mxu0 0.0
        %1379 = vmatpush.xpose.msra.mxu0 0.0
        %1380 = vmatpush.xpose.msra.mxu0 0.0
        %1381 = vmatpush.xpose.msra.mxu0 0.0
        %1382 = vmatpush.xpose.msra.mxu0 0.0
        %1383 = vmatpush.xpose.msra.mxu0 0.0
        %1384 = vmatpush.xpose.msra.mxu0 %v1367
        %1385 = vmatmul.f32.gmra.mxu0 %v1365
        %v1386 = vpop.f32.mrf.mxu0
        %v1387 = vadd.f32 0.0, %v1386
        %1388 = vdwg.mxu0
        %v1389 = vmul.f32 %v1387, 0.25
        %v1390 = vadd.f32 %v1389, %v995
        %v1391 = vsel %vm1211, %v1390, -inf
        %1392 = vmax.xlane.f32.xlu0 %v1391
        %v1393 = vpop.xlane.xlu0 %1392
        %v1394 = vsub.f32 %v1390, %v1393
        %v1395 = vmul.f32 %v1394, 1.442695
        %v1396 = vpow.pop %v1395
        %v1397 = vsel %vm1211, %v1396, 0.0
        %1398 = vadd.xlane.f32.xlu0 %v1397
        %v1399 = vpop.xlane.xlu0 %1398
        %v1400 = vrcp.pop %v1399
        %v1401 = vmul.f32 %v1396, %v1400
        %v1403 = vsel %vm1211, %v1401, 0
        %1405 = vmatpush.msra.mxu0 0.0
        %1406 = vmatpush.msra.mxu0 0.0
        %1407 = vmatpush.msra.mxu0 0.0
        %1408 = vmatpush.msra.mxu0 0.0
        %1409 = vmatpush.msra.mxu0 0.0
        %1410 = vmatpush.msra.mxu0 0.0
        %1411 = vmatpush.msra.mxu0 0.0
        %1412 = vmatpush.msra.mxu0 0.0
        %1413 = vmatpush.msra.mxu0 0.0
        %1414 = vmatpush.msra.mxu0 0.0
        %1415 = vmatpush.msra.mxu0 0.0
        %1416 = vmatpush.msra.mxu0 0.0
        %1417 = vmatpush.msra.mxu0 0.0
        %1418 = vmatpush.msra.mxu0 0.0
        %1419 = vmatpush.msra.mxu0 0.0
        %1420 = vmatpush.msra.mxu0 %v1160
        %1421 = vmatmul.f32.gmra.mxu0 %v1403
        %v1422 = vpop.f32.mrf.mxu0
        %v1423 = vadd.f32 0.0, %v1422
        %1424 = vdwg.mxu0
        %1426 = vrot.lane.b32.xlu0 %v1423, 32
        %v1427 = vpop.permute.xlu0 %1426
        %vm1429 = vcmask 392448
        %1430 = vst.msk [vmem:[#allocation2] sm:$0xff] %vm1429, %v1427
        %1431 = vrot.lane.b32.xlu0 %v1164, 80
        %v1432 = vpop.permute.xlu0 %1431
        %v1434 = vsel %vm1096, %v1432, 0.0
        %1435 = vadd.xlane.f32.xlu0 %v1434
        %v1436 = vpop.xlane.xlu0 %1435
        %v1437 = vmul.f32 %v1436, %v1106
        %v1438 = vadd.f32 %v1437, 1e-05
        %v1439 = vrsqrt.pop %v1438
        %v1440 = vmul.f32 %v1439, %v1438
        %v1441 = vmul.f32 %v1440, %v1439
        %v1442 = vmul.f32 0.5, %v1441
        %v1443 = vsub.f32 1.5, %v1442
        %v1444 = vmul.f32 %v1439, %v1443
        %vm1445 = vweird.f32 %v1438
        %vm1446 = vweird.f32 %v1439
        %vm1447 = vmor %vm1445, %vm1446
        %v1448 = vsel %vm1447, %v1439, %v1444
        %v1449 = vmul.f32 %v1060, %v1448
        %1450 = vrot.lane.b32.xlu0 %v1181, 48
        %v1451 = vpop.permute.xlu0 %1450
        %v1453 = vmul.f32 %v1449, %v1451
        %1455 = vrot.lane.b32.xlu0 %v1453, 80
        %v1456 = vpop.permute.xlu0 %1455
        %v1457 = vsel %vm1096, %v1456, 0
        %1459 = vmatpush.xpose.msra.mxu0 0.0
        %1460 = vmatpush.xpose.msra.mxu0 0.0
        %1461 = vmatpush.xpose.msra.mxu0 0.0
        %1462 = vmatpush.xpose.msra.mxu0 0.0
        %1463 = vmatpush.xpose.msra.mxu0 0.0
        %1464 = vmatpush.xpose.msra.mxu0 0.0
        %1465 = vmatpush.xpose.msra.mxu0 0.0
        %1466 = vmatpush.xpose.msra.mxu0 0.0
        %1467 = vmatpush.xpose.msra.mxu0 0.0
        %1468 = vmatpush.xpose.msra.mxu0 0.0
        %1469 = vmatpush.xpose.msra.mxu0 0.0
        %1470 = vmatpush.xpose.msra.mxu0 0.0
        %1471 = vmatpush.xpose.msra.mxu0 0.0
        %1472 = vmatpush.xpose.msra.mxu0 0.0
        %1473 = vmatpush.xpose.msra.mxu0 0.0
        %1474 = vmatpush.xpose.msra.mxu0 %v1367
        %1475 = vmatmul.f32.gmra.mxu0 %v1457
        %v1476 = vpop.f32.mrf.mxu0
        %v1477 = vadd.f32 0.0, %v1476
        %1478 = vdwg.mxu0
        %v1479 = vmul.f32 %v1477, 0.25
        %v1480 = vadd.f32 %v1479, %v995
        %v1481 = vsel %vm1211, %v1480, -inf
        %1482 = vmax.xlane.f32.xlu0 %v1481
        %v1483 = vpop.xlane.xlu0 %1482
        %v1484 = vsub.f32 %v1480, %v1483
        %v1485 = vmul.f32 %v1484, 1.442695
        %v1486 = vpow.pop %v1485
        %v1487 = vsel %vm1211, %v1486, 0.0
        %1488 = vadd.xlane.f32.xlu0 %v1487
        %v1489 = vpop.xlane.xlu0 %1488
        %v1490 = vrcp.pop %v1489
        %v1491 = vmul.f32 %v1486, %v1490
        %v1493 = vsel %vm1211, %v1491, 0
        %1495 = vmatpush.msra.mxu0 0.0
        %1496 = vmatpush.msra.mxu0 0.0
        %1497 = vmatpush.msra.mxu0 0.0
        %1498 = vmatpush.msra.mxu0 0.0
        %1499 = vmatpush.msra.mxu0 0.0
        %1500 = vmatpush.msra.mxu0 0.0
        %1501 = vmatpush.msra.mxu0 0.0
        %1502 = vmatpush.msra.mxu0 0.0
        %1503 = vmatpush.msra.mxu0 0.0
        %1504 = vmatpush.msra.mxu0 0.0
        %1505 = vmatpush.msra.mxu0 0.0
        %1506 = vmatpush.msra.mxu0 0.0
        %1507 = vmatpush.msra.mxu0 0.0
        %1508 = vmatpush.msra.mxu0 0.0
        %1509 = vmatpush.msra.mxu0 0.0
        %1510 = vmatpush.msra.mxu0 %v1160
        %1511 = vmatmul.f32.gmra.mxu0 %v1493
        %v1512 = vpop.f32.mrf.mxu0
        %v1513 = vadd.f32 0.0, %v1512
        %1514 = vdwg.mxu0
        %1516 = vrot.lane.b32.xlu0 %v1513, 48
        %v1517 = vpop.permute.xlu0 %1516
        %vm1519 = vcmask 523648
        %1520 = vst.msk [vmem:[#allocation2] sm:$0xff] %vm1519, %v1517
        %v1521 = vld [vmem:[#allocation2] sm:$0xff]
        %1523 = vset.pattern.permute.xlu0 0
        %1524 = vperm.xlu0 %1523, %v996
        %v1525 = vpop.permute.xlu0 %1524
        %v1527 = vmul.f32 %v1521, %v1525
        %v1528 = vld [vmem:[%s12] sm:$0xff]
        %v1529 = vld [vmem:[%s12 + $0x8] sm:$0xff]
        %v1530 = vld [vmem:[%s12 + $0x10] sm:$0xff]
        %v1531 = vld [vmem:[%s12 + $0x18] sm:$0xff]
        %v1532 = vld [vmem:[%s12 + $0x20] sm:$0xff]
        %v1533 = vld [vmem:[%s12 + $0x28] sm:$0xff]
        %v1534 = vld [vmem:[%s12 + $0x30] sm:$0xff]
        %v1535 = vld [vmem:[%s12 + $0x38] sm:$0xff]
        %v1537 = vsel %vm1003, %v1527, 0
        %1539 = vmatpush.msra.mxu0 0.0
        %1540 = vmatpush.msra.mxu0 0.0
        %1541 = vmatpush.msra.mxu0 0.0
        %1542 = vmatpush.msra.mxu0 0.0
        %1543 = vmatpush.msra.mxu0 0.0
        %1544 = vmatpush.msra.mxu0 0.0
        %1545 = vmatpush.msra.mxu0 0.0
        %1546 = vmatpush.msra.mxu0 0.0
        %1547 = vmatpush.msra.mxu0 %v1535
        %1548 = vmatpush.msra.mxu0 %v1534
        %1549 = vmatpush.msra.mxu0 %v1533
        %1550 = vmatpush.msra.mxu0 %v1532
        %1551 = vmatpush.msra.mxu0 %v1531
        %1552 = vmatpush.msra.mxu0 %v1530
        %1553 = vmatpush.msra.mxu0 %v1529
        %1554 = vmatpush.msra.mxu0 %v1528
        %1555 = vmatmul.f32.gmra.mxu0 %v1537
        %v1556 = vpop.f32.mrf.mxu0
        %v1557 = vadd.f32 0.0, %v1556
        %1558 = vdwg.mxu0
        %v1560 = vperm.slane %v997, 0
        %1561 = vset.pattern.permute.xlu0 0
        %1562 = vperm.xlu0 %1561, %v1560
        %v1563 = vpop.permute.xlu0 %1562
        %v1565 = vmul.f32 %v1563, %v1557
        %v1566 = vadd.f32 %v993, %v1565
        %v1567 = vld [vmem:[%s13] sm:$0x1]
        %v1568 = vld [vmem:[%s14] sm:$0xff]
        %v1569 = vld [vmem:[%s14 + $0x8] sm:$0xff]
        %v1570 = vld [vmem:[%s14 + $0x10] sm:$0xff]
        %v1571 = vld [vmem:[%s14 + $0x18] sm:$0xff]
        %v1572 = vld [vmem:[%s14 + $0x20] sm:$0xff]
        %v1573 = vld [vmem:[%s14 + $0x28] sm:$0xff]
        %v1574 = vld [vmem:[%s14 + $0x30] sm:$0xff]
        %v1575 = vld [vmem:[%s14 + $0x38] sm:$0xff]
        %v1576 = vld [vmem:[%s14 + $0x40] sm:$0xff]
        %v1577 = vld [vmem:[%s14 + $0x48] sm:$0xff]
        %v1578 = vld [vmem:[%s14 + $0x50] sm:$0xff]
        %v1579 = vld [vmem:[%s14 + $0x58] sm:$0xff]
        %v1580 = vld [vmem:[%s14 + $0x60] sm:$0xff]
        %v1581 = vld [vmem:[%s14 + $0x68] sm:$0xff]
        %v1582 = vld [vmem:[%s14 + $0x70] sm:$0xff]
        %v1583 = vld [vmem:[%s14 + $0x78] sm:$0xff]
        %v1584 = vld [vmem:[%s15] sm:$0xff]
        %v1585 = vld [vmem:[%s15 + $0x8] sm:$0xff]
        %v1586 = vld [vmem:[%s15 + $0x10] sm:$0xff]
        %v1587 = vld [vmem:[%s15 + $0x18] sm:$0xff]
        %v1588 = vld [vmem:[%s15 + $0x20] sm:$0xff]
        %v1589 = vld [vmem:[%s15 + $0x28] sm:$0xff]
        %v1590 = vld [vmem:[%s15 + $0x30] sm:$0xff]
        %v1591 = vld [vmem:[%s15 + $0x38] sm:$0xff]
        %v1592 = vld [vmem:[%s15 + $0x40] sm:$0xff]
        %v1593 = vld [vmem:[%s15 + $0x48] sm:$0xff]
        %v1594 = vld [vmem:[%s15 + $0x50] sm:$0xff]
        %v1595 = vld [vmem:[%s15 + $0x58] sm:$0xff]
        %v1596 = vld [vmem:[%s15 + $0x60] sm:$0xff]
        %v1597 = vld [vmem:[%s15 + $0x68] sm:$0xff]
        %v1598 = vld [vmem:[%s15 + $0x70] sm:$0xff]
        %v1599 = vld [vmem:[%s15 + $0x78] sm:$0xff]
        %v1600 = vmul.f32 %v1566, %v1566
        %v1601 = vsel %vm1003, %v1600, 0.0
        %1602 = vadd.xlane.f32.xlu0 %v1601
        %v1603 = vpop.xlane.xlu0 %1602
        %v1604 = vmul.f32 %v1603, %v1013
        %v1605 = vadd.f32 %v1604, 1e-05
        %v1606 = vrsqrt.pop %v1605
        %v1607 = vmul.f32 %v1606, %v1605
        %v1608 = vmul.f32 %v1607, %v1606
        %v1609 = vmul.f32 0.5, %v1608
        %v1610 = vsub.f32 1.5, %v1609
        %v1611 = vmul.f32 %v1606, %v1610
        %vm1612 = vweird.f32 %v1605
        %vm1613 = vweird.f32 %v1606
        %vm1614 = vmor %vm1612, %vm1613
        %v1615 = vsel %vm1614, %v1606, %v1611
        %v1616 = vmul.f32 %v1566, %v1615
        %v1618 = vperm.slane %v1567, 0
        %v1620 = vmul.f32 %v1616, %v1618
        %v1622 = vsel %vm1003, %v1620, 0
        %1624 = vmatpush.msra.mxu0 0.0
        %1625 = vmatpush.msra.mxu0 0.0
        %1626 = vmatpush.msra.mxu0 0.0
        %1627 = vmatpush.msra.mxu0 0.0
        %1628 = vmatpush.msra.mxu0 0.0
        %1629 = vmatpush.msra.mxu0 0.0
        %1630 = vmatpush.msra.mxu0 0.0
        %1631 = vmatpush.msra.mxu0 0.0
        %1632 = vmatpush.msra.mxu0 %v1582
        %1633 = vmatpush.msra.mxu0 %v1580
        %1634 = vmatpush.msra.mxu0 %v1578
        %1635 = vmatpush.msra.mxu0 %v1576
        %1636 = vmatpush.msra.mxu0 %v1574
        %1637 = vmatpush.msra.mxu0 %v1572
        %1638 = vmatpush.msra.mxu0 %v1570
        %1639 = vmatpush.msra.mxu0 %v1568
        %1640 = vmatmul.f32.gmra.mxu0 %v1622
        %v1641 = vpop.f32.mrf.mxu0
        %v1642 = vadd.f32 0.0, %v1641
        %1643 = vdwg.mxu0
        %1644 = vmatpush.msra.mxu0 0.0
        %1645 = vmatpush.msra.mxu0 0.0
        %1646 = vmatpush.msra.mxu0 0.0
        %1647 = vmatpush.msra.mxu0 0.0
        %1648 = vmatpush.msra.mxu0 0.0
        %1649 = vmatpush.msra.mxu0 0.0
        %1650 = vmatpush.msra.mxu0 0.0
        %1651 = vmatpush.msra.mxu0 0.0
        %1652 = vmatpush.msra.mxu0 %v1583
        %1653 = vmatpush.msra.mxu0 %v1581
        %1654 = vmatpush.msra.mxu0 %v1579
        %1655 = vmatpush.msra.mxu0 %v1577
        %1656 = vmatpush.msra.mxu0 %v1575
        %1657 = vmatpush.msra.mxu0 %v1573
        %1658 = vmatpush.msra.mxu0 %v1571
        %1659 = vmatpush.msra.mxu0 %v1569
        %1660 = vmatmul.f32.gmra.mxu0 %v1622
        %v1661 = vpop.f32.mrf.mxu0
        %v1662 = vadd.f32 0.0, %v1661
        %1663 = vdwg.mxu0
        %v1664 = vxor.u32 %v1642, 2147483648
        %v1665 = vmul.f32 %v1664, 1.442695
        %v1666 = vpow.pop %v1665
        %v1667 = vadd.f32 %v1666, 1.0
        %v1668 = vrcp.pop %v1667
        %v1669 = vmul.f32 %v1667, %v1668
        %v1670 = vsub.f32 1.0, %v1669
        %v1671 = vmul.f32 %v1668, %v1670
        %v1672 = vadd.f32 %v1668, %v1671
        %vm1673 = vweird.f32 %v1667
        %vm1674 = vweird.f32 %v1668
        %vm1675 = vmor %vm1673, %vm1674
        %v1676 = vsel %vm1675, %v1668, %v1672
        %v1677 = vand.u32 2147483647, %v1667
        %vm1678 = vcmp.eq.f32.partialorder %v1677, 8.507059e+37
        %v1679 = vand.u32 %v1667, 2147483648
        %v1680 = vor.u32 1.1754944e-38, %v1679
        %v1681 = vsel %vm1678, %v1680, %v1676
        %v1682 = vmul.f32 1.0, %v1681
        %v1683 = vmul.f32 %v1642, %v1682
        %v1684 = vmul.f32 %v1683, %v1662
        %1685 = vmatpush.msra.mxu0 %v1599
        %1686 = vmatpush.msra.mxu0 %v1598
        %1687 = vmatpush.msra.mxu0 %v1597
        %1688 = vmatpush.msra.mxu0 %v1596
        %1689 = vmatpush.msra.mxu0 %v1595
        %1690 = vmatpush.msra.mxu0 %v1594
        %1691 = vmatpush.msra.mxu0 %v1593
        %1692 = vmatpush.msra.mxu0 %v1592
        %1693 = vmatpush.msra.mxu0 %v1591
        %1694 = vmatpush.msra.mxu0 %v1590
        %1695 = vmatpush.msra.mxu0 %v1589
        %1696 = vmatpush.msra.mxu0 %v1588
        %1697 = vmatpush.msra.mxu0 %v1587
        %1698 = vmatpush.msra.mxu0 %v1586
        %1699 = vmatpush.msra.mxu0 %v1585
        %1700 = vmatpush.msra.mxu0 %v1584
        %1701 = vmatmul.f32.gmra.mxu0 %v1684
        %v1702 = vpop.f32.mrf.mxu0
        %v1703 = vadd.f32 0.0, %v1702
        %1704 = vdwg.mxu0
        %v1705 = vmul.f32 %v1525, %v1703
        %v1706 = vmul.f32 %v1563, %v1705
        %v1707 = vadd.f32 %v1566, %v1706
        %v1708 = vld [vmem:[%s16] sm:$0x1]
        %v1709 = vmul.f32 %v1707, %v1707
        %v1710 = vsel %vm1003, %v1709, 0.0
        %1711 = vadd.xlane.f32.xlu0 %v1710
        %v1712 = vpop.xlane.xlu0 %1711
        %v1713 = vmul.f32 %v1712, %v1013
        %v1714 = vadd.f32 %v1713, 1e-05
        %v1715 = vrsqrt.pop %v1714
        %v1716 = vmul.f32 %v1715, %v1714
        %v1717 = vmul.f32 %v1716, %v1715
        %v1718 = vmul.f32 0.5, %v1717
        %v1719 = vsub.f32 1.5, %v1718
        %v1720 = vmul.f32 %v1715, %v1719
        %vm1721 = vweird.f32 %v1714
        %vm1722 = vweird.f32 %v1715
        %vm1723 = vmor %vm1721, %vm1722
        %v1724 = vsel %vm1723, %v1715, %v1720
        %v1725 = vmul.f32 %v1707, %v1724
        %v1727 = vperm.slane %v1708, 0
        %v1729 = vmul.f32 %v1725, %v1727
        %v1730 = vld [vmem:[#allocation6] sm:$0xff]
        %v1731 = vld [vmem:[#allocation6 + $0x8] sm:$0xff]
        %v1732 = vld [vmem:[#allocation6 + $0x10] sm:$0xff]
        %v1733 = vld [vmem:[#allocation6 + $0x18] sm:$0xff]
        %v1734 = vld [vmem:[#allocation6 + $0x20] sm:$0xff]
        %v1735 = vld [vmem:[#allocation6 + $0x28] sm:$0xff]
        %v1736 = vld [vmem:[#allocation6 + $0x30] sm:$0xff]
        %v1737 = vld [vmem:[#allocation6 + $0x38] sm:$0xff]
        %v1739 = vsel %vm1003, %v1729, 0
        %1741 = vmatpush.msra.mxu0 0.0
        %1742 = vmatpush.msra.mxu0 0.0
        %1743 = vmatpush.msra.mxu0 0.0
        %1744 = vmatpush.msra.mxu0 0.0
        %1745 = vmatpush.msra.mxu0 0.0
        %1746 = vmatpush.msra.mxu0 0.0
        %1747 = vmatpush.msra.mxu0 0.0
        %1748 = vmatpush.msra.mxu0 0.0
        %1749 = vmatpush.msra.mxu0 %v1737
        %1750 = vmatpush.msra.mxu0 %v1736
        %1751 = vmatpush.msra.mxu0 %v1735
        %1752 = vmatpush.msra.mxu0 %v1734
        %1753 = vmatpush.msra.mxu0 %v1733
        %1754 = vmatpush.msra.mxu0 %v1732
        %1755 = vmatpush.msra.mxu0 %v1731
        %1756 = vmatpush.msra.mxu0 %v1730
        %1757 = vmatmul.f32.gmra.mxu0 %v1739
        %v1758 = vpop.f32.mrf.mxu0
        %v1759 = vadd.f32 0.0, %v1758
        %1760 = vdwg.mxu0
        %1762 = vrot.lane.b32.xlu0 %v999, 64
        %v1763 = vpop.permute.xlu0 %1762
        %v1765 = vmul.f32 %v1759, %v1763
        %1767 = vrot.lane.b32.xlu0 %v1000, 72
        %v1768 = vpop.permute.xlu0 %1767
        %v1770 = vmul.f32 %v1759, %v1768
        %1772 = vrot.lane.b32.xlu0 %v1770, 120
        %v1773 = vpop.permute.xlu0 %1772
        %v1775 = vsub.f32 %v1765, %v1773
        %1776 = vrot.lane.b32.xlu0 %v1000, 56
        %v1777 = vpop.permute.xlu0 %1776
        %v1779 = vmul.f32 %v1759, %v1777
        %1781 = vrot.lane.b32.xlu0 %v1779, 8
        %v1782 = vpop.permute.xlu0 %1781
        %v1784 = vadd.f32 %v1765, %v1782
        %1786 = vrot.lane.b32.xlu0 %v1775, 64
        %v1787 = vpop.permute.xlu0 %1786
        %1789 = vst.msk [vmem:[%s944] sm:$0xff] %vm1211, %v1787
        %1791 = vrot.lane.b32.xlu0 %v1784, 64
        %v1792 = vpop.permute.xlu0 %1791
        %vm1794 = vcmask 130112
        %1795 = vst.msk [vmem:[%s944] sm:$0xff] %vm1794, %v1792
        %1797 = vrot.lane.b32.xlu0 %v1759, 32
        %v1798 = vpop.permute.xlu0 %1797
        %1800 = vst.msk [vmem:[%s951] sm:$0xff] %vm1096, %v1798
        %1801 = vrot.lane.b32.xlu0 %v999, 80
        %v1802 = vpop.permute.xlu0 %1801
        %v1804 = vmul.f32 %v1759, %v1802
        %1805 = vrot.lane.b32.xlu0 %v1000, 88
        %v1806 = vpop.permute.xlu0 %1805
        %v1808 = vmul.f32 %v1759, %v1806
        %1810 = vrot.lane.b32.xlu0 %v1808, 120
        %v1811 = vpop.permute.xlu0 %1810
        %v1813 = vsub.f32 %v1804, %v1811
        %1814 = vrot.lane.b32.xlu0 %v1770, 8
        %v1815 = vpop.permute.xlu0 %1814
        %v1817 = vadd.f32 %v1804, %v1815
        %1819 = vrot.lane.b32.xlu0 %v1813, 48
        %v1820 = vpop.permute.xlu0 %1819
        %s1822 = scalar_lea.vmem %s944, 8 [#allocation10]
        %1823 = vst.msk [vmem:[%s1822] sm:$0xff] %vm1211, %v1820
        %1825 = vrot.lane.b32.xlu0 %v1817, 48
        %v1826 = vpop.permute.xlu0 %1825
        %1828 = vst.msk [vmem:[%s1822] sm:$0xff] %vm1794, %v1826
        %1829 = vrot.lane.b32.xlu0 %v1759, 16
        %v1830 = vpop.permute.xlu0 %1829
        %s1832 = scalar_lea.vmem %s951, 8 [#allocation12]
        %1833 = vst.msk [vmem:[%s1832] sm:$0xff] %vm1096, %v1830
        %v1834 = vmul.f32 %v1759, %v999
        %1835 = vrot.lane.b32.xlu0 %v1000, 8
        %v1836 = vpop.permute.xlu0 %1835
        %v1838 = vmul.f32 %v1759, %v1836
        %1840 = vrot.lane.b32.xlu0 %v1838, 120
        %v1841 = vpop.permute.xlu0 %1840
        %v1843 = vsub.f32 %v1834, %v1841
        %1844 = vrot.lane.b32.xlu0 %v1000, 120
        %v1845 = vpop.permute.xlu0 %1844
        %v1847 = vmul.f32 %v1759, %v1845
        %1849 = vrot.lane.b32.xlu0 %v1847, 8
        %v1850 = vpop.permute.xlu0 %1849
        %v1852 = vadd.f32 %v1834, %v1850
        %1854 = vrot.lane.b32.xlu0 %v1852, 120
        %v1855 = vpop.permute.xlu0 %1854
        %1856 = vrot.lane.b32.xlu0 %v1784, 56
        %v1857 = vpop.permute.xlu0 %1856
        %v1858 = vsel %vm1211, %v1855, 0
        %v1860 = vsel %vm1211, %v1857, 0
        %1862 = vmatpush.xpose.msra.mxu0 0.0
        %1863 = vmatpush.xpose.msra.mxu0 0.0
        %1864 = vmatpush.xpose.msra.mxu0 0.0
        %1865 = vmatpush.xpose.msra.mxu0 0.0
        %1866 = vmatpush.xpose.msra.mxu0 0.0
        %1867 = vmatpush.xpose.msra.mxu0 0.0
        %1868 = vmatpush.xpose.msra.mxu0 0.0
        %1869 = vmatpush.xpose.msra.mxu0 0.0
        %1870 = vmatpush.xpose.msra.mxu0 0.0
        %1871 = vmatpush.xpose.msra.mxu0 0.0
        %1872 = vmatpush.xpose.msra.mxu0 0.0
        %1873 = vmatpush.xpose.msra.mxu0 0.0
        %1874 = vmatpush.xpose.msra.mxu0 0.0
        %1875 = vmatpush.xpose.msra.mxu0 0.0
        %1876 = vmatpush.xpose.msra.mxu0 0.0
        %1877 = vmatpush.xpose.msra.mxu0 %v1860
        %1878 = vmatmul.f32.gmra.mxu0 %v1858
        %v1879 = vpop.f32.mrf.mxu0
        %v1880 = vadd.f32 0.0, %v1879
        %1881 = vdwg.mxu0
        %v1883 = vsel %vm1211, %v1843, 0
        %v1885 = vsel %vm1211, %v1787, 0
        %1887 = vmatpush.xpose.msra.mxu0 0.0
        %1888 = vmatpush.xpose.msra.mxu0 0.0
        %1889 = vmatpush.xpose.msra.mxu0 0.0
        %1890 = vmatpush.xpose.msra.mxu0 0.0
        %1891 = vmatpush.xpose.msra.mxu0 0.0
        %1892 = vmatpush.xpose.msra.mxu0 0.0
        %1893 = vmatpush.xpose.msra.mxu0 0.0
        %1894 = vmatpush.xpose.msra.mxu0 0.0
        %1895 = vmatpush.xpose.msra.mxu0 0.0
        %1896 = vmatpush.xpose.msra.mxu0 0.0
        %1897 = vmatpush.xpose.msra.mxu0 0.0
        %1898 = vmatpush.xpose.msra.mxu0 0.0
        %1899 = vmatpush.xpose.msra.mxu0 0.0
        %1900 = vmatpush.xpose.msra.mxu0 0.0
        %1901 = vmatpush.xpose.msra.mxu0 0.0
        %1902 = vmatpush.xpose.msra.mxu0 %v1885
        %1903 = vmatmul.f32.gmra.mxu0 %v1883
        %v1904 = vpop.f32.mrf.mxu0
        %v1905 = vadd.f32 %v1880, %v1904
        %1906 = vdwg.mxu0
        %v1907 = vmul.f32 %v1905, 0.25
        %v1908 = vadd.f32 %v1907, %v998
        %v1909 = vsel %vm1211, %v1908, -inf
        %1910 = vmax.xlane.f32.xlu0 %v1909
        %v1911 = vpop.xlane.xlu0 %1910
        %v1912 = vsub.f32 %v1908, %v1911
        %v1913 = vmul.f32 %v1912, 1.442695
        %v1914 = vpow.pop %v1913
        %v1915 = vsel %vm1211, %v1914, 0.0
        %1916 = vadd.xlane.f32.xlu0 %v1915
        %v1917 = vpop.xlane.xlu0 %1916
        %v1918 = vrcp.pop %v1917
        %v1919 = vmul.f32 %v1914, %v1918
        %v1921 = vsel %vm1211, %v1919, 0
        %1923 = vmatpush.msra.mxu0 0.0
        %1924 = vmatpush.msra.mxu0 0.0
        %1925 = vmatpush.msra.mxu0 0.0
        %1926 = vmatpush.msra.mxu0 0.0
        %1927 = vmatpush.msra.mxu0 0.0
        %1928 = vmatpush.msra.mxu0 0.0
        %1929 = vmatpush.msra.mxu0 0.0
        %1930 = vmatpush.msra.mxu0 0.0
        %1931 = vmatpush.msra.mxu0 0.0
        %1932 = vmatpush.msra.mxu0 0.0
        %1933 = vmatpush.msra.mxu0 0.0
        %1934 = vmatpush.msra.mxu0 0.0
        %1935 = vmatpush.msra.mxu0 0.0
        %1936 = vmatpush.msra.mxu0 0.0
        %1937 = vmatpush.msra.mxu0 0.0
        %1938 = vmatpush.msra.mxu0 %v1798
        %1939 = vmatmul.f32.gmra.mxu0 %v1921
        %v1940 = vpop.f32.mrf.mxu0
        %v1941 = vadd.f32 0.0, %v1940
        %1942 = vdwg.mxu0
        %1943 = vst.msk [vmem:[#allocation2] sm:$0xff] %vm1096, %v1941
        %1944 = vrot.lane.b32.xlu0 %v999, 16
        %v1945 = vpop.permute.xlu0 %1944
        %v1947 = vmul.f32 %v1759, %v1945
        %1948 = vrot.lane.b32.xlu0 %v1000, 24
        %v1949 = vpop.permute.xlu0 %1948
        %v1951 = vmul.f32 %v1759, %v1949
        %1953 = vrot.lane.b32.xlu0 %v1951, 120
        %v1954 = vpop.permute.xlu0 %1953
        %v1956 = vsub.f32 %v1947, %v1954
        %1957 = vrot.lane.b32.xlu0 %v1838, 8
        %v1958 = vpop.permute.xlu0 %1957
        %v1960 = vadd.f32 %v1947, %v1958
        %1962 = vrot.lane.b32.xlu0 %v1960, 104
        %v1963 = vpop.permute.xlu0 %1962
        %v1964 = vsel %vm1211, %v1963, 0
        %1966 = vmatpush.xpose.msra.mxu0 0.0
        %1967 = vmatpush.xpose.msra.mxu0 0.0
        %1968 = vmatpush.xpose.msra.mxu0 0.0
        %1969 = vmatpush.xpose.msra.mxu0 0.0
        %1970 = vmatpush.xpose.msra.mxu0 0.0
        %1971 = vmatpush.xpose.msra.mxu0 0.0
        %1972 = vmatpush.xpose.msra.mxu0 0.0
        %1973 = vmatpush.xpose.msra.mxu0 0.0
        %1974 = vmatpush.xpose.msra.mxu0 0.0
        %1975 = vmatpush.xpose.msra.mxu0 0.0
        %1976 = vmatpush.xpose.msra.mxu0 0.0
        %1977 = vmatpush.xpose.msra.mxu0 0.0
        %1978 = vmatpush.xpose.msra.mxu0 0.0
        %1979 = vmatpush.xpose.msra.mxu0 0.0
        %1980 = vmatpush.xpose.msra.mxu0 0.0
        %1981 = vmatpush.xpose.msra.mxu0 %v1860
        %1982 = vmatmul.f32.gmra.mxu0 %v1964
        %v1983 = vpop.f32.mrf.mxu0
        %v1984 = vadd.f32 0.0, %v1983
        %1985 = vdwg.mxu0
        %1987 = vrot.lane.b32.xlu0 %v1956, 112
        %v1988 = vpop.permute.xlu0 %1987
        %v1989 = vsel %vm1211, %v1988, 0
        %1991 = vmatpush.xpose.msra.mxu0 0.0
        %1992 = vmatpush.xpose.msra.mxu0 0.0
        %1993 = vmatpush.xpose.msra.mxu0 0.0
        %1994 = vmatpush.xpose.msra.mxu0 0.0
        %1995 = vmatpush.xpose.msra.mxu0 0.0
        %1996 = vmatpush.xpose.msra.mxu0 0.0
        %1997 = vmatpush.xpose.msra.mxu0 0.0
        %1998 = vmatpush.xpose.msra.mxu0 0.0
        %1999 = vmatpush.xpose.msra.mxu0 0.0
        %2000 = vmatpush.xpose.msra.mxu0 0.0
        %2001 = vmatpush.xpose.msra.mxu0 0.0
        %2002 = vmatpush.xpose.msra.mxu0 0.0
        %2003 = vmatpush.xpose.msra.mxu0 0.0
        %2004 = vmatpush.xpose.msra.mxu0 0.0
        %2005 = vmatpush.xpose.msra.mxu0 0.0
        %2006 = vmatpush.xpose.msra.mxu0 %v1885
        %2007 = vmatmul.f32.gmra.mxu0 %v1989
        %v2008 = vpop.f32.mrf.mxu0
        %v2009 = vadd.f32 %v1984, %v2008
        %2010 = vdwg.mxu0
        %v2011 = vmul.f32 %v2009, 0.25
        %v2012 = vadd.f32 %v2011, %v998
        %v2013 = vsel %vm1211, %v2012, -inf
        %2014 = vmax.xlane.f32.xlu0 %v2013
        %v2015 = vpop.xlane.xlu0 %2014
        %v2016 = vsub.f32 %v2012, %v2015
        %v2017 = vmul.f32 %v2016, 1.442695
        %v2018 = vpow.pop %v2017
        %v2019 = vsel %vm1211, %v2018, 0.0
        %2020 = vadd.xlane.f32.xlu0 %v2019
        %v2021 = vpop.xlane.xlu0 %2020
        %v2022 = vrcp.pop %v2021
        %v2023 = vmul.f32 %v2018, %v2022
        %v2025 = vsel %vm1211, %v2023, 0
        %2027 = vmatpush.msra.mxu0 0.0
        %2028 = vmatpush.msra.mxu0 0.0
        %2029 = vmatpush.msra.mxu0 0.0
        %2030 = vmatpush.msra.mxu0 0.0
        %2031 = vmatpush.msra.mxu0 0.0
        %2032 = vmatpush.msra.mxu0 0.0
        %2033 = vmatpush.msra.mxu0 0.0
        %2034 = vmatpush.msra.mxu0 0.0
        %2035 = vmatpush.msra.mxu0 0.0
        %2036 = vmatpush.msra.mxu0 0.0
        %2037 = vmatpush.msra.mxu0 0.0
        %2038 = vmatpush.msra.mxu0 0.0
        %2039 = vmatpush.msra.mxu0 0.0
        %2040 = vmatpush.msra.mxu0 0.0
        %2041 = vmatpush.msra.mxu0 0.0
        %2042 = vmatpush.msra.mxu0 %v1798
        %2043 = vmatmul.f32.gmra.mxu0 %v2025
        %v2044 = vpop.f32.mrf.mxu0
        %v2045 = vadd.f32 0.0, %v2044
        %2046 = vdwg.mxu0
        %2048 = vrot.lane.b32.xlu0 %v2045, 16
        %v2049 = vpop.permute.xlu0 %2048
        %2051 = vst.msk [vmem:[#allocation2] sm:$0xff] %vm1337, %v2049
        %2052 = vrot.lane.b32.xlu0 %v999, 32
        %v2053 = vpop.permute.xlu0 %2052
        %v2055 = vmul.f32 %v1759, %v2053
        %2056 = vrot.lane.b32.xlu0 %v1000, 40
        %v2057 = vpop.permute.xlu0 %2056
        %v2059 = vmul.f32 %v1759, %v2057
        %2061 = vrot.lane.b32.xlu0 %v2059, 120
        %v2062 = vpop.permute.xlu0 %2061
        %v2064 = vsub.f32 %v2055, %v2062
        %2065 = vrot.lane.b32.xlu0 %v1951, 8
        %v2066 = vpop.permute.xlu0 %2065
        %v2068 = vadd.f32 %v2055, %v2066
        %2070 = vrot.lane.b32.xlu0 %v2068, 88
        %v2071 = vpop.permute.xlu0 %2070
        %2072 = vrot.lane.b32.xlu0 %v1817, 40
        %v2073 = vpop.permute.xlu0 %2072
        %v2074 = vsel %vm1211, %v2071, 0
        %v2076 = vsel %vm1211, %v2073, 0
        %2078 = vmatpush.xpose.msra.mxu0 0.0
        %2079 = vmatpush.xpose.msra.mxu0 0.0
        %2080 = vmatpush.xpose.msra.mxu0 0.0
        %2081 = vmatpush.xpose.msra.mxu0 0.0
        %2082 = vmatpush.xpose.msra.mxu0 0.0
        %2083 = vmatpush.xpose.msra.mxu0 0.0
        %2084 = vmatpush.xpose.msra.mxu0 0.0
        %2085 = vmatpush.xpose.msra.mxu0 0.0
        %2086 = vmatpush.xpose.msra.mxu0 0.0
        %2087 = vmatpush.xpose.msra.mxu0 0.0
        %2088 = vmatpush.xpose.msra.mxu0 0.0
        %2089 = vmatpush.xpose.msra.mxu0 0.0
        %2090 = vmatpush.xpose.msra.mxu0 0.0
        %2091 = vmatpush.xpose.msra.mxu0 0.0
        %2092 = vmatpush.xpose.msra.mxu0 0.0
        %2093 = vmatpush.xpose.msra.mxu0 %v2076
        %2094 = vmatmul.f32.gmra.mxu0 %v2074
        %v2095 = vpop.f32.mrf.mxu0
        %v2096 = vadd.f32 0.0, %v2095
        %2097 = vdwg.mxu0
        %2099 = vrot.lane.b32.xlu0 %v2064, 96
        %v2100 = vpop.permute.xlu0 %2099
        %v2101 = vsel %vm1211, %v2100, 0
        %v2103 = vsel %vm1211, %v1820, 0
        %2105 = vmatpush.xpose.msra.mxu0 0.0
        %2106 = vmatpush.xpose.msra.mxu0 0.0
        %2107 = vmatpush.xpose.msra.mxu0 0.0
        %2108 = vmatpush.xpose.msra.mxu0 0.0
        %2109 = vmatpush.xpose.msra.mxu0 0.0
        %2110 = vmatpush.xpose.msra.mxu0 0.0
        %2111 = vmatpush.xpose.msra.mxu0 0.0
        %2112 = vmatpush.xpose.msra.mxu0 0.0
        %2113 = vmatpush.xpose.msra.mxu0 0.0
        %2114 = vmatpush.xpose.msra.mxu0 0.0
        %2115 = vmatpush.xpose.msra.mxu0 0.0
        %2116 = vmatpush.xpose.msra.mxu0 0.0
        %2117 = vmatpush.xpose.msra.mxu0 0.0
        %2118 = vmatpush.xpose.msra.mxu0 0.0
        %2119 = vmatpush.xpose.msra.mxu0 0.0
        %2120 = vmatpush.xpose.msra.mxu0 %v2103
        %2121 = vmatmul.f32.gmra.mxu0 %v2101
        %v2122 = vpop.f32.mrf.mxu0
        %v2123 = vadd.f32 %v2096, %v2122
        %2124 = vdwg.mxu0
        %v2125 = vmul.f32 %v2123, 0.25
        %v2126 = vadd.f32 %v2125, %v998
        %v2127 = vsel %vm1211, %v2126, -inf
        %2128 = vmax.xlane.f32.xlu0 %v2127
        %v2129 = vpop.xlane.xlu0 %2128
        %v2130 = vsub.f32 %v2126, %v2129
        %v2131 = vmul.f32 %v2130, 1.442695
        %v2132 = vpow.pop %v2131
        %v2133 = vsel %vm1211, %v2132, 0.0
        %2134 = vadd.xlane.f32.xlu0 %v2133
        %v2135 = vpop.xlane.xlu0 %2134
        %v2136 = vrcp.pop %v2135
        %v2137 = vmul.f32 %v2132, %v2136
        %v2139 = vsel %vm1211, %v2137, 0
        %2141 = vmatpush.msra.mxu0 0.0
        %2142 = vmatpush.msra.mxu0 0.0
        %2143 = vmatpush.msra.mxu0 0.0
        %2144 = vmatpush.msra.mxu0 0.0
        %2145 = vmatpush.msra.mxu0 0.0
        %2146 = vmatpush.msra.mxu0 0.0
        %2147 = vmatpush.msra.mxu0 0.0
        %2148 = vmatpush.msra.mxu0 0.0
        %2149 = vmatpush.msra.mxu0 0.0
        %2150 = vmatpush.msra.mxu0 0.0
        %2151 = vmatpush.msra.mxu0 0.0
        %2152 = vmatpush.msra.mxu0 0.0
        %2153 = vmatpush.msra.mxu0 0.0
        %2154 = vmatpush.msra.mxu0 0.0
        %2155 = vmatpush.msra.mxu0 0.0
        %2156 = vmatpush.msra.mxu0 %v1830
        %2157 = vmatmul.f32.gmra.mxu0 %v2139
        %v2158 = vpop.f32.mrf.mxu0
        %v2159 = vadd.f32 0.0, %v2158
        %2160 = vdwg.mxu0
        %2162 = vrot.lane.b32.xlu0 %v2159, 32
        %v2163 = vpop.permute.xlu0 %2162
        %2165 = vst.msk [vmem:[#allocation2] sm:$0xff] %vm1429, %v2163
        %2166 = vrot.lane.b32.xlu0 %v999, 48
        %v2167 = vpop.permute.xlu0 %2166
        %v2169 = vmul.f32 %v1759, %v2167
        %2170 = vrot.lane.b32.xlu0 %v1779, 120
        %v2171 = vpop.permute.xlu0 %2170
        %v2173 = vsub.f32 %v2169, %v2171
        %2174 = vrot.lane.b32.xlu0 %v2059, 8
        %v2175 = vpop.permute.xlu0 %2174
        %v2177 = vadd.f32 %v2169, %v2175
        %2179 = vrot.lane.b32.xlu0 %v2177, 72
        %v2180 = vpop.permute.xlu0 %2179
        %v2181 = vsel %vm1211, %v2180, 0
        %2183 = vmatpush.xpose.msra.mxu0 0.0
        %2184 = vmatpush.xpose.msra.mxu0 0.0
        %2185 = vmatpush.xpose.msra.mxu0 0.0
        %2186 = vmatpush.xpose.msra.mxu0 0.0
        %2187 = vmatpush.xpose.msra.mxu0 0.0
        %2188 = vmatpush.xpose.msra.mxu0 0.0
        %2189 = vmatpush.xpose.msra.mxu0 0.0
        %2190 = vmatpush.xpose.msra.mxu0 0.0
        %2191 = vmatpush.xpose.msra.mxu0 0.0
        %2192 = vmatpush.xpose.msra.mxu0 0.0
        %2193 = vmatpush.xpose.msra.mxu0 0.0
        %2194 = vmatpush.xpose.msra.mxu0 0.0
        %2195 = vmatpush.xpose.msra.mxu0 0.0
        %2196 = vmatpush.xpose.msra.mxu0 0.0
        %2197 = vmatpush.xpose.msra.mxu0 0.0
        %2198 = vmatpush.xpose.msra.mxu0 %v2076
        %2199 = vmatmul.f32.gmra.mxu0 %v2181
        %v2200 = vpop.f32.mrf.mxu0
        %v2201 = vadd.f32 0.0, %v2200
        %2202 = vdwg.mxu0
        %2204 = vrot.lane.b32.xlu0 %v2173, 80
        %v2205 = vpop.permute.xlu0 %2204
        %v2206 = vsel %vm1211, %v2205, 0
        %2208 = vmatpush.xpose.msra.mxu0 0.0
        %2209 = vmatpush.xpose.msra.mxu0 0.0
        %2210 = vmatpush.xpose.msra.mxu0 0.0
        %2211 = vmatpush.xpose.msra.mxu0 0.0
        %2212 = vmatpush.xpose.msra.mxu0 0.0
        %2213 = vmatpush.xpose.msra.mxu0 0.0
        %2214 = vmatpush.xpose.msra.mxu0 0.0
        %2215 = vmatpush.xpose.msra.mxu0 0.0
        %2216 = vmatpush.xpose.msra.mxu0 0.0
        %2217 = vmatpush.xpose.msra.mxu0 0.0
        %2218 = vmatpush.xpose.msra.mxu0 0.0
        %2219 = vmatpush.xpose.msra.mxu0 0.0
        %2220 = vmatpush.xpose.msra.mxu0 0.0
        %2221 = vmatpush.xpose.msra.mxu0 0.0
        %2222 = vmatpush.xpose.msra.mxu0 0.0
        %2223 = vmatpush.xpose.msra.mxu0 %v2103
        %2224 = vmatmul.f32.gmra.mxu0 %v2206
        %v2225 = vpop.f32.mrf.mxu0
        %v2226 = vadd.f32 %v2201, %v2225
        %2227 = vdwg.mxu0
        %v2228 = vmul.f32 %v2226, 0.25
        %v2229 = vadd.f32 %v2228, %v998
        %v2230 = vsel %vm1211, %v2229, -inf
        %2231 = vmax.xlane.f32.xlu0 %v2230
        %v2232 = vpop.xlane.xlu0 %2231
        %v2233 = vsub.f32 %v2229, %v2232
        %v2234 = vmul.f32 %v2233, 1.442695
        %v2235 = vpow.pop %v2234
        %v2236 = vsel %vm1211, %v2235, 0.0
        %2237 = vadd.xlane.f32.xlu0 %v2236
        %v2238 = vpop.xlane.xlu0 %2237
        %v2239 = vrcp.pop %v2238
        %v2240 = vmul.f32 %v2235, %v2239
        %v2242 = vsel %vm1211, %v2240, 0
        %2244 = vmatpush.msra.mxu0 0.0
        %2245 = vmatpush.msra.mxu0 0.0
        %2246 = vmatpush.msra.mxu0 0.0
        %2247 = vmatpush.msra.mxu0 0.0
        %2248 = vmatpush.msra.mxu0 0.0
        %2249 = vmatpush.msra.mxu0 0.0
        %2250 = vmatpush.msra.mxu0 0.0
        %2251 = vmatpush.msra.mxu0 0.0
        %2252 = vmatpush.msra.mxu0 0.0
        %2253 = vmatpush.msra.mxu0 0.0
        %2254 = vmatpush.msra.mxu0 0.0
        %2255 = vmatpush.msra.mxu0 0.0
        %2256 = vmatpush.msra.mxu0 0.0
        %2257 = vmatpush.msra.mxu0 0.0
        %2258 = vmatpush.msra.mxu0 0.0
        %2259 = vmatpush.msra.mxu0 %v1830
        %2260 = vmatmul.f32.gmra.mxu0 %v2242
        %v2261 = vpop.f32.mrf.mxu0
        %v2262 = vadd.f32 0.0, %v2261
        %2263 = vdwg.mxu0
        %2265 = vrot.lane.b32.xlu0 %v2262, 48
        %v2266 = vpop.permute.xlu0 %2265
        %2268 = vst.msk [vmem:[#allocation2] sm:$0xff] %vm1519, %v2266
        %v2269 = vld [vmem:[#allocation2] sm:$0xff]
        %v2270 = vld [vmem:[#allocation8] sm:$0xff]
        %v2271 = vld [vmem:[#allocation8 + $0x8] sm:$0xff]
        %v2272 = vld [vmem:[#allocation8 + $0x10] sm:$0xff]
        %v2273 = vld [vmem:[#allocation8 + $0x18] sm:$0xff]
        %v2274 = vld [vmem:[#allocation8 + $0x20] sm:$0xff]
        %v2275 = vld [vmem:[#allocation8 + $0x28] sm:$0xff]
        %v2276 = vld [vmem:[#allocation8 + $0x30] sm:$0xff]
        %v2277 = vld [vmem:[#allocation8 + $0x38] sm:$0xff]
        %v2279 = vsel %vm1003, %v2269, 0
        %2281 = vmatpush.msra.mxu0 0.0
        %2282 = vmatpush.msra.mxu0 0.0
        %2283 = vmatpush.msra.mxu0 0.0
        %2284 = vmatpush.msra.mxu0 0.0
        %2285 = vmatpush.msra.mxu0 0.0
        %2286 = vmatpush.msra.mxu0 0.0
        %2287 = vmatpush.msra.mxu0 0.0
        %2288 = vmatpush.msra.mxu0 0.0
        %2289 = vmatpush.msra.mxu0 %v2277
        %2290 = vmatpush.msra.mxu0 %v2276
        %2291 = vmatpush.msra.mxu0 %v2275
        %2292 = vmatpush.msra.mxu0 %v2274
        %2293 = vmatpush.msra.mxu0 %v2273
        %2294 = vmatpush.msra.mxu0 %v2272
        %2295 = vmatpush.msra.mxu0 %v2271
        %2296 = vmatpush.msra.mxu0 %v2270
        %2297 = vmatmul.f32.gmra.mxu0 %v2279
        %v2298 = vpop.f32.mrf.mxu0
        %v2299 = vadd.f32 0.0, %v2298
        %2300 = vdwg.mxu0
        %v2301 = vadd.f32 %v1707, %v2299
        %v2302 = vld [vmem:[%s19] sm:$0x1]
        %v2303 = vld [vmem:[%s20] sm:$0xff]
        %v2304 = vld [vmem:[%s20 + $0x8] sm:$0xff]
        %v2305 = vld [vmem:[%s20 + $0x10] sm:$0xff]
        %v2306 = vld [vmem:[%s20 + $0x18] sm:$0xff]
        %v2307 = vld [vmem:[%s20 + $0x20] sm:$0xff]
        %v2308 = vld [vmem:[%s20 + $0x28] sm:$0xff]
        %v2309 = vld [vmem:[%s20 + $0x30] sm:$0xff]
        %v2310 = vld [vmem:[%s20 + $0x38] sm:$0xff]
        %v2311 = vld [vmem:[%s20 + $0x40] sm:$0xff]
        %v2312 = vld [vmem:[%s20 + $0x48] sm:$0xff]
        %v2313 = vld [vmem:[%s20 + $0x50] sm:$0xff]
        %v2314 = vld [vmem:[%s20 + $0x58] sm:$0xff]
        %v2315 = vld [vmem:[%s20 + $0x60] sm:$0xff]
        %v2316 = vld [vmem:[%s20 + $0x68] sm:$0xff]
        %v2317 = vld [vmem:[%s20 + $0x70] sm:$0xff]
        %v2318 = vld [vmem:[%s20 + $0x78] sm:$0xff]
        %v2319 = vld [vmem:[%s21] sm:$0xff]
        %v2320 = vld [vmem:[%s21 + $0x8] sm:$0xff]
        %v2321 = vld [vmem:[%s21 + $0x10] sm:$0xff]
        %v2322 = vld [vmem:[%s21 + $0x18] sm:$0xff]
        %v2323 = vld [vmem:[%s21 + $0x20] sm:$0xff]
        %v2324 = vld [vmem:[%s21 + $0x28] sm:$0xff]
        %v2325 = vld [vmem:[%s21 + $0x30] sm:$0xff]
        %v2326 = vld [vmem:[%s21 + $0x38] sm:$0xff]
        %v2327 = vld [vmem:[%s21 + $0x40] sm:$0xff]
        %v2328 = vld [vmem:[%s21 + $0x48] sm:$0xff]
        %v2329 = vld [vmem:[%s21 + $0x50] sm:$0xff]
        %v2330 = vld [vmem:[%s21 + $0x58] sm:$0xff]
        %v2331 = vld [vmem:[%s21 + $0x60] sm:$0xff]
        %v2332 = vld [vmem:[%s21 + $0x68] sm:$0xff]
        %v2333 = vld [vmem:[%s21 + $0x70] sm:$0xff]
        %v2334 = vld [vmem:[%s21 + $0x78] sm:$0xff]
        %v2335 = vmul.f32 %v2301, %v2301
        %v2336 = vsel %vm1003, %v2335, 0.0
        %2337 = vadd.xlane.f32.xlu0 %v2336
        %v2338 = vpop.xlane.xlu0 %2337
        %v2339 = vmul.f32 %v2338, %v1013
        %v2340 = vadd.f32 %v2339, 1e-05
        %v2341 = vrsqrt.pop %v2340
        %v2342 = vmul.f32 %v2341, %v2340
        %v2343 = vmul.f32 %v2342, %v2341
        %v2344 = vmul.f32 0.5, %v2343
        %v2345 = vsub.f32 1.5, %v2344
        %v2346 = vmul.f32 %v2341, %v2345
        %vm2347 = vweird.f32 %v2340
        %vm2348 = vweird.f32 %v2341
        %vm2349 = vmor %vm2347, %vm2348
        %v2350 = vsel %vm2349, %v2341, %v2346
        %v2351 = vmul.f32 %v2301, %v2350
        %v2353 = vperm.slane %v2302, 0
        %v2355 = vmul.f32 %v2351, %v2353
        %v2357 = vsel %vm1003, %v2355, 0
        %2359 = vmatpush.msra.mxu0 0.0
        %2360 = vmatpush.msra.mxu0 0.0
        %2361 = vmatpush.msra.mxu0 0.0
        %2362 = vmatpush.msra.mxu0 0.0
        %2363 = vmatpush.msra.mxu0 0.0
        %2364 = vmatpush.msra.mxu0 0.0
        %2365 = vmatpush.msra.mxu0 0.0
        %2366 = vmatpush.msra.mxu0 0.0
        %2367 = vmatpush.msra.mxu0 %v2317
        %2368 = vmatpush.msra.mxu0 %v2315
        %2369 = vmatpush.msra.mxu0 %v2313
        %2370 = vmatpush.msra.mxu0 %v2311
        %2371 = vmatpush.msra.mxu0 %v2309
        %2372 = vmatpush.msra.mxu0 %v2307
        %2373 = vmatpush.msra.mxu0 %v2305
        %2374 = vmatpush.msra.mxu0 %v2303
        %2375 = vmatmul.f32.gmra.mxu0 %v2357
        %v2376 = vpop.f32.mrf.mxu0
        %v2377 = vadd.f32 0.0, %v2376
        %2378 = vdwg.mxu0
        %2379 = vmatpush.msra.mxu0 0.0
        %2380 = vmatpush.msra.mxu0 0.0
        %2381 = vmatpush.msra.mxu0 0.0
        %2382 = vmatpush.msra.mxu0 0.0
        %2383 = vmatpush.msra.mxu0 0.0
        %2384 = vmatpush.msra.mxu0 0.0
        %2385 = vmatpush.msra.mxu0 0.0
        %2386 = vmatpush.msra.mxu0 0.0
        %2387 = vmatpush.msra.mxu0 %v2318
        %2388 = vmatpush.msra.mxu0 %v2316
        %2389 = vmatpush.msra.mxu0 %v2314
        %2390 = vmatpush.msra.mxu0 %v2312
        %2391 = vmatpush.msra.mxu0 %v2310
        %2392 = vmatpush.msra.mxu0 %v2308
        %2393 = vmatpush.msra.mxu0 %v2306
        %2394 = vmatpush.msra.mxu0 %v2304
        %2395 = vmatmul.f32.gmra.mxu0 %v2357
        %v2396 = vpop.f32.mrf.mxu0
        %v2397 = vadd.f32 0.0, %v2396
        %2398 = vdwg.mxu0
        %v2399 = vxor.u32 %v2377, 2147483648
        %v2400 = vmul.f32 %v2399, 1.442695
        %v2401 = vpow.pop %v2400
        %v2402 = vadd.f32 %v2401, 1.0
        %v2403 = vrcp.pop %v2402
        %v2404 = vmul.f32 %v2402, %v2403
        %v2405 = vsub.f32 1.0, %v2404
        %v2406 = vmul.f32 %v2403, %v2405
        %v2407 = vadd.f32 %v2403, %v2406
        %vm2408 = vweird.f32 %v2402
        %vm2409 = vweird.f32 %v2403
        %vm2410 = vmor %vm2408, %vm2409
        %v2411 = vsel %vm2410, %v2403, %v2407
        %v2412 = vand.u32 2147483647, %v2402
        %vm2413 = vcmp.eq.f32.partialorder %v2412, 8.507059e+37
        %v2414 = vand.u32 %v2402, 2147483648
        %v2415 = vor.u32 1.1754944e-38, %v2414
        %v2416 = vsel %vm2413, %v2415, %v2411
        %v2417 = vmul.f32 1.0, %v2416
        %v2418 = vmul.f32 %v2377, %v2417
        %v2419 = vmul.f32 %v2418, %v2397
        %2420 = vmatpush.msra.mxu0 %v2334
        %2421 = vmatpush.msra.mxu0 %v2333
        %2422 = vmatpush.msra.mxu0 %v2332
        %2423 = vmatpush.msra.mxu0 %v2331
        %2424 = vmatpush.msra.mxu0 %v2330
        %2425 = vmatpush.msra.mxu0 %v2329
        %2426 = vmatpush.msra.mxu0 %v2328
        %2427 = vmatpush.msra.mxu0 %v2327
        %2428 = vmatpush.msra.mxu0 %v2326
        %2429 = vmatpush.msra.mxu0 %v2325
        %2430 = vmatpush.msra.mxu0 %v2324
        %2431 = vmatpush.msra.mxu0 %v2323
        %2432 = vmatpush.msra.mxu0 %v2322
        %2433 = vmatpush.msra.mxu0 %v2321
        %2434 = vmatpush.msra.mxu0 %v2320
        %2435 = vmatpush.msra.mxu0 %v2319
        %2436 = vmatmul.f32.gmra.mxu0 %v2419
        %v2437 = vpop.f32.mrf.mxu0
        %v2438 = vadd.f32 0.0, %v2437
        %2439 = vdwg.mxu0
        %v2440 = vadd.f32 %v2301, %v2438
        %2441 = vst.msk [vmem:[%s937] sm:$0xff] %vm1003, %v2440
        %s2442 = sand.u32 %s561, 1
        %s2443 = scalar_lea.sflag [#allocation5], %s2442
        %s2444 = sand.u32 %s561, 1
        %s2445 = smul.addr %s2444, 8
        %s2446 = scalar_lea.vmem [#allocation9], %s2445
        %s2447 = sand.u32 %s51, 1
        %s2448 = scalar_lea.sflag [#allocation11], %s2447
        %s2449 = sand.u32 %s587, 1
        %s2450 = smul.addr %s2449, 16
        %s2451 = scalar_lea.vmem [#allocation10], %s2450
        %s2452 = sand.u32 %s51, 1
        %s2453 = scalar_lea.sflag [#allocation11], %s2452
        %s2454 = sand.u32 %s613, 1
        %s2455 = smul.addr %s2454, 16
        %s2456 = scalar_lea.vmem [#allocation12], %s2455
        %s2457 = sand.u32 %s51, 1
        %s2458 = scalar_lea.sflag [#allocation14], %s2457
        %s2459 = sand.u32 %s639, 1
        %s2460 = smul.addr %s2459, 16
        %s2461 = scalar_lea.vmem [#allocation13], %s2460
        %s2462 = sand.u32 %s51, 1
        %s2463 = scalar_lea.sflag [#allocation14], %s2462
        %s2464 = sand.u32 %s665, 1
        %s2465 = smul.addr %s2464, 16
        %s2466 = scalar_lea.vmem [#allocation15], %s2465
        // Predicated region
        $region121: #{mllama_decoder_layer.1} parent=107 // pred_check
          %p2467 = pneg %p571
        $region122: #{mllama_decoder_layer.1} parent=107 // pred_check_branch
          %2469 = sbr.rel (%p2467) target = $region124
        $region123: #{mllama_decoder_layer.1} parent=107 // pred_region
          %2471 = vsyncadd %s2443, 0
          %s2472 = smul.addr %s51, 8
          %s2473 = scalar_lea.hbm %s22, %s2472
          %s2475 = sshll.u32 %s2446, 4
          %s2476 = int_to_ptr.vmem [resolvable:$true] %s2475
          %s2477 = sshll.u32 %s2473, 4
          %s2478 = int_to_ptr.hbm [resolvable:$true] %s2477
          %2480 = dma.vmem_to_hbm [thread:$0]  %s2476, 128, %s2478, %s2443
        $region124: #{mllama_decoder_layer.1} parent=107 // pred_fallthru
          _
        // Predicated region
        $region125: #{mllama_decoder_layer.1} parent=107 // pred_check
          %p2481 = pneg %p597
        $region126: #{mllama_decoder_layer.1} parent=107 // pred_check_branch
          %2483 = sbr.rel (%p2481) target = $region128
        $region127: #{mllama_decoder_layer.1} parent=107 // pred_region
          %2485 = vsyncadd %s2448, 0
          %s2486 = smul.addr %s51, 2
          %s2487 = smul.addr %s2486, 8
          %s2488 = scalar_lea.hbm %s23, %s2487
          %s2489 = sshll.u32 %s2451, 4
          %s2490 = int_to_ptr.vmem [resolvable:$true] %s2489
          %s2491 = sshll.u32 %s2488, 4
          %s2492 = int_to_ptr.hbm [resolvable:$true] %s2491
          %2497 = dma.vmem_to_hbm [thread:$0]  %s2490, 256, %s2492, %s2448, 128, 128, 8
        $region128: #{mllama_decoder_layer.1} parent=107 // pred_fallthru
          _
        // Predicated region
        $region129: #{mllama_decoder_layer.1} parent=107 // pred_check
          %p2498 = pneg %p623
        $region130: #{mllama_decoder_layer.1} parent=107 // pred_check_branch
          %2500 = sbr.rel (%p2498) target = $region132
        $region131: #{mllama_decoder_layer.1} parent=107 // pred_region
          %2502 = vsyncadd %s2453, 0
          %s2503 = smul.addr %s51, 2
          %s2504 = smul.addr %s2503, 8
          %s2505 = scalar_lea.hbm %s24, %s2504
          %s2506 = sshll.u32 %s2456, 4
          %s2507 = int_to_ptr.vmem [resolvable:$true] %s2506
          %s2508 = sshll.u32 %s2505, 4
          %s2509 = int_to_ptr.hbm [resolvable:$true] %s2508
          %2514 = dma.vmem_to_hbm [thread:$0]  %s2507, 256, %s2509, %s2453, 128, 128, 8
        $region132: #{mllama_decoder_layer.1} parent=107 // pred_fallthru
          _
        // Predicated region
        $region133: #{mllama_decoder_layer.1} parent=107 // pred_check
          %p2515 = pneg %p649
        $region134: #{mllama_decoder_layer.1} parent=107 // pred_check_branch
          %2517 = sbr.rel (%p2515) target = $region136
        $region135: #{mllama_decoder_layer.1} parent=107 // pred_region
          %2519 = vsyncadd %s2458, 0
          %s2520 = smul.addr %s51, 2
          %s2521 = smul.addr %s2520, 8
          %s2522 = scalar_lea.hbm %s25, %s2521
          %s2523 = sshll.u32 %s2461, 4
          %s2524 = int_to_ptr.vmem [resolvable:$true] %s2523
          %s2525 = sshll.u32 %s2522, 4
          %s2526 = int_to_ptr.hbm [resolvable:$true] %s2525
          %2531 = dma.vmem_to_hbm [thread:$0]  %s2524, 256, %s2526, %s2458, 128, 128, 8
        $region136: #{mllama_decoder_layer.1} parent=107 // pred_fallthru
          _
        // Predicated region
        $region137: #{mllama_decoder_layer.1} parent=107 // pred_check
          %p2532 = pneg %p675
        $region138: #{mllama_decoder_layer.1} parent=107 // pred_check_branch
          %2534 = sbr.rel (%p2532) target = $region140
        $region139: #{mllama_decoder_layer.1} parent=107 // pred_region
          %2536 = vsyncadd %s2463, 0
          %s2537 = smul.addr %s51, 2
          %s2538 = smul.addr %s2537, 8
          %s2539 = scalar_lea.hbm %s26, %s2538
          %s2540 = sshll.u32 %s2466, 4
          %s2541 = int_to_ptr.vmem [resolvable:$true] %s2540
          %s2542 = sshll.u32 %s2539, 4
          %s2543 = int_to_ptr.hbm [resolvable:$true] %s2542
          %2548 = dma.vmem_to_hbm [thread:$0]  %s2541, 256, %s2543, %s2463, 128, 128, 8
        $region140: #{mllama_decoder_layer.1} parent=107 // pred_fallthru
          _
      $region108: #{mllama_decoder_layer.1} parent=5 // pred_fallthru
        _
      %p2549 = scmp.le.s32.totalorder 2, %s46
      // Predicated region
      $region141: #{mllama_decoder_layer.1} parent=5 // pred_check
        %p2550 = pneg %p2549
      $region142: #{mllama_decoder_layer.1} parent=5 // pred_check_branch
        %2552 = sbr.rel (%p2550) target = $region144
      $region143: #{mllama_decoder_layer.1} parent=5 // pred_region
        %s2553 = ssub.s32 %s46, 2
        // Predicated region
        $region145: #{mllama_decoder_layer.1} parent=143 // pred_check
          %p2554 = pneg %p577
        $region146: #{mllama_decoder_layer.1} parent=143 // pred_check_branch
          %2556 = sbr.rel (%p2554) target = $region148
        $region147: #{mllama_decoder_layer.1} parent=143 // pred_region
          %s2557 = sand.u32 %s562, 1
          %s2558 = scalar_lea.sflag [#allocation5], %s2557
          %s2559 = sand.u32 %s562, 1
          %s2560 = smul.addr %s2559, 8
          %s2561 = scalar_lea.vmem [#allocation9], %s2560
          %2563 = dma.done %s2558, 128
        $region148: #{mllama_decoder_layer.1} parent=143 // pred_fallthru
          _
        // Predicated region
        $region149: #{mllama_decoder_layer.1} parent=143 // pred_check
          %p2564 = pneg %p603
        $region150: #{mllama_decoder_layer.1} parent=143 // pred_check_branch
          %2566 = sbr.rel (%p2564) target = $region152
        $region151: #{mllama_decoder_layer.1} parent=143 // pred_region
          %s2567 = sand.u32 %s52, 1
          %s2568 = scalar_lea.sflag [#allocation11], %s2567
          %s2569 = sand.u32 %s588, 1
          %s2570 = smul.addr %s2569, 16
          %s2571 = scalar_lea.vmem [#allocation10], %s2570
          %2573 = dma.done %s2568, 256
        $region152: #{mllama_decoder_layer.1} parent=143 // pred_fallthru
          _
        // Predicated region
        $region153: #{mllama_decoder_layer.1} parent=143 // pred_check
          %p2574 = pneg %p629
        $region154: #{mllama_decoder_layer.1} parent=143 // pred_check_branch
          %2576 = sbr.rel (%p2574) target = $region156
        $region155: #{mllama_decoder_layer.1} parent=143 // pred_region
          %s2577 = sand.u32 %s52, 1
          %s2578 = scalar_lea.sflag [#allocation11], %s2577
          %s2579 = sand.u32 %s614, 1
          %s2580 = smul.addr %s2579, 16
          %s2581 = scalar_lea.vmem [#allocation12], %s2580
          %2583 = dma.done %s2578, 256
        $region156: #{mllama_decoder_layer.1} parent=143 // pred_fallthru
          _
        // Predicated region
        $region157: #{mllama_decoder_layer.1} parent=143 // pred_check
          %p2584 = pneg %p655
        $region158: #{mllama_decoder_layer.1} parent=143 // pred_check_branch
          %2586 = sbr.rel (%p2584) target = $region160
        $region159: #{mllama_decoder_layer.1} parent=143 // pred_region
          %s2587 = sand.u32 %s52, 1
          %s2588 = scalar_lea.sflag [#allocation14], %s2587
          %s2589 = sand.u32 %s640, 1
          %s2590 = smul.addr %s2589, 16
          %s2591 = scalar_lea.vmem [#allocation13], %s2590
          %2593 = dma.done %s2588, 256
        $region160: #{mllama_decoder_layer.1} parent=143 // pred_fallthru
          _
        // Predicated region
        $region161: #{mllama_decoder_layer.1} parent=143 // pred_check
          %p2594 = pneg %p681
        $region162: #{mllama_decoder_layer.1} parent=143 // pred_check_branch
          %2596 = sbr.rel (%p2594) target = $region164
        $region163: #{mllama_decoder_layer.1} parent=143 // pred_region
          %s2597 = sand.u32 %s52, 1
          %s2598 = scalar_lea.sflag [#allocation14], %s2597
          %s2599 = sand.u32 %s666, 1
          %s2600 = smul.addr %s2599, 16
          %s2601 = scalar_lea.vmem [#allocation15], %s2600
          %2603 = dma.done %s2598, 256
        $region164: #{mllama_decoder_layer.1} parent=143 // pred_fallthru
          _
      $region144: #{mllama_decoder_layer.1} parent=5 // pred_fallthru
        _
    $region6: #{mllama_decoder_layer.1} parent=1 // loop_footer
      %s50 = sadd.s32 1, %s46
    $region7: #{mllama_decoder_layer.1} parent=1 // loop_footer_branch
      %45 = sbr.rel target = $region3
    $region8: #{mllama_decoder_layer.1} parent=1 // loop_exit
      _
    %2604 = vsyncpa [#allocation4], 1
    %s2605 = scalar_lea.sflag [#allocation4], 1
    %2606 = vsyncpa %s2605, 1
    %2607 = vsyncpa [#allocation7], 1
    %2608 = vsyncpa [#allocation5], 1
    %s2609 = scalar_lea.sflag [#allocation5], 1
    %2610 = vsyncpa %s2609, 1
    %2611 = vsyncpa [#allocation11], 1
    %s2612 = scalar_lea.sflag [#allocation11], 1
    %2613 = vsyncpa %s2612, 1
    %2614 = vsyncpa [#allocation14], 1
    %s2615 = scalar_lea.sflag [#allocation14], 1
    %2616 = vsyncpa %s2615, 1

</llo_original>
